<compile_context>
chip_gen: v7x
topology: tpu7x:2x2x1
jax: 0.10.0
libtpu: 0.0.40
codegen_flags: <defaults>
</compile_context>

<pallas_src>
import functools

import jax
import jax.numpy as jnp
import numpy as np
from jax import lax
from jax.experimental import pallas as pl
from jax.experimental.pallas import tpu as pltpu

KERNEL_SIZE = 7
PAD = KERNEL_SIZE // 2


def _spatial_attention_kernel(x_ref, w_ref, b_ref, o_ref, *, H, W):
    # x_ref: (bb, C, H*W) native dtype, VMEM
    # w_ref: (2*K*K,) f32, SMEM  (flattened OIHW -> [in_ch, ky, kx])
    # b_ref: (1,) f32, SMEM
    # o_ref: (bb, C, H*W) native dtype, VMEM
    K = KERNEL_SIZE
    bb = x_ref.shape[0]
    HW = H * W
    PW = PAD * W + PAD  # 1-D pad length covering every (ky, kx) offset

    x = x_ref[...]
    xf = x.astype(jnp.float32)

    # Channel statistics -> (bb, 1, HW), f32.
    avg = jnp.mean(xf, axis=1, keepdims=True)
    mx = jnp.max(xf, axis=1, keepdims=True)

    # Zero-pad the flattened maps along the lane axis (kept in vregs).
    zpad = jnp.zeros((bb, 1, PW), jnp.float32)
    avg_p = jnp.concatenate([zpad, avg, zpad], axis=2)
    max_p = jnp.concatenate([zpad, mx, zpad], axis=2)

    # Hoist all 2*K*K SMEM scalar weight reads out of the unrolled conv loops.
    wa = [w_ref[ky * K + kx] for ky in range(K) for kx in range(K)]
    wm = [w_ref[K * K + ky * K + kx] for ky in range(K) for kx in range(K)]
    bias = b_ref[0]

    # Column index (x coordinate) of every flattened position, for edge masks.
    col = lax.broadcasted_iota(jnp.int32, (1, 1, HW), 2)
    if W & (W - 1) == 0:
        col = jnp.bitwise_and(col, W - 1)
    else:
        col = col % W

    acc = None
    for kx in range(K):
        # Independent partial accumulators (one per input channel) -> ILP.
        pa = None
        pm = None
        for ky in range(K):
            off = PW + (ky - PAD) * W + (kx - PAD)
            ta = wa[ky * K + kx] * avg_p[:, :, off:off + HW]
            tm = wm[ky * K + kx] * max_p[:, :, off:off + HW]
            pa = ta if pa is None else pa + ta
            pm = tm if pm is None else pm + tm
        part = pa + pm
        # Column (width) edge mask: zero where the tap column falls outside
        # [0, W).  Row edges are already zero via the flat padding (any case
        # where a row-overflow lands back in valid data is also column-masked).
        conds = []
        lo = PAD - kx
        hi = W + PAD - kx
        if lo > 0:
            conds.append(col >= lo)
        if hi < W:
            conds.append(col < hi)
        if conds:
            m = conds[0]
            for c in conds[1:]:
                m = jnp.logical_and(m, c)
            part = jnp.where(m, part, 0.0)
        acc = part if acc is None else acc + part

    attn = jax.nn.sigmoid(acc + bias)              # (bb, 1, HW) f32
    o_ref[...] = (xf * attn).astype(o_ref.dtype)   # lane-dense unmasked store


def _pick_batch_block(B, per_batch_bytes, target_bytes=1 << 20):
    """Largest divisor of B whose block stays under ~1 MiB: amortizes the
    per-grid-step overhead while keeping double-buffered VMEM use small."""
    bb = 1
    for d in range(1, B + 1):
        if B % d == 0 and d * per_batch_bytes <= target_bytes:
            bb = d
    return bb


def spatial_attention(x, conv_w, conv_b):
    """x: (B, C, H, W) float dtype; conv_w: (1, 2, K, K); conv_b: (1,)."""
    B, C, H, W = x.shape
    HW = H * W

    # Lane-dense view (free reshape of a row-major contiguous array).
    x_flat = x.reshape(B, C, HW)
    w_flat = conv_w.reshape(-1).astype(jnp.float32)  # [in_ch, ky, kx]
    b_flat = conv_b.reshape(-1).astype(jnp.float32)

    per_batch_bytes = C * HW * x.dtype.itemsize
    bb = _pick_batch_block(B, per_batch_bytes)
    # NOTE: for very large C*H*W a single batch element may exceed VMEM; that
    # would need a C-tiled two-pass variant (reduce, then multiply).  Not
    # required at the shapes this module is used with.

    kernel = functools.partial(_spatial_attention_kernel, H=H, W=W)
    out = pl.pallas_call(
        kernel,
        out_shape=jax.ShapeDtypeStruct((B, C, HW), x.dtype),
        grid_spec=pltpu.PrefetchScalarGridSpec(
            num_scalar_prefetch=0,
            grid=(B // bb,),
            in_specs=[
                pl.BlockSpec((bb, C, HW), lambda i: (i, 0, 0)),
                pl.BlockSpec(memory_space=pltpu.MemorySpace.SMEM),
                pl.BlockSpec(memory_space=pltpu.MemorySpace.SMEM),
            ],
            out_specs=pl.BlockSpec((bb, C, HW), lambda i: (i, 0, 0)),
        ),
        compiler_params=pltpu.CompilerParams(
            dimension_semantics=("parallel",)),
    )(x_flat, w_flat, b_flat)
    return out.reshape(B, C, H, W)


def _reference(x, conv_w, conv_b):
    avg_out = jnp.mean(x, axis=1, keepdims=True)
    max_out = jnp.max(x, axis=1, keepdims=True)
    cat = jnp.concatenate([avg_out, max_out], axis=1)  # (B, 2, H, W)
    conv = lax.conv_general_dilated(
        cat, conv_w, window_strides=(1, 1),
        padding=[(PAD, PAD), (PAD, PAD)],
        dimension_numbers=("NCHW", "OIHW", "NCHW"))
    conv = conv + conv_b.reshape(1, 1, 1, 1)
    return x * jax.nn.sigmoid(conv)


if __name__ == "__main__":
    key = jax.random.PRNGKey(0)
    kx, kw, kb = jax.random.split(key, 3)

    B, C, H, W = 2, 4, 16, 16
    x = jax.random.normal(kx, (B, C, H, W), dtype=jnp.float32)

    # Deterministic Conv2d(2, 1, 7, padding=3) parameters (PyTorch-style
    # uniform init bound 1/sqrt(fan_in)).
    fan_in = 2 * KERNEL_SIZE * KERNEL_SIZE
    bound = 1.0 / np.sqrt(fan_in)
    conv_w = jax.random.uniform(kw, (1, 2, KERNEL_SIZE, KERNEL_SIZE),
                                minval=-bound, maxval=bound,
                                dtype=jnp.float32)
    conv_b = jax.random.uniform(kb, (1,), minval=-bound, maxval=bound,
                                dtype=jnp.float32)

    out = spatial_attention(x, conv_w, conv_b)
    out = jax.block_until_ready(out)

    ref = jax.block_until_ready(_reference(x, conv_w, conv_b))
    np.testing.assert_allclose(np.asarray(out), np.asarray(ref),
                               rtol=1e-5, atol=1e-5)
    print("KERNEL_OK")
</pallas_src>

<mosaic_0001>
module attributes {stable_mosaic.version = 11 : i64} {
  func.func @_spatial_attention_kernel(%arg0: i32, %arg1: memref<2x4x256xf32, #tpu.memory_space<vmem>>, %arg2: memref<98xf32, #tpu.memory_space<smem>>, %arg3: memref<1xf32, #tpu.memory_space<smem>>, %arg4: memref<2x4x256xf32, #tpu.memory_space<vmem>>) attributes {dimension_semantics = [#tpu.dimension_semantics<parallel>], iteration_bounds = array<i64: 1>, scalar_prefetch = 0 : i64, scratch_operands = 0 : i64, tpu.core_type = #tpu.core_type<tc>, window_params = [{transform_indices = @transform_0, window_bounds = array<i64: 2, 4, 256>}, {transform_indices = @transform_1, window_bounds = array<i64: 98>}, {transform_indices = @transform_2, window_bounds = array<i64: 1>}, {transform_indices = @transform_3, window_bounds = array<i64: 2, 4, 256>}]} {
    %c0 = arith.constant 0 : index
    %c0_0 = arith.constant 0 : index
    %c0_1 = arith.constant 0 : index
    %0 = vector.load %arg1[%c0, %c0_0, %c0_1] : memref<2x4x256xf32, #tpu.memory_space<vmem>>, vector<2x4x256xf32>
    %cst = arith.constant dense<0.000000e+00> : vector<2x256xf32>
    %1 = vector.multi_reduction <add>, %0, %cst [1] : vector<2x4x256xf32> to vector<2x256xf32>
    %2 = vector.shape_cast %1 : vector<2x256xf32> to vector<2x1x256xf32>
    %cst_2 = arith.constant 4.000000e+00 : f32
    %3 = vector.broadcast %cst_2 : f32 to vector<2x1x256xf32>
    %4 = arith.divf %2, %3 : vector<2x1x256xf32>
    %cst_3 = arith.constant dense<0xFF800000> : vector<2x256xf32>
    %5 = vector.multi_reduction <maximumf>, %0, %cst_3 [1] : vector<2x4x256xf32> to vector<2x256xf32>
    %6 = vector.shape_cast %5 : vector<2x256xf32> to vector<2x1x256xf32>
    %cst_4 = arith.constant 0.000000e+00 : f32
    %7 = vector.broadcast %cst_4 : f32 to vector<2x1x51xf32>
    %8 = tpu.concatenate %7, %4, %7 in 2 : vector<2x1x51xf32>, vector<2x1x256xf32>, vector<2x1x51xf32> -> vector<2x1x358xf32>
    %9 = tpu.concatenate %7, %6, %7 in 2 : vector<2x1x51xf32>, vector<2x1x256xf32>, vector<2x1x51xf32> -> vector<2x1x358xf32>
    %c0_5 = arith.constant 0 : index
    %10 = memref.load %arg2[%c0_5] : memref<98xf32, #tpu.memory_space<smem>>
    %c1 = arith.constant 1 : index
    %11 = memref.load %arg2[%c1] : memref<98xf32, #tpu.memory_space<smem>>
    %c2 = arith.constant 2 : index
    %12 = memref.load %arg2[%c2] : memref<98xf32, #tpu.memory_space<smem>>
    %c3 = arith.constant 3 : index
    %13 = memref.load %arg2[%c3] : memref<98xf32, #tpu.memory_space<smem>>
    %c4 = arith.constant 4 : index
    %14 = memref.load %arg2[%c4] : memref<98xf32, #tpu.memory_space<smem>>
    %c5 = arith.constant 5 : index
    %15 = memref.load %arg2[%c5] : memref<98xf32, #tpu.memory_space<smem>>
    %c6 = arith.constant 6 : index
    %16 = memref.load %arg2[%c6] : memref<98xf32, #tpu.memory_space<smem>>
    %c7 = arith.constant 7 : index
    %17 = memref.load %arg2[%c7] : memref<98xf32, #tpu.memory_space<smem>>
    %c8 = arith.constant 8 : index
    %18 = memref.load %arg2[%c8] : memref<98xf32, #tpu.memory_space<smem>>
    %c9 = arith.constant 9 : index
    %19 = memref.load %arg2[%c9] : memref<98xf32, #tpu.memory_space<smem>>
    %c10 = arith.constant 10 : index
    %20 = memref.load %arg2[%c10] : memref<98xf32, #tpu.memory_space<smem>>
    %c11 = arith.constant 11 : index
    %21 = memref.load %arg2[%c11] : memref<98xf32, #tpu.memory_space<smem>>
    %c12 = arith.constant 12 : index
    %22 = memref.load %arg2[%c12] : memref<98xf32, #tpu.memory_space<smem>>
    %c13 = arith.constant 13 : index
    %23 = memref.load %arg2[%c13] : memref<98xf32, #tpu.memory_space<smem>>
    %c14 = arith.constant 14 : index
    %24 = memref.load %arg2[%c14] : memref<98xf32, #tpu.memory_space<smem>>
    %c15 = arith.constant 15 : index
    %25 = memref.load %arg2[%c15] : memref<98xf32, #tpu.memory_space<smem>>
    %c16 = arith.constant 16 : index
    %26 = memref.load %arg2[%c16] : memref<98xf32, #tpu.memory_space<smem>>
    %c17 = arith.constant 17 : index
    %27 = memref.load %arg2[%c17] : memref<98xf32, #tpu.memory_space<smem>>
    %c18 = arith.constant 18 : index
    %28 = memref.load %arg2[%c18] : memref<98xf32, #tpu.memory_space<smem>>
    %c19 = arith.constant 19 : index
    %29 = memref.load %arg2[%c19] : memref<98xf32, #tpu.memory_space<smem>>
    %c20 = arith.constant 20 : index
    %30 = memref.load %arg2[%c20] : memref<98xf32, #tpu.memory_space<smem>>
    %c21 = arith.constant 21 : index
    %31 = memref.load %arg2[%c21] : memref<98xf32, #tpu.memory_space<smem>>
    %c22 = arith.constant 22 : index
    %32 = memref.load %arg2[%c22] : memref<98xf32, #tpu.memory_space<smem>>
    %c23 = arith.constant 23 : index
    %33 = memref.load %arg2[%c23] : memref<98xf32, #tpu.memory_space<smem>>
    %c24 = arith.constant 24 : index
    %34 = memref.load %arg2[%c24] : memref<98xf32, #tpu.memory_space<smem>>
    %c25 = arith.constant 25 : index
    %35 = memref.load %arg2[%c25] : memref<98xf32, #tpu.memory_space<smem>>
    %c26 = arith.constant 26 : index
    %36 = memref.load %arg2[%c26] : memref<98xf32, #tpu.memory_space<smem>>
    %c27 = arith.constant 27 : index
    %37 = memref.load %arg2[%c27] : memref<98xf32, #tpu.memory_space<smem>>
    %c28 = arith.constant 28 : index
    %38 = memref.load %arg2[%c28] : memref<98xf32, #tpu.memory_space<smem>>
    %c29 = arith.constant 29 : index
    %39 = memref.load %arg2[%c29] : memref<98xf32, #tpu.memory_space<smem>>
    %c30 = arith.constant 30 : index
    %40 = memref.load %arg2[%c30] : memref<98xf32, #tpu.memory_space<smem>>
    %c31 = arith.constant 31 : index
    %41 = memref.load %arg2[%c31] : memref<98xf32, #tpu.memory_space<smem>>
    %c32 = arith.constant 32 : index
    %42 = memref.load %arg2[%c32] : memref<98xf32, #tpu.memory_space<smem>>
    %c33 = arith.constant 33 : index
    %43 = memref.load %arg2[%c33] : memref<98xf32, #tpu.memory_space<smem>>
    %c34 = arith.constant 34 : index
    %44 = memref.load %arg2[%c34] : memref<98xf32, #tpu.memory_space<smem>>
    %c35 = arith.constant 35 : index
    %45 = memref.load %arg2[%c35] : memref<98xf32, #tpu.memory_space<smem>>
    %c36 = arith.constant 36 : index
    %46 = memref.load %arg2[%c36] : memref<98xf32, #tpu.memory_space<smem>>
    %c37 = arith.constant 37 : index
    %47 = memref.load %arg2[%c37] : memref<98xf32, #tpu.memory_space<smem>>
    %c38 = arith.constant 38 : index
    %48 = memref.load %arg2[%c38] : memref<98xf32, #tpu.memory_space<smem>>
    %c39 = arith.constant 39 : index
    %49 = memref.load %arg2[%c39] : memref<98xf32, #tpu.memory_space<smem>>
    %c40 = arith.constant 40 : index
    %50 = memref.load %arg2[%c40] : memref<98xf32, #tpu.memory_space<smem>>
    %c41 = arith.constant 41 : index
    %51 = memref.load %arg2[%c41] : memref<98xf32, #tpu.memory_space<smem>>
    %c42 = arith.constant 42 : index
    %52 = memref.load %arg2[%c42] : memref<98xf32, #tpu.memory_space<smem>>
    %c43 = arith.constant 43 : index
    %53 = memref.load %arg2[%c43] : memref<98xf32, #tpu.memory_space<smem>>
    %c44 = arith.constant 44 : index
    %54 = memref.load %arg2[%c44] : memref<98xf32, #tpu.memory_space<smem>>
    %c45 = arith.constant 45 : index
    %55 = memref.load %arg2[%c45] : memref<98xf32, #tpu.memory_space<smem>>
    %c46 = arith.constant 46 : index
    %56 = memref.load %arg2[%c46] : memref<98xf32, #tpu.memory_space<smem>>
    %c47 = arith.constant 47 : index
    %57 = memref.load %arg2[%c47] : memref<98xf32, #tpu.memory_space<smem>>
    %c48 = arith.constant 48 : index
    %58 = memref.load %arg2[%c48] : memref<98xf32, #tpu.memory_space<smem>>
    %c49 = arith.constant 49 : index
    %59 = memref.load %arg2[%c49] : memref<98xf32, #tpu.memory_space<smem>>
    %c50 = arith.constant 50 : index
    %60 = memref.load %arg2[%c50] : memref<98xf32, #tpu.memory_space<smem>>
    %c51 = arith.constant 51 : index
    %61 = memref.load %arg2[%c51] : memref<98xf32, #tpu.memory_space<smem>>
    %c52 = arith.constant 52 : index
    %62 = memref.load %arg2[%c52] : memref<98xf32, #tpu.memory_space<smem>>
    %c53 = arith.constant 53 : index
    %63 = memref.load %arg2[%c53] : memref<98xf32, #tpu.memory_space<smem>>
    %c54 = arith.constant 54 : index
    %64 = memref.load %arg2[%c54] : memref<98xf32, #tpu.memory_space<smem>>
    %c55 = arith.constant 55 : index
    %65 = memref.load %arg2[%c55] : memref<98xf32, #tpu.memory_space<smem>>
    %c56 = arith.constant 56 : index
    %66 = memref.load %arg2[%c56] : memref<98xf32, #tpu.memory_space<smem>>
    %c57 = arith.constant 57 : index
    %67 = memref.load %arg2[%c57] : memref<98xf32, #tpu.memory_space<smem>>
    %c58 = arith.constant 58 : index
    %68 = memref.load %arg2[%c58] : memref<98xf32, #tpu.memory_space<smem>>
    %c59 = arith.constant 59 : index
    %69 = memref.load %arg2[%c59] : memref<98xf32, #tpu.memory_space<smem>>
    %c60 = arith.constant 60 : index
    %70 = memref.load %arg2[%c60] : memref<98xf32, #tpu.memory_space<smem>>
    %c61 = arith.constant 61 : index
    %71 = memref.load %arg2[%c61] : memref<98xf32, #tpu.memory_space<smem>>
    %c62 = arith.constant 62 : index
    %72 = memref.load %arg2[%c62] : memref<98xf32, #tpu.memory_space<smem>>
    %c63 = arith.constant 63 : index
    %73 = memref.load %arg2[%c63] : memref<98xf32, #tpu.memory_space<smem>>
    %c64 = arith.constant 64 : index
    %74 = memref.load %arg2[%c64] : memref<98xf32, #tpu.memory_space<smem>>
    %c65 = arith.constant 65 : index
    %75 = memref.load %arg2[%c65] : memref<98xf32, #tpu.memory_space<smem>>
    %c66 = arith.constant 66 : index
    %76 = memref.load %arg2[%c66] : memref<98xf32, #tpu.memory_space<smem>>
    %c67 = arith.constant 67 : index
    %77 = memref.load %arg2[%c67] : memref<98xf32, #tpu.memory_space<smem>>
    %c68 = arith.constant 68 : index
    %78 = memref.load %arg2[%c68] : memref<98xf32, #tpu.memory_space<smem>>
    %c69 = arith.constant 69 : index
    %79 = memref.load %arg2[%c69] : memref<98xf32, #tpu.memory_space<smem>>
    %c70 = arith.constant 70 : index
    %80 = memref.load %arg2[%c70] : memref<98xf32, #tpu.memory_space<smem>>
    %c71 = arith.constant 71 : index
    %81 = memref.load %arg2[%c71] : memref<98xf32, #tpu.memory_space<smem>>
    %c72 = arith.constant 72 : index
    %82 = memref.load %arg2[%c72] : memref<98xf32, #tpu.memory_space<smem>>
    %c73 = arith.constant 73 : index
    %83 = memref.load %arg2[%c73] : memref<98xf32, #tpu.memory_space<smem>>
    %c74 = arith.constant 74 : index
    %84 = memref.load %arg2[%c74] : memref<98xf32, #tpu.memory_space<smem>>
    %c75 = arith.constant 75 : index
    %85 = memref.load %arg2[%c75] : memref<98xf32, #tpu.memory_space<smem>>
    %c76 = arith.constant 76 : index
    %86 = memref.load %arg2[%c76] : memref<98xf32, #tpu.memory_space<smem>>
    %c77 = arith.constant 77 : index
    %87 = memref.load %arg2[%c77] : memref<98xf32, #tpu.memory_space<smem>>
    %c78 = arith.constant 78 : index
    %88 = memref.load %arg2[%c78] : memref<98xf32, #tpu.memory_space<smem>>
    %c79 = arith.constant 79 : index
    %89 = memref.load %arg2[%c79] : memref<98xf32, #tpu.memory_space<smem>>
    %c80 = arith.constant 80 : index
    %90 = memref.load %arg2[%c80] : memref<98xf32, #tpu.memory_space<smem>>
    %c81 = arith.constant 81 : index
    %91 = memref.load %arg2[%c81] : memref<98xf32, #tpu.memory_space<smem>>
    %c82 = arith.constant 82 : index
    %92 = memref.load %arg2[%c82] : memref<98xf32, #tpu.memory_space<smem>>
    %c83 = arith.constant 83 : index
    %93 = memref.load %arg2[%c83] : memref<98xf32, #tpu.memory_space<smem>>
    %c84 = arith.constant 84 : index
    %94 = memref.load %arg2[%c84] : memref<98xf32, #tpu.memory_space<smem>>
    %c85 = arith.constant 85 : index
    %95 = memref.load %arg2[%c85] : memref<98xf32, #tpu.memory_space<smem>>
    %c86 = arith.constant 86 : index
    %96 = memref.load %arg2[%c86] : memref<98xf32, #tpu.memory_space<smem>>
    %c87 = arith.constant 87 : index
    %97 = memref.load %arg2[%c87] : memref<98xf32, #tpu.memory_space<smem>>
    %c88 = arith.constant 88 : index
    %98 = memref.load %arg2[%c88] : memref<98xf32, #tpu.memory_space<smem>>
    %c89 = arith.constant 89 : index
    %99 = memref.load %arg2[%c89] : memref<98xf32, #tpu.memory_space<smem>>
    %c90 = arith.constant 90 : index
    %100 = memref.load %arg2[%c90] : memref<98xf32, #tpu.memory_space<smem>>
    %c91 = arith.constant 91 : index
    %101 = memref.load %arg2[%c91] : memref<98xf32, #tpu.memory_space<smem>>
    %c92 = arith.constant 92 : index
    %102 = memref.load %arg2[%c92] : memref<98xf32, #tpu.memory_space<smem>>
    %c93 = arith.constant 93 : index
    %103 = memref.load %arg2[%c93] : memref<98xf32, #tpu.memory_space<smem>>
    %c94 = arith.constant 94 : index
    %104 = memref.load %arg2[%c94] : memref<98xf32, #tpu.memory_space<smem>>
    %c95 = arith.constant 95 : index
    %105 = memref.load %arg2[%c95] : memref<98xf32, #tpu.memory_space<smem>>
    %c96 = arith.constant 96 : index
    %106 = memref.load %arg2[%c96] : memref<98xf32, #tpu.memory_space<smem>>
    %c97 = arith.constant 97 : index
    %107 = memref.load %arg2[%c97] : memref<98xf32, #tpu.memory_space<smem>>
    %c0_6 = arith.constant 0 : index
    %108 = memref.load %arg3[%c0_6] : memref<1xf32, #tpu.memory_space<smem>>
    %109 = tpu.iota {dimensions = array<i32: 2>} : vector<1x1x256xi32>
    %c15_i32 = arith.constant 15 : i32
    %110 = vector.broadcast %c15_i32 : i32 to vector<1x1x256xi32>
    %111 = arith.andi %109, %110 : vector<1x1x256xi32>
    %112 = vector.extract_strided_slice %8 {offsets = [0, 0, 0], sizes = [2, 1, 256], strides = [1, 1, 1]} : vector<2x1x358xf32> to vector<2x1x256xf32>
    %113 = vector.broadcast %10 : f32 to vector<2x1x256xf32>
    %114 = arith.mulf %113, %112 : vector<2x1x256xf32>
    %115 = vector.extract_strided_slice %9 {offsets = [0, 0, 0], sizes = [2, 1, 256], strides = [1, 1, 1]} : vector<2x1x358xf32> to vector<2x1x256xf32>
    %116 = vector.broadcast %59 : f32 to vector<2x1x256xf32>
    %117 = arith.mulf %116, %115 : vector<2x1x256xf32>
    %118 = vector.extract_strided_slice %8 {offsets = [0, 0, 16], sizes = [2, 1, 256], strides = [1, 1, 1]} : vector<2x1x358xf32> to vector<2x1x256xf32>
    %119 = vector.broadcast %17 : f32 to vector<2x1x256xf32>
    %120 = arith.mulf %119, %118 : vector<2x1x256xf32>
    %121 = vector.extract_strided_slice %9 {offsets = [0, 0, 16], sizes = [2, 1, 256], strides = [1, 1, 1]} : vector<2x1x358xf32> to vector<2x1x256xf32>
    %122 = vector.broadcast %66 : f32 to vector<2x1x256xf32>
    %123 = arith.mulf %122, %121 : vector<2x1x256xf32>
    %124 = arith.addf %114, %120 : vector<2x1x256xf32>
    %125 = arith.addf %117, %123 : vector<2x1x256xf32>
    %126 = vector.extract_strided_slice %8 {offsets = [0, 0, 32], sizes = [2, 1, 256], strides = [1, 1, 1]} : vector<2x1x358xf32> to vector<2x1x256xf32>
    %127 = vector.broadcast %24 : f32 to vector<2x1x256xf32>
    %128 = arith.mulf %127, %126 : vector<2x1x256xf32>
    %129 = vector.extract_strided_slice %9 {offsets = [0, 0, 32], sizes = [2, 1, 256], strides = [1, 1, 1]} : vector<2x1x358xf32> to vector<2x1x256xf32>
    %130 = vector.broadcast %73 : f32 to vector<2x1x256xf32>
    %131 = arith.mulf %130, %129 : vector<2x1x256xf32>
    %132 = arith.addf %124, %128 : vector<2x1x256xf32>
    %133 = arith.addf %125, %131 : vector<2x1x256xf32>
    %134 = vector.extract_strided_slice %8 {offsets = [0, 0, 48], sizes = [2, 1, 256], strides = [1, 1, 1]} : vector<2x1x358xf32> to vector<2x1x256xf32>
    %135 = vector.broadcast %31 : f32 to vector<2x1x256xf32>
    %136 = arith.mulf %135, %134 : vector<2x1x256xf32>
    %137 = vector.extract_strided_slice %9 {offsets = [0, 0, 48], sizes = [2, 1, 256], strides = [1, 1, 1]} : vector<2x1x358xf32> to vector<2x1x256xf32>
    %138 = vector.broadcast %80 : f32 to vector<2x1x256xf32>
    %139 = arith.mulf %138, %137 : vector<2x1x256xf32>
    %140 = arith.addf %132, %136 : vector<2x1x256xf32>
    %141 = arith.addf %133, %139 : vector<2x1x256xf32>
    %142 = vector.extract_strided_slice %8 {offsets = [0, 0, 64], sizes = [2, 1, 256], strides = [1, 1, 1]} : vector<2x1x358xf32> to vector<2x1x256xf32>
    %143 = vector.broadcast %38 : f32 to vector<2x1x256xf32>
    %144 = arith.mulf %143, %142 : vector<2x1x256xf32>
    %145 = vector.extract_strided_slice %9 {offsets = [0, 0, 64], sizes = [2, 1, 256], strides = [1, 1, 1]} : vector<2x1x358xf32> to vector<2x1x256xf32>
    %146 = vector.broadcast %87 : f32 to vector<2x1x256xf32>
    %147 = arith.mulf %146, %145 : vector<2x1x256xf32>
    %148 = arith.addf %140, %144 : vector<2x1x256xf32>
    %149 = arith.addf %141, %147 : vector<2x1x256xf32>
    %150 = vector.extract_strided_slice %8 {offsets = [0, 0, 80], sizes = [2, 1, 256], strides = [1, 1, 1]} : vector<2x1x358xf32> to vector<2x1x256xf32>
    %151 = vector.broadcast %45 : f32 to vector<2x1x256xf32>
    %152 = arith.mulf %151, %150 : vector<2x1x256xf32>
    %153 = vector.extract_strided_slice %9 {offsets = [0, 0, 80], sizes = [2, 1, 256], strides = [1, 1, 1]} : vector<2x1x358xf32> to vector<2x1x256xf32>
    %154 = vector.broadcast %94 : f32 to vector<2x1x256xf32>
    %155 = arith.mulf %154, %153 : vector<2x1x256xf32>
    %156 = arith.addf %148, %152 : vector<2x1x256xf32>
    %157 = arith.addf %149, %155 : vector<2x1x256xf32>
    %158 = vector.extract_strided_slice %8 {offsets = [0, 0, 96], sizes = [2, 1, 256], strides = [1, 1, 1]} : vector<2x1x358xf32> to vector<2x1x256xf32>
    %159 = vector.broadcast %52 : f32 to vector<2x1x256xf32>
    %160 = arith.mulf %159, %158 : vector<2x1x256xf32>
    %161 = vector.extract_strided_slice %9 {offsets = [0, 0, 96], sizes = [2, 1, 256], strides = [1, 1, 1]} : vector<2x1x358xf32> to vector<2x1x256xf32>
    %162 = vector.broadcast %101 : f32 to vector<2x1x256xf32>
    %163 = arith.mulf %162, %161 : vector<2x1x256xf32>
    %164 = arith.addf %156, %160 : vector<2x1x256xf32>
    %165 = arith.addf %157, %163 : vector<2x1x256xf32>
    %166 = arith.addf %164, %165 : vector<2x1x256xf32>
    %c3_i32 = arith.constant 3 : i32
    %167 = vector.broadcast %c3_i32 : i32 to vector<1x1x256xi32>
    %168 = arith.cmpi sge, %111, %167 : vector<1x1x256xi32>
    %cst_7 = arith.constant 0.000000e+00 : f32
    %169 = vector.shape_cast %168 : vector<1x1x256xi1> to vector<1x1x256xi1>
    %170 = vector.broadcast %169 : vector<1x1x256xi1> to vector<2x1x256xi1>
    %171 = vector.broadcast %cst_7 : f32 to vector<2x1x256xf32>
    %172 = arith.select %170, %166, %171 : vector<2x1x256xi1>, vector<2x1x256xf32>
    %173 = vector.extract_strided_slice %8 {offsets = [0, 0, 1], sizes = [2, 1, 256], strides = [1, 1, 1]} : vector<2x1x358xf32> to vector<2x1x256xf32>
    %174 = vector.broadcast %11 : f32 to vector<2x1x256xf32>
    %175 = arith.mulf %174, %173 : vector<2x1x256xf32>
    %176 = vector.extract_strided_slice %9 {offsets = [0, 0, 1], sizes = [2, 1, 256], strides = [1, 1, 1]} : vector<2x1x358xf32> to vector<2x1x256xf32>
    %177 = vector.broadcast %60 : f32 to vector<2x1x256xf32>
    %178 = arith.mulf %177, %176 : vector<2x1x256xf32>
    %179 = vector.extract_strided_slice %8 {offsets = [0, 0, 17], sizes = [2, 1, 256], strides = [1, 1, 1]} : vector<2x1x358xf32> to vector<2x1x256xf32>
    %180 = vector.broadcast %18 : f32 to vector<2x1x256xf32>
    %181 = arith.mulf %180, %179 : vector<2x1x256xf32>
    %182 = vector.extract_strided_slice %9 {offsets = [0, 0, 17], sizes = [2, 1, 256], strides = [1, 1, 1]} : vector<2x1x358xf32> to vector<2x1x256xf32>
    %183 = vector.broadcast %67 : f32 to vector<2x1x256xf32>
    %184 = arith.mulf %183, %182 : vector<2x1x256xf32>
    %185 = arith.addf %175, %181 : vector<2x1x256xf32>
    %186 = arith.addf %178, %184 : vector<2x1x256xf32>
    %187 = vector.extract_strided_slice %8 {offsets = [0, 0, 33], sizes = [2, 1, 256], strides = [1, 1, 1]} : vector<2x1x358xf32> to vector<2x1x256xf32>
    %188 = vector.broadcast %25 : f32 to vector<2x1x256xf32>
    %189 = arith.mulf %188, %187 : vector<2x1x256xf32>
    %190 = vector.extract_strided_slice %9 {offsets = [0, 0, 33], sizes = [2, 1, 256], strides = [1, 1, 1]} : vector<2x1x358xf32> to vector<2x1x256xf32>
    %191 = vector.broadcast %74 : f32 to vector<2x1x256xf32>
    %192 = arith.mulf %191, %190 : vector<2x1x256xf32>
    %193 = arith.addf %185, %189 : vector<2x1x256xf32>
    %194 = arith.addf %186, %192 : vector<2x1x256xf32>
    %195 = vector.extract_strided_slice %8 {offsets = [0, 0, 49], sizes = [2, 1, 256], strides = [1, 1, 1]} : vector<2x1x358xf32> to vector<2x1x256xf32>
    %196 = vector.broadcast %32 : f32 to vector<2x1x256xf32>
    %197 = arith.mulf %196, %195 : vector<2x1x256xf32>
    %198 = vector.extract_strided_slice %9 {offsets = [0, 0, 49], sizes = [2, 1, 256], strides = [1, 1, 1]} : vector<2x1x358xf32> to vector<2x1x256xf32>
    %199 = vector.broadcast %81 : f32 to vector<2x1x256xf32>
    %200 = arith.mulf %199, %198 : vector<2x1x256xf32>
    %201 = arith.addf %193, %197 : vector<2x1x256xf32>
    %202 = arith.addf %194, %200 : vector<2x1x256xf32>
    %203 = vector.extract_strided_slice %8 {offsets = [0, 0, 65], sizes = [2, 1, 256], strides = [1, 1, 1]} : vector<2x1x358xf32> to vector<2x1x256xf32>
    %204 = vector.broadcast %39 : f32 to vector<2x1x256xf32>
    %205 = arith.mulf %204, %203 : vector<2x1x256xf32>
    %206 = vector.extract_strided_slice %9 {offsets = [0, 0, 65], sizes = [2, 1, 256], strides = [1, 1, 1]} : vector<2x1x358xf32> to vector<2x1x256xf32>
    %207 = vector.broadcast %88 : f32 to vector<2x1x256xf32>
    %208 = arith.mulf %207, %206 : vector<2x1x256xf32>
    %209 = arith.addf %201, %205 : vector<2x1x256xf32>
    %210 = arith.addf %202, %208 : vector<2x1x256xf32>
    %211 = vector.extract_strided_slice %8 {offsets = [0, 0, 81], sizes = [2, 1, 256], strides = [1, 1, 1]} : vector<2x1x358xf32> to vector<2x1x256xf32>
    %212 = vector.broadcast %46 : f32 to vector<2x1x256xf32>
    %213 = arith.mulf %212, %211 : vector<2x1x256xf32>
    %214 = vector.extract_strided_slice %9 {offsets = [0, 0, 81], sizes = [2, 1, 256], strides = [1, 1, 1]} : vector<2x1x358xf32> to vector<2x1x256xf32>
    %215 = vector.broadcast %95 : f32 to vector<2x1x256xf32>
    %216 = arith.mulf %215, %214 : vector<2x1x256xf32>
    %217 = arith.addf %209, %213 : vector<2x1x256xf32>
    %218 = arith.addf %210, %216 : vector<2x1x256xf32>
    %219 = vector.extract_strided_slice %8 {offsets = [0, 0, 97], sizes = [2, 1, 256], strides = [1, 1, 1]} : vector<2x1x358xf32> to vector<2x1x256xf32>
    %220 = vector.broadcast %53 : f32 to vector<2x1x256xf32>
    %221 = arith.mulf %220, %219 : vector<2x1x256xf32>
    %222 = vector.extract_strided_slice %9 {offsets = [0, 0, 97], sizes = [2, 1, 256], strides = [1, 1, 1]} : vector<2x1x358xf32> to vector<2x1x256xf32>
    %223 = vector.broadcast %102 : f32 to vector<2x1x256xf32>
    %224 = arith.mulf %223, %222 : vector<2x1x256xf32>
    %225 = arith.addf %217, %221 : vector<2x1x256xf32>
    %226 = arith.addf %218, %224 : vector<2x1x256xf32>
    %227 = arith.addf %225, %226 : vector<2x1x256xf32>
    %c2_i32 = arith.constant 2 : i32
    %228 = vector.broadcast %c2_i32 : i32 to vector<1x1x256xi32>
    %229 = arith.cmpi sge, %111, %228 : vector<1x1x256xi32>
    %cst_8 = arith.constant 0.000000e+00 : f32
    %230 = vector.shape_cast %229 : vector<1x1x256xi1> to vector<1x1x256xi1>
    %231 = vector.broadcast %230 : vector<1x1x256xi1> to vector<2x1x256xi1>
    %232 = vector.broadcast %cst_8 : f32 to vector<2x1x256xf32>
    %233 = arith.select %231, %227, %232 : vector<2x1x256xi1>, vector<2x1x256xf32>
    %234 = arith.addf %172, %233 : vector<2x1x256xf32>
    %235 = vector.extract_strided_slice %8 {offsets = [0, 0, 2], sizes = [2, 1, 256], strides = [1, 1, 1]} : vector<2x1x358xf32> to vector<2x1x256xf32>
    %236 = vector.broadcast %12 : f32 to vector<2x1x256xf32>
    %237 = arith.mulf %236, %235 : vector<2x1x256xf32>
    %238 = vector.extract_strided_slice %9 {offsets = [0, 0, 2], sizes = [2, 1, 256], strides = [1, 1, 1]} : vector<2x1x358xf32> to vector<2x1x256xf32>
    %239 = vector.broadcast %61 : f32 to vector<2x1x256xf32>
    %240 = arith.mulf %239, %238 : vector<2x1x256xf32>
    %241 = vector.extract_strided_slice %8 {offsets = [0, 0, 18], sizes = [2, 1, 256], strides = [1, 1, 1]} : vector<2x1x358xf32> to vector<2x1x256xf32>
    %242 = vector.broadcast %19 : f32 to vector<2x1x256xf32>
    %243 = arith.mulf %242, %241 : vector<2x1x256xf32>
    %244 = vector.extract_strided_slice %9 {offsets = [0, 0, 18], sizes = [2, 1, 256], strides = [1, 1, 1]} : vector<2x1x358xf32> to vector<2x1x256xf32>
    %245 = vector.broadcast %68 : f32 to vector<2x1x256xf32>
    %246 = arith.mulf %245, %244 : vector<2x1x256xf32>
    %247 = arith.addf %237, %243 : vector<2x1x256xf32>
    %248 = arith.addf %240, %246 : vector<2x1x256xf32>
    %249 = vector.extract_strided_slice %8 {offsets = [0, 0, 34], sizes = [2, 1, 256], strides = [1, 1, 1]} : vector<2x1x358xf32> to vector<2x1x256xf32>
    %250 = vector.broadcast %26 : f32 to vector<2x1x256xf32>
    %251 = arith.mulf %250, %249 : vector<2x1x256xf32>
    %252 = vector.extract_strided_slice %9 {offsets = [0, 0, 34], sizes = [2, 1, 256], strides = [1, 1, 1]} : vector<2x1x358xf32> to vector<2x1x256xf32>
    %253 = vector.broadcast %75 : f32 to vector<2x1x256xf32>
    %254 = arith.mulf %253, %252 : vector<2x1x256xf32>
    %255 = arith.addf %247, %251 : vector<2x1x256xf32>
    %256 = arith.addf %248, %254 : vector<2x1x256xf32>
    %257 = vector.extract_strided_slice %8 {offsets = [0, 0, 50], sizes = [2, 1, 256], strides = [1, 1, 1]} : vector<2x1x358xf32> to vector<2x1x256xf32>
    %258 = vector.broadcast %33 : f32 to vector<2x1x256xf32>
    %259 = arith.mulf %258, %257 : vector<2x1x256xf32>
    %260 = vector.extract_strided_slice %9 {offsets = [0, 0, 50], sizes = [2, 1, 256], strides = [1, 1, 1]} : vector<2x1x358xf32> to vector<2x1x256xf32>
    %261 = vector.broadcast %82 : f32 to vector<2x1x256xf32>
    %262 = arith.mulf %261, %260 : vector<2x1x256xf32>
    %263 = arith.addf %255, %259 : vector<2x1x256xf32>
    %264 = arith.addf %256, %262 : vector<2x1x256xf32>
    %265 = vector.extract_strided_slice %8 {offsets = [0, 0, 66], sizes = [2, 1, 256], strides = [1, 1, 1]} : vector<2x1x358xf32> to vector<2x1x256xf32>
    %266 = vector.broadcast %40 : f32 to vector<2x1x256xf32>
    %267 = arith.mulf %266, %265 : vector<2x1x256xf32>
    %268 = vector.extract_strided_slice %9 {offsets = [0, 0, 66], sizes = [2, 1, 256], strides = [1, 1, 1]} : vector<2x1x358xf32> to vector<2x1x256xf32>
    %269 = vector.broadcast %89 : f32 to vector<2x1x256xf32>
    %270 = arith.mulf %269, %268 : vector<2x1x256xf32>
    %271 = arith.addf %263, %267 : vector<2x1x256xf32>
    %272 = arith.addf %264, %270 : vector<2x1x256xf32>
    %273 = vector.extract_strided_slice %8 {offsets = [0, 0, 82], sizes = [2, 1, 256], strides = [1, 1, 1]} : vector<2x1x358xf32> to vector<2x1x256xf32>
    %274 = vector.broadcast %47 : f32 to vector<2x1x256xf32>
    %275 = arith.mulf %274, %273 : vector<2x1x256xf32>
    %276 = vector.extract_strided_slice %9 {offsets = [0, 0, 82], sizes = [2, 1, 256], strides = [1, 1, 1]} : vector<2x1x358xf32> to vector<2x1x256xf32>
    %277 = vector.broadcast %96 : f32 to vector<2x1x256xf32>
    %278 = arith.mulf %277, %276 : vector<2x1x256xf32>
    %279 = arith.addf %271, %275 : vector<2x1x256xf32>
    %280 = arith.addf %272, %278 : vector<2x1x256xf32>
    %281 = vector.extract_strided_slice %8 {offsets = [0, 0, 98], sizes = [2, 1, 256], strides = [1, 1, 1]} : vector<2x1x358xf32> to vector<2x1x256xf32>
    %282 = vector.broadcast %54 : f32 to vector<2x1x256xf32>
    %283 = arith.mulf %282, %281 : vector<2x1x256xf32>
    %284 = vector.extract_strided_slice %9 {offsets = [0, 0, 98], sizes = [2, 1, 256], strides = [1, 1, 1]} : vector<2x1x358xf32> to vector<2x1x256xf32>
    %285 = vector.broadcast %103 : f32 to vector<2x1x256xf32>
    %286 = arith.mulf %285, %284 : vector<2x1x256xf32>
    %287 = arith.addf %279, %283 : vector<2x1x256xf32>
    %288 = arith.addf %280, %286 : vector<2x1x256xf32>
    %289 = arith.addf %287, %288 : vector<2x1x256xf32>
    %c1_i32 = arith.constant 1 : i32
    %290 = vector.broadcast %c1_i32 : i32 to vector<1x1x256xi32>
    %291 = arith.cmpi sge, %111, %290 : vector<1x1x256xi32>
    %cst_9 = arith.constant 0.000000e+00 : f32
    %292 = vector.shape_cast %291 : vector<1x1x256xi1> to vector<1x1x256xi1>
    %293 = vector.broadcast %292 : vector<1x1x256xi1> to vector<2x1x256xi1>
    %294 = vector.broadcast %cst_9 : f32 to vector<2x1x256xf32>
    %295 = arith.select %293, %289, %294 : vector<2x1x256xi1>, vector<2x1x256xf32>
    %296 = arith.addf %234, %295 : vector<2x1x256xf32>
    %297 = vector.extract_strided_slice %8 {offsets = [0, 0, 3], sizes = [2, 1, 256], strides = [1, 1, 1]} : vector<2x1x358xf32> to vector<2x1x256xf32>
    %298 = vector.broadcast %13 : f32 to vector<2x1x256xf32>
    %299 = arith.mulf %298, %297 : vector<2x1x256xf32>
    %300 = vector.extract_strided_slice %9 {offsets = [0, 0, 3], sizes = [2, 1, 256], strides = [1, 1, 1]} : vector<2x1x358xf32> to vector<2x1x256xf32>
    %301 = vector.broadcast %62 : f32 to vector<2x1x256xf32>
    %302 = arith.mulf %301, %300 : vector<2x1x256xf32>
    %303 = vector.extract_strided_slice %8 {offsets = [0, 0, 19], sizes = [2, 1, 256], strides = [1, 1, 1]} : vector<2x1x358xf32> to vector<2x1x256xf32>
    %304 = vector.broadcast %20 : f32 to vector<2x1x256xf32>
    %305 = arith.mulf %304, %303 : vector<2x1x256xf32>
    %306 = vector.extract_strided_slice %9 {offsets = [0, 0, 19], sizes = [2, 1, 256], strides = [1, 1, 1]} : vector<2x1x358xf32> to vector<2x1x256xf32>
    %307 = vector.broadcast %69 : f32 to vector<2x1x256xf32>
    %308 = arith.mulf %307, %306 : vector<2x1x256xf32>
    %309 = arith.addf %299, %305 : vector<2x1x256xf32>
    %310 = arith.addf %302, %308 : vector<2x1x256xf32>
    %311 = vector.extract_strided_slice %8 {offsets = [0, 0, 35], sizes = [2, 1, 256], strides = [1, 1, 1]} : vector<2x1x358xf32> to vector<2x1x256xf32>
    %312 = vector.broadcast %27 : f32 to vector<2x1x256xf32>
    %313 = arith.mulf %312, %311 : vector<2x1x256xf32>
    %314 = vector.extract_strided_slice %9 {offsets = [0, 0, 35], sizes = [2, 1, 256], strides = [1, 1, 1]} : vector<2x1x358xf32> to vector<2x1x256xf32>
    %315 = vector.broadcast %76 : f32 to vector<2x1x256xf32>
    %316 = arith.mulf %315, %314 : vector<2x1x256xf32>
    %317 = arith.addf %309, %313 : vector<2x1x256xf32>
    %318 = arith.addf %310, %316 : vector<2x1x256xf32>
    %319 = vector.extract_strided_slice %8 {offsets = [0, 0, 51], sizes = [2, 1, 256], strides = [1, 1, 1]} : vector<2x1x358xf32> to vector<2x1x256xf32>
    %320 = vector.broadcast %34 : f32 to vector<2x1x256xf32>
    %321 = arith.mulf %320, %319 : vector<2x1x256xf32>
    %322 = vector.extract_strided_slice %9 {offsets = [0, 0, 51], sizes = [2, 1, 256], strides = [1, 1, 1]} : vector<2x1x358xf32> to vector<2x1x256xf32>
    %323 = vector.broadcast %83 : f32 to vector<2x1x256xf32>
    %324 = arith.mulf %323, %322 : vector<2x1x256xf32>
    %325 = arith.addf %317, %321 : vector<2x1x256xf32>
    %326 = arith.addf %318, %324 : vector<2x1x256xf32>
    %327 = vector.extract_strided_slice %8 {offsets = [0, 0, 67], sizes = [2, 1, 256], strides = [1, 1, 1]} : vector<2x1x358xf32> to vector<2x1x256xf32>
    %328 = vector.broadcast %41 : f32 to vector<2x1x256xf32>
    %329 = arith.mulf %328, %327 : vector<2x1x256xf32>
    %330 = vector.extract_strided_slice %9 {offsets = [0, 0, 67], sizes = [2, 1, 256], strides = [1, 1, 1]} : vector<2x1x358xf32> to vector<2x1x256xf32>
    %331 = vector.broadcast %90 : f32 to vector<2x1x256xf32>
    %332 = arith.mulf %331, %330 : vector<2x1x256xf32>
    %333 = arith.addf %325, %329 : vector<2x1x256xf32>
    %334 = arith.addf %326, %332 : vector<2x1x256xf32>
    %335 = vector.extract_strided_slice %8 {offsets = [0, 0, 83], sizes = [2, 1, 256], strides = [1, 1, 1]} : vector<2x1x358xf32> to vector<2x1x256xf32>
    %336 = vector.broadcast %48 : f32 to vector<2x1x256xf32>
    %337 = arith.mulf %336, %335 : vector<2x1x256xf32>
    %338 = vector.extract_strided_slice %9 {offsets = [0, 0, 83], sizes = [2, 1, 256], strides = [1, 1, 1]} : vector<2x1x358xf32> to vector<2x1x256xf32>
    %339 = vector.broadcast %97 : f32 to vector<2x1x256xf32>
    %340 = arith.mulf %339, %338 : vector<2x1x256xf32>
    %341 = arith.addf %333, %337 : vector<2x1x256xf32>
    %342 = arith.addf %334, %340 : vector<2x1x256xf32>
    %343 = vector.extract_strided_slice %8 {offsets = [0, 0, 99], sizes = [2, 1, 256], strides = [1, 1, 1]} : vector<2x1x358xf32> to vector<2x1x256xf32>
    %344 = vector.broadcast %55 : f32 to vector<2x1x256xf32>
    %345 = arith.mulf %344, %343 : vector<2x1x256xf32>
    %346 = vector.extract_strided_slice %9 {offsets = [0, 0, 99], sizes = [2, 1, 256], strides = [1, 1, 1]} : vector<2x1x358xf32> to vector<2x1x256xf32>
    %347 = vector.broadcast %104 : f32 to vector<2x1x256xf32>
    %348 = arith.mulf %347, %346 : vector<2x1x256xf32>
    %349 = arith.addf %341, %345 : vector<2x1x256xf32>
    %350 = arith.addf %342, %348 : vector<2x1x256xf32>
    %351 = arith.addf %349, %350 : vector<2x1x256xf32>
    %352 = arith.addf %296, %351 : vector<2x1x256xf32>
    %353 = vector.extract_strided_slice %8 {offsets = [0, 0, 4], sizes = [2, 1, 256], strides = [1, 1, 1]} : vector<2x1x358xf32> to vector<2x1x256xf32>
    %354 = vector.broadcast %14 : f32 to vector<2x1x256xf32>
    %355 = arith.mulf %354, %353 : vector<2x1x256xf32>
    %356 = vector.extract_strided_slice %9 {offsets = [0, 0, 4], sizes = [2, 1, 256], strides = [1, 1, 1]} : vector<2x1x358xf32> to vector<2x1x256xf32>
    %357 = vector.broadcast %63 : f32 to vector<2x1x256xf32>
    %358 = arith.mulf %357, %356 : vector<2x1x256xf32>
    %359 = vector.extract_strided_slice %8 {offsets = [0, 0, 20], sizes = [2, 1, 256], strides = [1, 1, 1]} : vector<2x1x358xf32> to vector<2x1x256xf32>
    %360 = vector.broadcast %21 : f32 to vector<2x1x256xf32>
    %361 = arith.mulf %360, %359 : vector<2x1x256xf32>
    %362 = vector.extract_strided_slice %9 {offsets = [0, 0, 20], sizes = [2, 1, 256], strides = [1, 1, 1]} : vector<2x1x358xf32> to vector<2x1x256xf32>
    %363 = vector.broadcast %70 : f32 to vector<2x1x256xf32>
    %364 = arith.mulf %363, %362 : vector<2x1x256xf32>
    %365 = arith.addf %355, %361 : vector<2x1x256xf32>
    %366 = arith.addf %358, %364 : vector<2x1x256xf32>
    %367 = vector.extract_strided_slice %8 {offsets = [0, 0, 36], sizes = [2, 1, 256], strides = [1, 1, 1]} : vector<2x1x358xf32> to vector<2x1x256xf32>
    %368 = vector.broadcast %28 : f32 to vector<2x1x256xf32>
    %369 = arith.mulf %368, %367 : vector<2x1x256xf32>
    %370 = vector.extract_strided_slice %9 {offsets = [0, 0, 36], sizes = [2, 1, 256], strides = [1, 1, 1]} : vector<2x1x358xf32> to vector<2x1x256xf32>
    %371 = vector.broadcast %77 : f32 to vector<2x1x256xf32>
    %372 = arith.mulf %371, %370 : vector<2x1x256xf32>
    %373 = arith.addf %365, %369 : vector<2x1x256xf32>
    %374 = arith.addf %366, %372 : vector<2x1x256xf32>
    %375 = vector.extract_strided_slice %8 {offsets = [0, 0, 52], sizes = [2, 1, 256], strides = [1, 1, 1]} : vector<2x1x358xf32> to vector<2x1x256xf32>
    %376 = vector.broadcast %35 : f32 to vector<2x1x256xf32>
    %377 = arith.mulf %376, %375 : vector<2x1x256xf32>
    %378 = vector.extract_strided_slice %9 {offsets = [0, 0, 52], sizes = [2, 1, 256], strides = [1, 1, 1]} : vector<2x1x358xf32> to vector<2x1x256xf32>
    %379 = vector.broadcast %84 : f32 to vector<2x1x256xf32>
    %380 = arith.mulf %379, %378 : vector<2x1x256xf32>
    %381 = arith.addf %373, %377 : vector<2x1x256xf32>
    %382 = arith.addf %374, %380 : vector<2x1x256xf32>
    %383 = vector.extract_strided_slice %8 {offsets = [0, 0, 68], sizes = [2, 1, 256], strides = [1, 1, 1]} : vector<2x1x358xf32> to vector<2x1x256xf32>
    %384 = vector.broadcast %42 : f32 to vector<2x1x256xf32>
    %385 = arith.mulf %384, %383 : vector<2x1x256xf32>
    %386 = vector.extract_strided_slice %9 {offsets = [0, 0, 68], sizes = [2, 1, 256], strides = [1, 1, 1]} : vector<2x1x358xf32> to vector<2x1x256xf32>
    %387 = vector.broadcast %91 : f32 to vector<2x1x256xf32>
    %388 = arith.mulf %387, %386 : vector<2x1x256xf32>
    %389 = arith.addf %381, %385 : vector<2x1x256xf32>
    %390 = arith.addf %382, %388 : vector<2x1x256xf32>
    %391 = vector.extract_strided_slice %8 {offsets = [0, 0, 84], sizes = [2, 1, 256], strides = [1, 1, 1]} : vector<2x1x358xf32> to vector<2x1x256xf32>
    %392 = vector.broadcast %49 : f32 to vector<2x1x256xf32>
    %393 = arith.mulf %392, %391 : vector<2x1x256xf32>
    %394 = vector.extract_strided_slice %9 {offsets = [0, 0, 84], sizes = [2, 1, 256], strides = [1, 1, 1]} : vector<2x1x358xf32> to vector<2x1x256xf32>
    %395 = vector.broadcast %98 : f32 to vector<2x1x256xf32>
    %396 = arith.mulf %395, %394 : vector<2x1x256xf32>
    %397 = arith.addf %389, %393 : vector<2x1x256xf32>
    %398 = arith.addf %390, %396 : vector<2x1x256xf32>
    %399 = vector.extract_strided_slice %8 {offsets = [0, 0, 100], sizes = [2, 1, 256], strides = [1, 1, 1]} : vector<2x1x358xf32> to vector<2x1x256xf32>
    %400 = vector.broadcast %56 : f32 to vector<2x1x256xf32>
    %401 = arith.mulf %400, %399 : vector<2x1x256xf32>
    %402 = vector.extract_strided_slice %9 {offsets = [0, 0, 100], sizes = [2, 1, 256], strides = [1, 1, 1]} : vector<2x1x358xf32> to vector<2x1x256xf32>
    %403 = vector.broadcast %105 : f32 to vector<2x1x256xf32>
    %404 = arith.mulf %403, %402 : vector<2x1x256xf32>
    %405 = arith.addf %397, %401 : vector<2x1x256xf32>
    %406 = arith.addf %398, %404 : vector<2x1x256xf32>
    %407 = arith.addf %405, %406 : vector<2x1x256xf32>
    %c15_i32_10 = arith.constant 15 : i32
    %408 = vector.broadcast %c15_i32_10 : i32 to vector<1x1x256xi32>
    %409 = arith.cmpi slt, %111, %408 : vector<1x1x256xi32>
    %cst_11 = arith.constant 0.000000e+00 : f32
    %410 = vector.shape_cast %409 : vector<1x1x256xi1> to vector<1x1x256xi1>
    %411 = vector.broadcast %410 : vector<1x1x256xi1> to vector<2x1x256xi1>
    %412 = vector.broadcast %cst_11 : f32 to vector<2x1x256xf32>
    %413 = arith.select %411, %407, %412 : vector<2x1x256xi1>, vector<2x1x256xf32>
    %414 = arith.addf %352, %413 : vector<2x1x256xf32>
    %415 = vector.extract_strided_slice %8 {offsets = [0, 0, 5], sizes = [2, 1, 256], strides = [1, 1, 1]} : vector<2x1x358xf32> to vector<2x1x256xf32>
    %416 = vector.broadcast %15 : f32 to vector<2x1x256xf32>
    %417 = arith.mulf %416, %415 : vector<2x1x256xf32>
    %418 = vector.extract_strided_slice %9 {offsets = [0, 0, 5], sizes = [2, 1, 256], strides = [1, 1, 1]} : vector<2x1x358xf32> to vector<2x1x256xf32>
    %419 = vector.broadcast %64 : f32 to vector<2x1x256xf32>
    %420 = arith.mulf %419, %418 : vector<2x1x256xf32>
    %421 = vector.extract_strided_slice %8 {offsets = [0, 0, 21], sizes = [2, 1, 256], strides = [1, 1, 1]} : vector<2x1x358xf32> to vector<2x1x256xf32>
    %422 = vector.broadcast %22 : f32 to vector<2x1x256xf32>
    %423 = arith.mulf %422, %421 : vector<2x1x256xf32>
    %424 = vector.extract_strided_slice %9 {offsets = [0, 0, 21], sizes = [2, 1, 256], strides = [1, 1, 1]} : vector<2x1x358xf32> to vector<2x1x256xf32>
    %425 = vector.broadcast %71 : f32 to vector<2x1x256xf32>
    %426 = arith.mulf %425, %424 : vector<2x1x256xf32>
    %427 = arith.addf %417, %423 : vector<2x1x256xf32>
    %428 = arith.addf %420, %426 : vector<2x1x256xf32>
    %429 = vector.extract_strided_slice %8 {offsets = [0, 0, 37], sizes = [2, 1, 256], strides = [1, 1, 1]} : vector<2x1x358xf32> to vector<2x1x256xf32>
    %430 = vector.broadcast %29 : f32 to vector<2x1x256xf32>
    %431 = arith.mulf %430, %429 : vector<2x1x256xf32>
    %432 = vector.extract_strided_slice %9 {offsets = [0, 0, 37], sizes = [2, 1, 256], strides = [1, 1, 1]} : vector<2x1x358xf32> to vector<2x1x256xf32>
    %433 = vector.broadcast %78 : f32 to vector<2x1x256xf32>
    %434 = arith.mulf %433, %432 : vector<2x1x256xf32>
    %435 = arith.addf %427, %431 : vector<2x1x256xf32>
    %436 = arith.addf %428, %434 : vector<2x1x256xf32>
    %437 = vector.extract_strided_slice %8 {offsets = [0, 0, 53], sizes = [2, 1, 256], strides = [1, 1, 1]} : vector<2x1x358xf32> to vector<2x1x256xf32>
    %438 = vector.broadcast %36 : f32 to vector<2x1x256xf32>
    %439 = arith.mulf %438, %437 : vector<2x1x256xf32>
    %440 = vector.extract_strided_slice %9 {offsets = [0, 0, 53], sizes = [2, 1, 256], strides = [1, 1, 1]} : vector<2x1x358xf32> to vector<2x1x256xf32>
    %441 = vector.broadcast %85 : f32 to vector<2x1x256xf32>
    %442 = arith.mulf %441, %440 : vector<2x1x256xf32>
    %443 = arith.addf %435, %439 : vector<2x1x256xf32>
    %444 = arith.addf %436, %442 : vector<2x1x256xf32>
    %445 = vector.extract_strided_slice %8 {offsets = [0, 0, 69], sizes = [2, 1, 256], strides = [1, 1, 1]} : vector<2x1x358xf32> to vector<2x1x256xf32>
    %446 = vector.broadcast %43 : f32 to vector<2x1x256xf32>
    %447 = arith.mulf %446, %445 : vector<2x1x256xf32>
    %448 = vector.extract_strided_slice %9 {offsets = [0, 0, 69], sizes = [2, 1, 256], strides = [1, 1, 1]} : vector<2x1x358xf32> to vector<2x1x256xf32>
    %449 = vector.broadcast %92 : f32 to vector<2x1x256xf32>
    %450 = arith.mulf %449, %448 : vector<2x1x256xf32>
    %451 = arith.addf %443, %447 : vector<2x1x256xf32>
    %452 = arith.addf %444, %450 : vector<2x1x256xf32>
    %453 = vector.extract_strided_slice %8 {offsets = [0, 0, 85], sizes = [2, 1, 256], strides = [1, 1, 1]} : vector<2x1x358xf32> to vector<2x1x256xf32>
    %454 = vector.broadcast %50 : f32 to vector<2x1x256xf32>
    %455 = arith.mulf %454, %453 : vector<2x1x256xf32>
    %456 = vector.extract_strided_slice %9 {offsets = [0, 0, 85], sizes = [2, 1, 256], strides = [1, 1, 1]} : vector<2x1x358xf32> to vector<2x1x256xf32>
    %457 = vector.broadcast %99 : f32 to vector<2x1x256xf32>
    %458 = arith.mulf %457, %456 : vector<2x1x256xf32>
    %459 = arith.addf %451, %455 : vector<2x1x256xf32>
    %460 = arith.addf %452, %458 : vector<2x1x256xf32>
    %461 = vector.extract_strided_slice %8 {offsets = [0, 0, 101], sizes = [2, 1, 256], strides = [1, 1, 1]} : vector<2x1x358xf32> to vector<2x1x256xf32>
    %462 = vector.broadcast %57 : f32 to vector<2x1x256xf32>
    %463 = arith.mulf %462, %461 : vector<2x1x256xf32>
    %464 = vector.extract_strided_slice %9 {offsets = [0, 0, 101], sizes = [2, 1, 256], strides = [1, 1, 1]} : vector<2x1x358xf32> to vector<2x1x256xf32>
    %465 = vector.broadcast %106 : f32 to vector<2x1x256xf32>
    %466 = arith.mulf %465, %464 : vector<2x1x256xf32>
    %467 = arith.addf %459, %463 : vector<2x1x256xf32>
    %468 = arith.addf %460, %466 : vector<2x1x256xf32>
    %469 = arith.addf %467, %468 : vector<2x1x256xf32>
    %c14_i32 = arith.constant 14 : i32
    %470 = vector.broadcast %c14_i32 : i32 to vector<1x1x256xi32>
    %471 = arith.cmpi slt, %111, %470 : vector<1x1x256xi32>
    %cst_12 = arith.constant 0.000000e+00 : f32
    %472 = vector.shape_cast %471 : vector<1x1x256xi1> to vector<1x1x256xi1>
    %473 = vector.broadcast %472 : vector<1x1x256xi1> to vector<2x1x256xi1>
    %474 = vector.broadcast %cst_12 : f32 to vector<2x1x256xf32>
    %475 = arith.select %473, %469, %474 : vector<2x1x256xi1>, vector<2x1x256xf32>
    %476 = arith.addf %414, %475 : vector<2x1x256xf32>
    %477 = vector.extract_strided_slice %8 {offsets = [0, 0, 6], sizes = [2, 1, 256], strides = [1, 1, 1]} : vector<2x1x358xf32> to vector<2x1x256xf32>
    %478 = vector.broadcast %16 : f32 to vector<2x1x256xf32>
    %479 = arith.mulf %478, %477 : vector<2x1x256xf32>
    %480 = vector.extract_strided_slice %9 {offsets = [0, 0, 6], sizes = [2, 1, 256], strides = [1, 1, 1]} : vector<2x1x358xf32> to vector<2x1x256xf32>
    %481 = vector.broadcast %65 : f32 to vector<2x1x256xf32>
    %482 = arith.mulf %481, %480 : vector<2x1x256xf32>
    %483 = vector.extract_strided_slice %8 {offsets = [0, 0, 22], sizes = [2, 1, 256], strides = [1, 1, 1]} : vector<2x1x358xf32> to vector<2x1x256xf32>
    %484 = vector.broadcast %23 : f32 to vector<2x1x256xf32>
    %485 = arith.mulf %484, %483 : vector<2x1x256xf32>
    %486 = vector.extract_strided_slice %9 {offsets = [0, 0, 22], sizes = [2, 1, 256], strides = [1, 1, 1]} : vector<2x1x358xf32> to vector<2x1x256xf32>
    %487 = vector.broadcast %72 : f32 to vector<2x1x256xf32>
    %488 = arith.mulf %487, %486 : vector<2x1x256xf32>
    %489 = arith.addf %479, %485 : vector<2x1x256xf32>
    %490 = arith.addf %482, %488 : vector<2x1x256xf32>
    %491 = vector.extract_strided_slice %8 {offsets = [0, 0, 38], sizes = [2, 1, 256], strides = [1, 1, 1]} : vector<2x1x358xf32> to vector<2x1x256xf32>
    %492 = vector.broadcast %30 : f32 to vector<2x1x256xf32>
    %493 = arith.mulf %492, %491 : vector<2x1x256xf32>
    %494 = vector.extract_strided_slice %9 {offsets = [0, 0, 38], sizes = [2, 1, 256], strides = [1, 1, 1]} : vector<2x1x358xf32> to vector<2x1x256xf32>
    %495 = vector.broadcast %79 : f32 to vector<2x1x256xf32>
    %496 = arith.mulf %495, %494 : vector<2x1x256xf32>
    %497 = arith.addf %489, %493 : vector<2x1x256xf32>
    %498 = arith.addf %490, %496 : vector<2x1x256xf32>
    %499 = vector.extract_strided_slice %8 {offsets = [0, 0, 54], sizes = [2, 1, 256], strides = [1, 1, 1]} : vector<2x1x358xf32> to vector<2x1x256xf32>
    %500 = vector.broadcast %37 : f32 to vector<2x1x256xf32>
    %501 = arith.mulf %500, %499 : vector<2x1x256xf32>
    %502 = vector.extract_strided_slice %9 {offsets = [0, 0, 54], sizes = [2, 1, 256], strides = [1, 1, 1]} : vector<2x1x358xf32> to vector<2x1x256xf32>
    %503 = vector.broadcast %86 : f32 to vector<2x1x256xf32>
    %504 = arith.mulf %503, %502 : vector<2x1x256xf32>
    %505 = arith.addf %497, %501 : vector<2x1x256xf32>
    %506 = arith.addf %498, %504 : vector<2x1x256xf32>
    %507 = vector.extract_strided_slice %8 {offsets = [0, 0, 70], sizes = [2, 1, 256], strides = [1, 1, 1]} : vector<2x1x358xf32> to vector<2x1x256xf32>
    %508 = vector.broadcast %44 : f32 to vector<2x1x256xf32>
    %509 = arith.mulf %508, %507 : vector<2x1x256xf32>
    %510 = vector.extract_strided_slice %9 {offsets = [0, 0, 70], sizes = [2, 1, 256], strides = [1, 1, 1]} : vector<2x1x358xf32> to vector<2x1x256xf32>
    %511 = vector.broadcast %93 : f32 to vector<2x1x256xf32>
    %512 = arith.mulf %511, %510 : vector<2x1x256xf32>
    %513 = arith.addf %505, %509 : vector<2x1x256xf32>
    %514 = arith.addf %506, %512 : vector<2x1x256xf32>
    %515 = vector.extract_strided_slice %8 {offsets = [0, 0, 86], sizes = [2, 1, 256], strides = [1, 1, 1]} : vector<2x1x358xf32> to vector<2x1x256xf32>
    %516 = vector.broadcast %51 : f32 to vector<2x1x256xf32>
    %517 = arith.mulf %516, %515 : vector<2x1x256xf32>
    %518 = vector.extract_strided_slice %9 {offsets = [0, 0, 86], sizes = [2, 1, 256], strides = [1, 1, 1]} : vector<2x1x358xf32> to vector<2x1x256xf32>
    %519 = vector.broadcast %100 : f32 to vector<2x1x256xf32>
    %520 = arith.mulf %519, %518 : vector<2x1x256xf32>
    %521 = arith.addf %513, %517 : vector<2x1x256xf32>
    %522 = arith.addf %514, %520 : vector<2x1x256xf32>
    %523 = vector.extract_strided_slice %8 {offsets = [0, 0, 102], sizes = [2, 1, 256], strides = [1, 1, 1]} : vector<2x1x358xf32> to vector<2x1x256xf32>
    %524 = vector.broadcast %58 : f32 to vector<2x1x256xf32>
    %525 = arith.mulf %524, %523 : vector<2x1x256xf32>
    %526 = vector.extract_strided_slice %9 {offsets = [0, 0, 102], sizes = [2, 1, 256], strides = [1, 1, 1]} : vector<2x1x358xf32> to vector<2x1x256xf32>
    %527 = vector.broadcast %107 : f32 to vector<2x1x256xf32>
    %528 = arith.mulf %527, %526 : vector<2x1x256xf32>
    %529 = arith.addf %521, %525 : vector<2x1x256xf32>
    %530 = arith.addf %522, %528 : vector<2x1x256xf32>
    %531 = arith.addf %529, %530 : vector<2x1x256xf32>
    %c13_i32 = arith.constant 13 : i32
    %532 = vector.broadcast %c13_i32 : i32 to vector<1x1x256xi32>
    %533 = arith.cmpi slt, %111, %532 : vector<1x1x256xi32>
    %cst_13 = arith.constant 0.000000e+00 : f32
    %534 = vector.shape_cast %533 : vector<1x1x256xi1> to vector<1x1x256xi1>
    %535 = vector.broadcast %534 : vector<1x1x256xi1> to vector<2x1x256xi1>
    %536 = vector.broadcast %cst_13 : f32 to vector<2x1x256xf32>
    %537 = arith.select %535, %531, %536 : vector<2x1x256xi1>, vector<2x1x256xf32>
    %538 = arith.addf %476, %537 : vector<2x1x256xf32>
    %539 = vector.broadcast %108 : f32 to vector<2x1x256xf32>
    %540 = arith.addf %538, %539 : vector<2x1x256xf32>
    %541 = arith.negf %540 : vector<2x1x256xf32>
    %542 = math.exp %541 : vector<2x1x256xf32>
    %cst_14 = arith.constant 1.000000e+00 : f32
    %543 = vector.broadcast %cst_14 : f32 to vector<2x1x256xf32>
    %544 = arith.addf %543, %542 : vector<2x1x256xf32>
    %545 = arith.divf %543, %544 : vector<2x1x256xf32>
    %546 = vector.broadcast %545 : vector<2x1x256xf32> to vector<2x4x256xf32>
    %547 = arith.mulf %0, %546 : vector<2x4x256xf32>
    %c0_15 = arith.constant 0 : index
    %c0_16 = arith.constant 0 : index
    %c0_17 = arith.constant 0 : index
    %548 = vector.load %arg4[%c0_15, %c0_16, %c0_17] : memref<2x4x256xf32, #tpu.memory_space<vmem>>, vector<2x4x256xf32>
    tpu.vector_store %arg4[%c0_15, %c0_16, %c0_17], %547 {strides = array<i32>} : memref<2x4x256xf32, #tpu.memory_space<vmem>>, vector<2x4x256xf32>,
    return
  }
  func.func @transform_0(%arg0: i32) -> (i32, i32, i32) {
    %c0_i32 = arith.constant 0 : i32
    %c0_i32_0 = arith.constant 0 : i32
    %c0_i32_1 = arith.constant 0 : i32
    return %arg0, %c0_i32, %c0_i32_0 : i32, i32, i32
  }
  func.func @transform_1(%arg0: i32) -> i32 {
    %c0_i32 = arith.constant 0 : i32
    %c0_i32_0 = arith.constant 0 : i32
    return %c0_i32 : i32
  }
  func.func @transform_2(%arg0: i32) -> i32 {
    %c0_i32 = arith.constant 0 : i32
    %c0_i32_0 = arith.constant 0 : i32
    return %c0_i32 : i32
  }
  func.func @transform_3(%arg0: i32) -> (i32, i32, i32) {
    %c0_i32 = arith.constant 0 : i32
    %c0_i32_0 = arith.constant 0 : i32
    %c0_i32_1 = arith.constant 0 : i32
    return %arg0, %c0_i32, %c0_i32_0 : i32, i32, i32
  }
}

</mosaic_0001>

<llo_original>
// kernel: tpu_custom_call.1
$region0: #{tpu_custom_call.1}
  #allocation0 [shape = 'u32[]', space=smem, size = 0x4, offset = 0x4, fixed_abs, tag = 'smem constant byte address 0x4 - core index']
  #allocation1 [shape = 'u32[144,128]{1,0:T(1,128)}', space=vmem, size = 0x12000, scoped, tag = 'internal scratch']
  #allocation2 [shape = 'f32[1]{0:T(128)S(6)}', space=smem, size = 0x200, scoped, tag = 'scoped memory for tpu_custom_call.1']
  %s0 = inlined_call_operand.hbm [shape: f32[2,4,256], index: 0, kind: input, shape index: {}]
  %s1 = inlined_call_operand.vmem [shape: f32[98], index: 1, kind: input, shape index: {}]
  %s2 = inlined_call_operand.<no memory space> [shape: f32[1], index: 2, kind: input, shape index: {}]
  %s3 = inlined_call_operand.hbm [shape: f32[2,4,256], index: 3, kind: output, shape index: {}]
  %s4 = sld [smem:[#allocation0]]
  $region30: #{tpu_custom_call.1} parent=0
    _
  %s6 = ssub.s32 1, %s4
  %s7 = scalar_select 0, %s6, %s4
  %8 = sst [smem:[#allocation2]] %s2
  $region1: #{tpu_custom_call.1} parent=0
    #allocation3 [shape = 'u8[8192]{0}', space=vmem, size = 0x2000, scoped, tag = 'input window, operand 0, single buffered']
    #allocation4 [shape = 's32[1]{0}', space=sflag, size = 0x4, scoped, tag = 'scoped memory for tpu_custom_call.1']
    #allocation5 [shape = 's32[1]{0}', space=sflag, size = 0x4, scoped, tag = 'scoped memory for tpu_custom_call.1']
    #allocation6 [shape = 's32[1]{0}', space=sflag, size = 0x4, scoped, tag = 'scoped memory for tpu_custom_call.1']
    #allocation7 [shape = 'u8[512]{0}', space=smem, size = 0x200, scoped, tag = 'input window, operand 1, single buffered']
    #allocation8 [shape = 'u8[8192]{0}', space=vmem, size = 0x2000, scoped, tag = 'output window, operand 0, single buffered']
    %9 = vsyncpa [#allocation4], 0
    %10 = vsyncpa [#allocation6], 0
    %11 = vsyncpa [#allocation5], 0
    // Predicated region
    $region2: #{tpu_custom_call.1} parent=1 // pred_check
      _
    $region3: #{tpu_custom_call.1} parent=1 // pred_check_branch
      %13 = sbr.rel (0) target = $region5
    $region4: #{tpu_custom_call.1} parent=1 // pred_region
      %s15 = ssub.s32 256, 256
      %16 = vsyncadd [#allocation4], %s15
      %s17 = sshll.u32 [#allocation3], 4
      %s18 = int_to_ptr.vmem [resolvable:$true] %s17
      %23 = dma.hbm_to_vmem [thread:$0]  %s0, 256, %s18, [#allocation4], 128, 128, 8
    $region5: #{tpu_custom_call.1} parent=1 // pred_fallthru
      _
    // Predicated region
    $region6: #{tpu_custom_call.1} parent=1 // pred_check
      _
    $region7: #{tpu_custom_call.1} parent=1 // pred_check_branch
      %25 = sbr.rel (0) target = $region9
    $region8: #{tpu_custom_call.1} parent=1 // pred_region
      %s27 = ssub.s32 16, 16
      %28 = vsyncadd [#allocation6], %s27
      %s30 = sshll.u32 %s1, 4
      %s31 = int_to_ptr.vmem [resolvable:$true] %s30
      %33 = dma.vmem_to_smem %s31, 16, [#allocation7], [#allocation6]
    $region9: #{tpu_custom_call.1} parent=1 // pred_fallthru
      _
    // Predicated region
    $region10: #{tpu_custom_call.1} parent=1 // pred_check
      _
    $region11: #{tpu_custom_call.1} parent=1 // pred_check_branch
      %35 = sbr.rel (0) target = $region13
    $region12: #{tpu_custom_call.1} parent=1 // pred_region
      _
    $region13: #{tpu_custom_call.1} parent=1 // pred_fallthru
      _
    // Predicated region
    $region14: #{tpu_custom_call.1} parent=1 // pred_check
      _
    $region15: #{tpu_custom_call.1} parent=1 // pred_check_branch
      %37 = sbr.rel (0) target = $region17
    $region16: #{tpu_custom_call.1} parent=1 // pred_region
      %38 = dma.done [#allocation4], 256
    $region17: #{tpu_custom_call.1} parent=1 // pred_fallthru
      _
    // Predicated region
    $region18: #{tpu_custom_call.1} parent=1 // pred_check
      _
    $region19: #{tpu_custom_call.1} parent=1 // pred_check_branch
      %40 = sbr.rel (0) target = $region21
    $region20: #{tpu_custom_call.1} parent=1 // pred_region
      %41 = dma.done [#allocation6], 16
    $region21: #{tpu_custom_call.1} parent=1 // pred_fallthru
      _
    %42 = sfence
    %v43 = vld [vmem:[#allocation3] sm:$0xff]
    %v44 = vld [vmem:[#allocation3 + $0x8] sm:$0xff]
    %v47 = vcombine.high %v43, %v43
    %v48 = vcombine.high %v44, %v44
    %vm51 = vcmask 1043456
    %v52 = vsel %vm51, %v43, 0.0
    %v53 = vrot.slane %v52, 4
    %v54 = vadd.f32 %v52, %v53
    %v55 = vrot.slane %v54, 2
    %v56 = vadd.f32 %v54, %v55
    %v57 = vrot.slane %v56, 1
    %v58 = vadd.f32 %v56, %v57
    %v59 = vsel %vm51, %v47, 0.0
    %v60 = vrot.slane %v59, 4
    %v61 = vadd.f32 %v59, %v60
    %v62 = vrot.slane %v61, 2
    %v63 = vadd.f32 %v61, %v62
    %v64 = vrot.slane %v63, 1
    %v65 = vadd.f32 %v63, %v64
    %v66 = vsel %vm51, %v44, 0.0
    %v67 = vrot.slane %v66, 4
    %v68 = vadd.f32 %v66, %v67
    %v69 = vrot.slane %v68, 2
    %v70 = vadd.f32 %v68, %v69
    %v71 = vrot.slane %v70, 1
    %v72 = vadd.f32 %v70, %v71
    %v73 = vsel %vm51, %v48, 0.0
    %v74 = vrot.slane %v73, 4
    %v75 = vadd.f32 %v73, %v74
    %v76 = vrot.slane %v75, 2
    %v77 = vadd.f32 %v75, %v76
    %v78 = vrot.slane %v77, 1
    %v79 = vadd.f32 %v77, %v78
    %v80 = vrcp.pop 4.0
    %v81 = vmul.f32 %v58, %v80
    %v82 = vmul.f32 %v65, %v80
    %v83 = vmul.f32 %v72, %v80
    %v84 = vmul.f32 %v79, %v80
    %v85 = vsel %vm51, %v43, -inf
    %v86 = vrot.slane %v85, 4
    %v87 = vmax.f32 %v85, %v86
    %v88 = vrot.slane %v87, 2
    %v89 = vmax.f32 %v87, %v88
    %v90 = vrot.slane %v89, 1
    %v91 = vmax.f32 %v89, %v90
    %v92 = vsel %vm51, %v47, -inf
    %v93 = vrot.slane %v92, 4
    %v94 = vmax.f32 %v92, %v93
    %v95 = vrot.slane %v94, 2
    %v96 = vmax.f32 %v94, %v95
    %v97 = vrot.slane %v96, 1
    %v98 = vmax.f32 %v96, %v97
    %v99 = vsel %vm51, %v44, -inf
    %v100 = vrot.slane %v99, 4
    %v101 = vmax.f32 %v99, %v100
    %v102 = vrot.slane %v101, 2
    %v103 = vmax.f32 %v101, %v102
    %v104 = vrot.slane %v103, 1
    %v105 = vmax.f32 %v103, %v104
    %v106 = vsel %vm51, %v48, -inf
    %v107 = vrot.slane %v106, 4
    %v108 = vmax.f32 %v106, %v107
    %v109 = vrot.slane %v108, 2
    %v110 = vmax.f32 %v108, %v109
    %v111 = vrot.slane %v110, 1
    %v112 = vmax.f32 %v110, %v111
    %117 = vrot.lane.b32.xlu0 %v81, 51
    %v118 = vpop.permute.xlu0 %117
    %119 = vrot.lane.b32.xlu0 %v82, 51
    %v120 = vpop.permute.xlu0 %119
    %121 = vrot.lane.b32.xlu0 %v83, 51
    %v122 = vpop.permute.xlu0 %121
    %123 = vrot.lane.b32.xlu0 %v84, 51
    %v124 = vpop.permute.xlu0 %123
    %vm125 = vcmask 416768
    %v126 = vsel %vm125, %v118, %v120
    %v127 = vsel %vm125, %v122, %v124
    %v134 = vsel %vm125, 0.0, %v118
    %v135 = vsel %vm125, 0.0, %v122
    %v136 = vsel %vm125, %v120, 0.0
    %v137 = vsel %vm125, %v124, 0.0
    %142 = vrot.lane.b32.xlu0 %v91, 51
    %v143 = vpop.permute.xlu0 %142
    %144 = vrot.lane.b32.xlu0 %v98, 51
    %v145 = vpop.permute.xlu0 %144
    %146 = vrot.lane.b32.xlu0 %v105, 51
    %v147 = vpop.permute.xlu0 %146
    %148 = vrot.lane.b32.xlu0 %v112, 51
    %v149 = vpop.permute.xlu0 %148
    %v150 = vsel %vm125, %v143, %v145
    %v151 = vsel %vm125, %v147, %v149
    %v158 = vsel %vm125, 0.0, %v143
    %v159 = vsel %vm125, 0.0, %v147
    %v160 = vsel %vm125, %v145, 0.0
    %v161 = vsel %vm125, %v149, 0.0
    %s162 = sld [smem:[#allocation7]]
    %s163 = sld [smem:[#allocation7 + $0x1]]
    %s164 = sld [smem:[#allocation7 + $0x2]]
    %s165 = sld [smem:[#allocation7 + $0x3]]
    %s166 = sld [smem:[#allocation7 + $0x4]]
    %s167 = sld [smem:[#allocation7 + $0x5]]
    %s168 = sld [smem:[#allocation7 + $0x6]]
    %s169 = sld [smem:[#allocation7 + $0x7]]
    %s170 = sld [smem:[#allocation7 + $0x8]]
    %s171 = sld [smem:[#allocation7 + $0x9]]
    %s172 = sld [smem:[#allocation7 + $0xa]]
    %s173 = sld [smem:[#allocation7 + $0xb]]
    %s174 = sld [smem:[#allocation7 + $0xc]]
    %s175 = sld [smem:[#allocation7 + $0xd]]
    %s176 = sld [smem:[#allocation7 + $0xe]]
    %s177 = sld [smem:[#allocation7 + $0xf]]
    %s178 = sld [smem:[#allocation7 + $0x10]]
    %s179 = sld [smem:[#allocation7 + $0x11]]
    %s180 = sld [smem:[#allocation7 + $0x12]]
    %s181 = sld [smem:[#allocation7 + $0x13]]
    %s182 = sld [smem:[#allocation7 + $0x14]]
    %s183 = sld [smem:[#allocation7 + $0x15]]
    %s184 = sld [smem:[#allocation7 + $0x16]]
    %s185 = sld [smem:[#allocation7 + $0x17]]
    %s186 = sld [smem:[#allocation7 + $0x18]]
    %s187 = sld [smem:[#allocation7 + $0x19]]
    %s188 = sld [smem:[#allocation7 + $0x1a]]
    %s189 = sld [smem:[#allocation7 + $0x1b]]
    %s190 = sld [smem:[#allocation7 + $0x1c]]
    %s191 = sld [smem:[#allocation7 + $0x1d]]
    %s192 = sld [smem:[#allocation7 + $0x1e]]
    %s193 = sld [smem:[#allocation7 + $0x1f]]
    %s194 = sld [smem:[#allocation7 + $0x20]]
    %s195 = sld [smem:[#allocation7 + $0x21]]
    %s196 = sld [smem:[#allocation7 + $0x22]]
    %s197 = sld [smem:[#allocation7 + $0x23]]
    %s198 = sld [smem:[#allocation7 + $0x24]]
    %s199 = sld [smem:[#allocation7 + $0x25]]
    %s200 = sld [smem:[#allocation7 + $0x26]]
    %s201 = sld [smem:[#allocation7 + $0x27]]
    %s202 = sld [smem:[#allocation7 + $0x28]]
    %s203 = sld [smem:[#allocation7 + $0x29]]
    %s204 = sld [smem:[#allocation7 + $0x2a]]
    %s205 = sld [smem:[#allocation7 + $0x2b]]
    %s206 = sld [smem:[#allocation7 + $0x2c]]
    %s207 = sld [smem:[#allocation7 + $0x2d]]
    %s208 = sld [smem:[#allocation7 + $0x2e]]
    %s209 = sld [smem:[#allocation7 + $0x2f]]
    %s210 = sld [smem:[#allocation7 + $0x30]]
    %s211 = sld [smem:[#allocation7 + $0x31]]
    %s212 = sld [smem:[#allocation7 + $0x32]]
    %s213 = sld [smem:[#allocation7 + $0x33]]
    %s214 = sld [smem:[#allocation7 + $0x34]]
    %s215 = sld [smem:[#allocation7 + $0x35]]
    %s216 = sld [smem:[#allocation7 + $0x36]]
    %s217 = sld [smem:[#allocation7 + $0x37]]
    %s218 = sld [smem:[#allocation7 + $0x38]]
    %s219 = sld [smem:[#allocation7 + $0x39]]
    %s220 = sld [smem:[#allocation7 + $0x3a]]
    %s221 = sld [smem:[#allocation7 + $0x3b]]
    %s222 = sld [smem:[#allocation7 + $0x3c]]
    %s223 = sld [smem:[#allocation7 + $0x3d]]
    %s224 = sld [smem:[#allocation7 + $0x3e]]
    %s225 = sld [smem:[#allocation7 + $0x3f]]
    %s226 = sld [smem:[#allocation7 + $0x40]]
    %s227 = sld [smem:[#allocation7 + $0x41]]
    %s228 = sld [smem:[#allocation7 + $0x42]]
    %s229 = sld [smem:[#allocation7 + $0x43]]
    %s230 = sld [smem:[#allocation7 + $0x44]]
    %s231 = sld [smem:[#allocation7 + $0x45]]
    %s232 = sld [smem:[#allocation7 + $0x46]]
    %s233 = sld [smem:[#allocation7 + $0x47]]
    %s234 = sld [smem:[#allocation7 + $0x48]]
    %s235 = sld [smem:[#allocation7 + $0x49]]
    %s236 = sld [smem:[#allocation7 + $0x4a]]
    %s237 = sld [smem:[#allocation7 + $0x4b]]
    %s238 = sld [smem:[#allocation7 + $0x4c]]
    %s239 = sld [smem:[#allocation7 + $0x4d]]
    %s240 = sld [smem:[#allocation7 + $0x4e]]
    %s241 = sld [smem:[#allocation7 + $0x4f]]
    %s242 = sld [smem:[#allocation7 + $0x50]]
    %s243 = sld [smem:[#allocation7 + $0x51]]
    %s244 = sld [smem:[#allocation7 + $0x52]]
    %s245 = sld [smem:[#allocation7 + $0x53]]
    %s246 = sld [smem:[#allocation7 + $0x54]]
    %s247 = sld [smem:[#allocation7 + $0x55]]
    %s248 = sld [smem:[#allocation7 + $0x56]]
    %s249 = sld [smem:[#allocation7 + $0x57]]
    %s250 = sld [smem:[#allocation7 + $0x58]]
    %s251 = sld [smem:[#allocation7 + $0x59]]
    %s252 = sld [smem:[#allocation7 + $0x5a]]
    %s253 = sld [smem:[#allocation7 + $0x5b]]
    %s254 = sld [smem:[#allocation7 + $0x5c]]
    %s255 = sld [smem:[#allocation7 + $0x5d]]
    %s256 = sld [smem:[#allocation7 + $0x5e]]
    %s257 = sld [smem:[#allocation7 + $0x5f]]
    %s258 = sld [smem:[#allocation7 + $0x60]]
    %s259 = sld [smem:[#allocation7 + $0x61]]
    %s260 = sld [smem:[#allocation2]]
    %v261 = vlaneseq
    %v262 = vand.u32 %v261, 127
    %v263 = vadd.s32 %v262, 128
    %v264 = vand.u32 %v262, 15
    %v265 = vand.u32 %v263, 15
    %v266 = vstv %s162
    %v267 = vmul.f32 %v266, %v134
    %v268 = vmul.f32 %v266, %v126
    %v269 = vmul.f32 %v266, %v135
    %v270 = vmul.f32 %v266, %v127
    %v271 = vstv %s211
    %v272 = vmul.f32 %v271, %v158
    %v273 = vmul.f32 %v271, %v150
    %v274 = vmul.f32 %v271, %v159
    %v275 = vmul.f32 %v271, %v151
    %v276 = vstv %s169
    %v277 = vmul.f32 %v276, %v134
    %v278 = vmul.f32 %v276, %v126
    %v279 = vmul.f32 %v276, %v136
    %v280 = vmul.f32 %v276, %v135
    %v281 = vmul.f32 %v276, %v127
    %v282 = vmul.f32 %v276, %v137
    %v283 = vstv %s218
    %v284 = vmul.f32 %v283, %v158
    %v285 = vmul.f32 %v283, %v150
    %v286 = vmul.f32 %v283, %v160
    %v287 = vmul.f32 %v283, %v159
    %v288 = vmul.f32 %v283, %v151
    %v289 = vmul.f32 %v283, %v161
    %296 = vrot.lane.b32.xlu0 %v277, 112
    %v297 = vpop.permute.xlu0 %296
    %298 = vrot.lane.b32.xlu0 %v278, 112
    %v299 = vpop.permute.xlu0 %298
    %300 = vrot.lane.b32.xlu0 %v279, 112
    %v301 = vpop.permute.xlu0 %300
    %302 = vrot.lane.b32.xlu0 %v280, 112
    %v303 = vpop.permute.xlu0 %302
    %304 = vrot.lane.b32.xlu0 %v281, 112
    %v305 = vpop.permute.xlu0 %304
    %306 = vrot.lane.b32.xlu0 %v282, 112
    %v307 = vpop.permute.xlu0 %306
    %vm308 = vcmask 916480
    %v309 = vsel %vm308, %v297, %v299
    %v310 = vsel %vm308, %v299, %v301
    %v311 = vsel %vm308, %v303, %v305
    %v312 = vsel %vm308, %v305, %v307
    %v317 = vadd.f32 %v267, %v309
    %v318 = vadd.f32 %v268, %v310
    %v319 = vadd.f32 %v269, %v311
    %v320 = vadd.f32 %v270, %v312
    %327 = vrot.lane.b32.xlu0 %v284, 112
    %v328 = vpop.permute.xlu0 %327
    %329 = vrot.lane.b32.xlu0 %v285, 112
    %v330 = vpop.permute.xlu0 %329
    %331 = vrot.lane.b32.xlu0 %v286, 112
    %v332 = vpop.permute.xlu0 %331
    %333 = vrot.lane.b32.xlu0 %v287, 112
    %v334 = vpop.permute.xlu0 %333
    %335 = vrot.lane.b32.xlu0 %v288, 112
    %v336 = vpop.permute.xlu0 %335
    %337 = vrot.lane.b32.xlu0 %v289, 112
    %v338 = vpop.permute.xlu0 %337
    %v339 = vsel %vm308, %v328, %v330
    %v340 = vsel %vm308, %v330, %v332
    %v341 = vsel %vm308, %v334, %v336
    %v342 = vsel %vm308, %v336, %v338
    %v347 = vadd.f32 %v272, %v339
    %v348 = vadd.f32 %v273, %v340
    %v349 = vadd.f32 %v274, %v341
    %v350 = vadd.f32 %v275, %v342
    %v351 = vstv %s176
    %v352 = vmul.f32 %v351, %v134
    %v353 = vmul.f32 %v351, %v126
    %v354 = vmul.f32 %v351, %v136
    %v355 = vmul.f32 %v351, %v135
    %v356 = vmul.f32 %v351, %v127
    %v357 = vmul.f32 %v351, %v137
    %v358 = vstv %s225
    %v359 = vmul.f32 %v358, %v158
    %v360 = vmul.f32 %v358, %v150
    %v361 = vmul.f32 %v358, %v160
    %v362 = vmul.f32 %v358, %v159
    %v363 = vmul.f32 %v358, %v151
    %v364 = vmul.f32 %v358, %v161
    %371 = vrot.lane.b32.xlu0 %v352, 96
    %v372 = vpop.permute.xlu0 %371
    %373 = vrot.lane.b32.xlu0 %v353, 96
    %v374 = vpop.permute.xlu0 %373
    %375 = vrot.lane.b32.xlu0 %v354, 96
    %v376 = vpop.permute.xlu0 %375
    %377 = vrot.lane.b32.xlu0 %v355, 96
    %v378 = vpop.permute.xlu0 %377
    %379 = vrot.lane.b32.xlu0 %v356, 96
    %v380 = vpop.permute.xlu0 %379
    %381 = vrot.lane.b32.xlu0 %v357, 96
    %v382 = vpop.permute.xlu0 %381
    %vm383 = vcmask 785408
    %v384 = vsel %vm383, %v372, %v374
    %v385 = vsel %vm383, %v374, %v376
    %v386 = vsel %vm383, %v378, %v380
    %v387 = vsel %vm383, %v380, %v382
    %v392 = vadd.f32 %v317, %v384
    %v393 = vadd.f32 %v318, %v385
    %v394 = vadd.f32 %v319, %v386
    %v395 = vadd.f32 %v320, %v387
    %402 = vrot.lane.b32.xlu0 %v359, 96
    %v403 = vpop.permute.xlu0 %402
    %404 = vrot.lane.b32.xlu0 %v360, 96
    %v405 = vpop.permute.xlu0 %404
    %406 = vrot.lane.b32.xlu0 %v361, 96
    %v407 = vpop.permute.xlu0 %406
    %408 = vrot.lane.b32.xlu0 %v362, 96
    %v409 = vpop.permute.xlu0 %408
    %410 = vrot.lane.b32.xlu0 %v363, 96
    %v411 = vpop.permute.xlu0 %410
    %412 = vrot.lane.b32.xlu0 %v364, 96
    %v413 = vpop.permute.xlu0 %412
    %v414 = vsel %vm383, %v403, %v405
    %v415 = vsel %vm383, %v405, %v407
    %v416 = vsel %vm383, %v409, %v411
    %v417 = vsel %vm383, %v411, %v413
    %v422 = vadd.f32 %v347, %v414
    %v423 = vadd.f32 %v348, %v415
    %v424 = vadd.f32 %v349, %v416
    %v425 = vadd.f32 %v350, %v417
    %v426 = vstv %s183
    %v427 = vmul.f32 %v426, %v134
    %v428 = vmul.f32 %v426, %v126
    %v429 = vmul.f32 %v426, %v136
    %v430 = vmul.f32 %v426, %v135
    %v431 = vmul.f32 %v426, %v127
    %v432 = vmul.f32 %v426, %v137
    %v433 = vstv %s232
    %v434 = vmul.f32 %v433, %v158
    %v435 = vmul.f32 %v433, %v150
    %v436 = vmul.f32 %v433, %v160
    %v437 = vmul.f32 %v433, %v159
    %v438 = vmul.f32 %v433, %v151
    %v439 = vmul.f32 %v433, %v161
    %446 = vrot.lane.b32.xlu0 %v427, 80
    %v447 = vpop.permute.xlu0 %446
    %448 = vrot.lane.b32.xlu0 %v428, 80
    %v449 = vpop.permute.xlu0 %448
    %450 = vrot.lane.b32.xlu0 %v429, 80
    %v451 = vpop.permute.xlu0 %450
    %452 = vrot.lane.b32.xlu0 %v430, 80
    %v453 = vpop.permute.xlu0 %452
    %454 = vrot.lane.b32.xlu0 %v431, 80
    %v455 = vpop.permute.xlu0 %454
    %456 = vrot.lane.b32.xlu0 %v432, 80
    %v457 = vpop.permute.xlu0 %456
    %vm458 = vcmask 654336
    %v459 = vsel %vm458, %v447, %v449
    %v460 = vsel %vm458, %v449, %v451
    %v461 = vsel %vm458, %v453, %v455
    %v462 = vsel %vm458, %v455, %v457
    %v467 = vadd.f32 %v392, %v459
    %v468 = vadd.f32 %v393, %v460
    %v469 = vadd.f32 %v394, %v461
    %v470 = vadd.f32 %v395, %v462
    %477 = vrot.lane.b32.xlu0 %v434, 80
    %v478 = vpop.permute.xlu0 %477
    %479 = vrot.lane.b32.xlu0 %v435, 80
    %v480 = vpop.permute.xlu0 %479
    %481 = vrot.lane.b32.xlu0 %v436, 80
    %v482 = vpop.permute.xlu0 %481
    %483 = vrot.lane.b32.xlu0 %v437, 80
    %v484 = vpop.permute.xlu0 %483
    %485 = vrot.lane.b32.xlu0 %v438, 80
    %v486 = vpop.permute.xlu0 %485
    %487 = vrot.lane.b32.xlu0 %v439, 80
    %v488 = vpop.permute.xlu0 %487
    %v489 = vsel %vm458, %v478, %v480
    %v490 = vsel %vm458, %v480, %v482
    %v491 = vsel %vm458, %v484, %v486
    %v492 = vsel %vm458, %v486, %v488
    %v497 = vadd.f32 %v422, %v489
    %v498 = vadd.f32 %v423, %v490
    %v499 = vadd.f32 %v424, %v491
    %v500 = vadd.f32 %v425, %v492
    %v501 = vstv %s190
    %v502 = vmul.f32 %v501, %v134
    %v503 = vmul.f32 %v501, %v126
    %v504 = vmul.f32 %v501, %v136
    %v505 = vmul.f32 %v501, %v135
    %v506 = vmul.f32 %v501, %v127
    %v507 = vmul.f32 %v501, %v137
    %v508 = vstv %s239
    %v509 = vmul.f32 %v508, %v158
    %v510 = vmul.f32 %v508, %v150
    %v511 = vmul.f32 %v508, %v160
    %v512 = vmul.f32 %v508, %v159
    %v513 = vmul.f32 %v508, %v151
    %v514 = vmul.f32 %v508, %v161
    %521 = vrot.lane.b32.xlu0 %v502, 64
    %v522 = vpop.permute.xlu0 %521
    %523 = vrot.lane.b32.xlu0 %v503, 64
    %v524 = vpop.permute.xlu0 %523
    %525 = vrot.lane.b32.xlu0 %v504, 64
    %v526 = vpop.permute.xlu0 %525
    %527 = vrot.lane.b32.xlu0 %v505, 64
    %v528 = vpop.permute.xlu0 %527
    %529 = vrot.lane.b32.xlu0 %v506, 64
    %v530 = vpop.permute.xlu0 %529
    %531 = vrot.lane.b32.xlu0 %v507, 64
    %v532 = vpop.permute.xlu0 %531
    %vm533 = vcmask 523264
    %v534 = vsel %vm533, %v522, %v524
    %v535 = vsel %vm533, %v524, %v526
    %v536 = vsel %vm533, %v528, %v530
    %v537 = vsel %vm533, %v530, %v532
    %v542 = vadd.f32 %v467, %v534
    %v543 = vadd.f32 %v468, %v535
    %v544 = vadd.f32 %v469, %v536
    %v545 = vadd.f32 %v470, %v537
    %552 = vrot.lane.b32.xlu0 %v509, 64
    %v553 = vpop.permute.xlu0 %552
    %554 = vrot.lane.b32.xlu0 %v510, 64
    %v555 = vpop.permute.xlu0 %554
    %556 = vrot.lane.b32.xlu0 %v511, 64
    %v557 = vpop.permute.xlu0 %556
    %558 = vrot.lane.b32.xlu0 %v512, 64
    %v559 = vpop.permute.xlu0 %558
    %560 = vrot.lane.b32.xlu0 %v513, 64
    %v561 = vpop.permute.xlu0 %560
    %562 = vrot.lane.b32.xlu0 %v514, 64
    %v563 = vpop.permute.xlu0 %562
    %v564 = vsel %vm533, %v553, %v555
    %v565 = vsel %vm533, %v555, %v557
    %v566 = vsel %vm533, %v559, %v561
    %v567 = vsel %vm533, %v561, %v563
    %v572 = vadd.f32 %v497, %v564
    %v573 = vadd.f32 %v498, %v565
    %v574 = vadd.f32 %v499, %v566
    %v575 = vadd.f32 %v500, %v567
    %v576 = vstv %s197
    %v577 = vmul.f32 %v576, %v134
    %v578 = vmul.f32 %v576, %v126
    %v579 = vmul.f32 %v576, %v136
    %v580 = vmul.f32 %v576, %v135
    %v581 = vmul.f32 %v576, %v127
    %v582 = vmul.f32 %v576, %v137
    %v583 = vstv %s246
    %v584 = vmul.f32 %v583, %v158
    %v585 = vmul.f32 %v583, %v150
    %v586 = vmul.f32 %v583, %v160
    %v587 = vmul.f32 %v583, %v159
    %v588 = vmul.f32 %v583, %v151
    %v589 = vmul.f32 %v583, %v161
    %596 = vrot.lane.b32.xlu0 %v577, 48
    %v597 = vpop.permute.xlu0 %596
    %598 = vrot.lane.b32.xlu0 %v578, 48
    %v599 = vpop.permute.xlu0 %598
    %600 = vrot.lane.b32.xlu0 %v579, 48
    %v601 = vpop.permute.xlu0 %600
    %602 = vrot.lane.b32.xlu0 %v580, 48
    %v603 = vpop.permute.xlu0 %602
    %604 = vrot.lane.b32.xlu0 %v581, 48
    %v605 = vpop.permute.xlu0 %604
    %606 = vrot.lane.b32.xlu0 %v582, 48
    %v607 = vpop.permute.xlu0 %606
    %vm608 = vcmask 392192
    %v609 = vsel %vm608, %v597, %v599
    %v610 = vsel %vm608, %v599, %v601
    %v611 = vsel %vm608, %v603, %v605
    %v612 = vsel %vm608, %v605, %v607
    %v617 = vadd.f32 %v542, %v609
    %v618 = vadd.f32 %v543, %v610
    %v619 = vadd.f32 %v544, %v611
    %v620 = vadd.f32 %v545, %v612
    %627 = vrot.lane.b32.xlu0 %v584, 48
    %v628 = vpop.permute.xlu0 %627
    %629 = vrot.lane.b32.xlu0 %v585, 48
    %v630 = vpop.permute.xlu0 %629
    %631 = vrot.lane.b32.xlu0 %v586, 48
    %v632 = vpop.permute.xlu0 %631
    %633 = vrot.lane.b32.xlu0 %v587, 48
    %v634 = vpop.permute.xlu0 %633
    %635 = vrot.lane.b32.xlu0 %v588, 48
    %v636 = vpop.permute.xlu0 %635
    %637 = vrot.lane.b32.xlu0 %v589, 48
    %v638 = vpop.permute.xlu0 %637
    %v639 = vsel %vm608, %v628, %v630
    %v640 = vsel %vm608, %v630, %v632
    %v641 = vsel %vm608, %v634, %v636
    %v642 = vsel %vm608, %v636, %v638
    %v647 = vadd.f32 %v572, %v639
    %v648 = vadd.f32 %v573, %v640
    %v649 = vadd.f32 %v574, %v641
    %v650 = vadd.f32 %v575, %v642
    %v651 = vstv %s204
    %v652 = vmul.f32 %v651, %v134
    %v653 = vmul.f32 %v651, %v126
    %v654 = vmul.f32 %v651, %v136
    %v655 = vmul.f32 %v651, %v135
    %v656 = vmul.f32 %v651, %v127
    %v657 = vmul.f32 %v651, %v137
    %v658 = vstv %s253
    %v659 = vmul.f32 %v658, %v158
    %v660 = vmul.f32 %v658, %v150
    %v661 = vmul.f32 %v658, %v160
    %v662 = vmul.f32 %v658, %v159
    %v663 = vmul.f32 %v658, %v151
    %v664 = vmul.f32 %v658, %v161
    %671 = vrot.lane.b32.xlu0 %v652, 32
    %v672 = vpop.permute.xlu0 %671
    %673 = vrot.lane.b32.xlu0 %v653, 32
    %v674 = vpop.permute.xlu0 %673
    %675 = vrot.lane.b32.xlu0 %v654, 32
    %v676 = vpop.permute.xlu0 %675
    %677 = vrot.lane.b32.xlu0 %v655, 32
    %v678 = vpop.permute.xlu0 %677
    %679 = vrot.lane.b32.xlu0 %v656, 32
    %v680 = vpop.permute.xlu0 %679
    %681 = vrot.lane.b32.xlu0 %v657, 32
    %v682 = vpop.permute.xlu0 %681
    %vm683 = vcmask 261120
    %v684 = vsel %vm683, %v672, %v674
    %v685 = vsel %vm683, %v674, %v676
    %v686 = vsel %vm683, %v678, %v680
    %v687 = vsel %vm683, %v680, %v682
    %v692 = vadd.f32 %v617, %v684
    %v693 = vadd.f32 %v618, %v685
    %v694 = vadd.f32 %v619, %v686
    %v695 = vadd.f32 %v620, %v687
    %702 = vrot.lane.b32.xlu0 %v659, 32
    %v703 = vpop.permute.xlu0 %702
    %704 = vrot.lane.b32.xlu0 %v660, 32
    %v705 = vpop.permute.xlu0 %704
    %706 = vrot.lane.b32.xlu0 %v661, 32
    %v707 = vpop.permute.xlu0 %706
    %708 = vrot.lane.b32.xlu0 %v662, 32
    %v709 = vpop.permute.xlu0 %708
    %710 = vrot.lane.b32.xlu0 %v663, 32
    %v711 = vpop.permute.xlu0 %710
    %712 = vrot.lane.b32.xlu0 %v664, 32
    %v713 = vpop.permute.xlu0 %712
    %v714 = vsel %vm683, %v703, %v705
    %v715 = vsel %vm683, %v705, %v707
    %v716 = vsel %vm683, %v709, %v711
    %v717 = vsel %vm683, %v711, %v713
    %v722 = vadd.f32 %v647, %v714
    %v723 = vadd.f32 %v648, %v715
    %v724 = vadd.f32 %v649, %v716
    %v725 = vadd.f32 %v650, %v717
    %v726 = vadd.f32 %v692, %v722
    %v727 = vadd.f32 %v693, %v723
    %v728 = vadd.f32 %v694, %v724
    %v729 = vadd.f32 %v695, %v725
    %vm730 = vcmp.ge.s32.totalorder %v264, 3
    %vm731 = vcmp.ge.s32.totalorder %v265, 3
    %v732 = vsel %vm730, 1, 0
    %v733 = vsel %vm731, 1, 0
    %vm734 = vcmp.eq.s32.totalorder %v732, 1
    %vm735 = vcmp.eq.s32.totalorder %v733, 1
    %v736 = vsel %vm734, %v726, 0.0
    %v737 = vsel %vm735, %v727, 0.0
    %v738 = vsel %vm734, %v728, 0.0
    %v739 = vsel %vm735, %v729, 0.0
    %v740 = vstv %s163
    %v741 = vmul.f32 %v740, %v134
    %v742 = vmul.f32 %v740, %v126
    %v743 = vmul.f32 %v740, %v136
    %v744 = vmul.f32 %v740, %v135
    %v745 = vmul.f32 %v740, %v127
    %v746 = vmul.f32 %v740, %v137
    %v747 = vstv %s212
    %v748 = vmul.f32 %v747, %v158
    %v749 = vmul.f32 %v747, %v150
    %v750 = vmul.f32 %v747, %v160
    %v751 = vmul.f32 %v747, %v159
    %v752 = vmul.f32 %v747, %v151
    %v753 = vmul.f32 %v747, %v161
    %v754 = vstv %s170
    %v755 = vmul.f32 %v754, %v134
    %v756 = vmul.f32 %v754, %v126
    %v757 = vmul.f32 %v754, %v136
    %v758 = vmul.f32 %v754, %v135
    %v759 = vmul.f32 %v754, %v127
    %v760 = vmul.f32 %v754, %v137
    %v761 = vstv %s219
    %v762 = vmul.f32 %v761, %v158
    %v763 = vmul.f32 %v761, %v150
    %v764 = vmul.f32 %v761, %v160
    %v765 = vmul.f32 %v761, %v159
    %v766 = vmul.f32 %v761, %v151
    %v767 = vmul.f32 %v761, %v161
    %774 = vrot.lane.b32.xlu0 %v755, 112
    %v775 = vpop.permute.xlu0 %774
    %776 = vrot.lane.b32.xlu0 %v756, 112
    %v777 = vpop.permute.xlu0 %776
    %778 = vrot.lane.b32.xlu0 %v757, 112
    %v779 = vpop.permute.xlu0 %778
    %780 = vrot.lane.b32.xlu0 %v758, 112
    %v781 = vpop.permute.xlu0 %780
    %782 = vrot.lane.b32.xlu0 %v759, 112
    %v783 = vpop.permute.xlu0 %782
    %784 = vrot.lane.b32.xlu0 %v760, 112
    %v785 = vpop.permute.xlu0 %784
    %v786 = vsel %vm308, %v775, %v777
    %v787 = vsel %vm308, %v777, %v779
    %v788 = vsel %vm308, %v781, %v783
    %v789 = vsel %vm308, %v783, %v785
    %v796 = vadd.f32 %v741, %v786
    %v797 = vadd.f32 %v742, %v787
    %v798 = vadd.f32 %v743, %v779
    %v799 = vadd.f32 %v744, %v788
    %v800 = vadd.f32 %v745, %v789
    %v801 = vadd.f32 %v746, %v785
    %808 = vrot.lane.b32.xlu0 %v762, 112
    %v809 = vpop.permute.xlu0 %808
    %810 = vrot.lane.b32.xlu0 %v763, 112
    %v811 = vpop.permute.xlu0 %810
    %812 = vrot.lane.b32.xlu0 %v764, 112
    %v813 = vpop.permute.xlu0 %812
    %814 = vrot.lane.b32.xlu0 %v765, 112
    %v815 = vpop.permute.xlu0 %814
    %816 = vrot.lane.b32.xlu0 %v766, 112
    %v817 = vpop.permute.xlu0 %816
    %818 = vrot.lane.b32.xlu0 %v767, 112
    %v819 = vpop.permute.xlu0 %818
    %v820 = vsel %vm308, %v809, %v811
    %v821 = vsel %vm308, %v811, %v813
    %v822 = vsel %vm308, %v815, %v817
    %v823 = vsel %vm308, %v817, %v819
    %v830 = vadd.f32 %v748, %v820
    %v831 = vadd.f32 %v749, %v821
    %v832 = vadd.f32 %v750, %v813
    %v833 = vadd.f32 %v751, %v822
    %v834 = vadd.f32 %v752, %v823
    %v835 = vadd.f32 %v753, %v819
    %v836 = vstv %s177
    %v837 = vmul.f32 %v836, %v134
    %v838 = vmul.f32 %v836, %v126
    %v839 = vmul.f32 %v836, %v136
    %v840 = vmul.f32 %v836, %v135
    %v841 = vmul.f32 %v836, %v127
    %v842 = vmul.f32 %v836, %v137
    %v843 = vstv %s226
    %v844 = vmul.f32 %v843, %v158
    %v845 = vmul.f32 %v843, %v150
    %v846 = vmul.f32 %v843, %v160
    %v847 = vmul.f32 %v843, %v159
    %v848 = vmul.f32 %v843, %v151
    %v849 = vmul.f32 %v843, %v161
    %856 = vrot.lane.b32.xlu0 %v837, 96
    %v857 = vpop.permute.xlu0 %856
    %858 = vrot.lane.b32.xlu0 %v838, 96
    %v859 = vpop.permute.xlu0 %858
    %860 = vrot.lane.b32.xlu0 %v839, 96
    %v861 = vpop.permute.xlu0 %860
    %862 = vrot.lane.b32.xlu0 %v840, 96
    %v863 = vpop.permute.xlu0 %862
    %864 = vrot.lane.b32.xlu0 %v841, 96
    %v865 = vpop.permute.xlu0 %864
    %866 = vrot.lane.b32.xlu0 %v842, 96
    %v867 = vpop.permute.xlu0 %866
    %v868 = vsel %vm383, %v857, %v859
    %v869 = vsel %vm383, %v859, %v861
    %v870 = vsel %vm383, %v863, %v865
    %v871 = vsel %vm383, %v865, %v867
    %v878 = vadd.f32 %v796, %v868
    %v879 = vadd.f32 %v797, %v869
    %v880 = vadd.f32 %v798, %v861
    %v881 = vadd.f32 %v799, %v870
    %v882 = vadd.f32 %v800, %v871
    %v883 = vadd.f32 %v801, %v867
    %890 = vrot.lane.b32.xlu0 %v844, 96
    %v891 = vpop.permute.xlu0 %890
    %892 = vrot.lane.b32.xlu0 %v845, 96
    %v893 = vpop.permute.xlu0 %892
    %894 = vrot.lane.b32.xlu0 %v846, 96
    %v895 = vpop.permute.xlu0 %894
    %896 = vrot.lane.b32.xlu0 %v847, 96
    %v897 = vpop.permute.xlu0 %896
    %898 = vrot.lane.b32.xlu0 %v848, 96
    %v899 = vpop.permute.xlu0 %898
    %900 = vrot.lane.b32.xlu0 %v849, 96
    %v901 = vpop.permute.xlu0 %900
    %v902 = vsel %vm383, %v891, %v893
    %v903 = vsel %vm383, %v893, %v895
    %v904 = vsel %vm383, %v897, %v899
    %v905 = vsel %vm383, %v899, %v901
    %v912 = vadd.f32 %v830, %v902
    %v913 = vadd.f32 %v831, %v903
    %v914 = vadd.f32 %v832, %v895
    %v915 = vadd.f32 %v833, %v904
    %v916 = vadd.f32 %v834, %v905
    %v917 = vadd.f32 %v835, %v901
    %v918 = vstv %s184
    %v919 = vmul.f32 %v918, %v134
    %v920 = vmul.f32 %v918, %v126
    %v921 = vmul.f32 %v918, %v136
    %v922 = vmul.f32 %v918, %v135
    %v923 = vmul.f32 %v918, %v127
    %v924 = vmul.f32 %v918, %v137
    %v925 = vstv %s233
    %v926 = vmul.f32 %v925, %v158
    %v927 = vmul.f32 %v925, %v150
    %v928 = vmul.f32 %v925, %v160
    %v929 = vmul.f32 %v925, %v159
    %v930 = vmul.f32 %v925, %v151
    %v931 = vmul.f32 %v925, %v161
    %938 = vrot.lane.b32.xlu0 %v919, 80
    %v939 = vpop.permute.xlu0 %938
    %940 = vrot.lane.b32.xlu0 %v920, 80
    %v941 = vpop.permute.xlu0 %940
    %942 = vrot.lane.b32.xlu0 %v921, 80
    %v943 = vpop.permute.xlu0 %942
    %944 = vrot.lane.b32.xlu0 %v922, 80
    %v945 = vpop.permute.xlu0 %944
    %946 = vrot.lane.b32.xlu0 %v923, 80
    %v947 = vpop.permute.xlu0 %946
    %948 = vrot.lane.b32.xlu0 %v924, 80
    %v949 = vpop.permute.xlu0 %948
    %v950 = vsel %vm458, %v939, %v941
    %v951 = vsel %vm458, %v941, %v943
    %v952 = vsel %vm458, %v945, %v947
    %v953 = vsel %vm458, %v947, %v949
    %v960 = vadd.f32 %v878, %v950
    %v961 = vadd.f32 %v879, %v951
    %v962 = vadd.f32 %v880, %v943
    %v963 = vadd.f32 %v881, %v952
    %v964 = vadd.f32 %v882, %v953
    %v965 = vadd.f32 %v883, %v949
    %972 = vrot.lane.b32.xlu0 %v926, 80
    %v973 = vpop.permute.xlu0 %972
    %974 = vrot.lane.b32.xlu0 %v927, 80
    %v975 = vpop.permute.xlu0 %974
    %976 = vrot.lane.b32.xlu0 %v928, 80
    %v977 = vpop.permute.xlu0 %976
    %978 = vrot.lane.b32.xlu0 %v929, 80
    %v979 = vpop.permute.xlu0 %978
    %980 = vrot.lane.b32.xlu0 %v930, 80
    %v981 = vpop.permute.xlu0 %980
    %982 = vrot.lane.b32.xlu0 %v931, 80
    %v983 = vpop.permute.xlu0 %982
    %v984 = vsel %vm458, %v973, %v975
    %v985 = vsel %vm458, %v975, %v977
    %v986 = vsel %vm458, %v979, %v981
    %v987 = vsel %vm458, %v981, %v983
    %v994 = vadd.f32 %v912, %v984
    %v995 = vadd.f32 %v913, %v985
    %v996 = vadd.f32 %v914, %v977
    %v997 = vadd.f32 %v915, %v986
    %v998 = vadd.f32 %v916, %v987
    %v999 = vadd.f32 %v917, %v983
    %v1000 = vstv %s191
    %v1001 = vmul.f32 %v1000, %v134
    %v1002 = vmul.f32 %v1000, %v126
    %v1003 = vmul.f32 %v1000, %v136
    %v1004 = vmul.f32 %v1000, %v135
    %v1005 = vmul.f32 %v1000, %v127
    %v1006 = vmul.f32 %v1000, %v137
    %v1007 = vstv %s240
    %v1008 = vmul.f32 %v1007, %v158
    %v1009 = vmul.f32 %v1007, %v150
    %v1010 = vmul.f32 %v1007, %v160
    %v1011 = vmul.f32 %v1007, %v159
    %v1012 = vmul.f32 %v1007, %v151
    %v1013 = vmul.f32 %v1007, %v161
    %1020 = vrot.lane.b32.xlu0 %v1001, 64
    %v1021 = vpop.permute.xlu0 %1020
    %1022 = vrot.lane.b32.xlu0 %v1002, 64
    %v1023 = vpop.permute.xlu0 %1022
    %1024 = vrot.lane.b32.xlu0 %v1003, 64
    %v1025 = vpop.permute.xlu0 %1024
    %1026 = vrot.lane.b32.xlu0 %v1004, 64
    %v1027 = vpop.permute.xlu0 %1026
    %1028 = vrot.lane.b32.xlu0 %v1005, 64
    %v1029 = vpop.permute.xlu0 %1028
    %1030 = vrot.lane.b32.xlu0 %v1006, 64
    %v1031 = vpop.permute.xlu0 %1030
    %v1032 = vsel %vm533, %v1021, %v1023
    %v1033 = vsel %vm533, %v1023, %v1025
    %v1034 = vsel %vm533, %v1027, %v1029
    %v1035 = vsel %vm533, %v1029, %v1031
    %v1042 = vadd.f32 %v960, %v1032
    %v1043 = vadd.f32 %v961, %v1033
    %v1044 = vadd.f32 %v962, %v1025
    %v1045 = vadd.f32 %v963, %v1034
    %v1046 = vadd.f32 %v964, %v1035
    %v1047 = vadd.f32 %v965, %v1031
    %1054 = vrot.lane.b32.xlu0 %v1008, 64
    %v1055 = vpop.permute.xlu0 %1054
    %1056 = vrot.lane.b32.xlu0 %v1009, 64
    %v1057 = vpop.permute.xlu0 %1056
    %1058 = vrot.lane.b32.xlu0 %v1010, 64
    %v1059 = vpop.permute.xlu0 %1058
    %1060 = vrot.lane.b32.xlu0 %v1011, 64
    %v1061 = vpop.permute.xlu0 %1060
    %1062 = vrot.lane.b32.xlu0 %v1012, 64
    %v1063 = vpop.permute.xlu0 %1062
    %1064 = vrot.lane.b32.xlu0 %v1013, 64
    %v1065 = vpop.permute.xlu0 %1064
    %v1066 = vsel %vm533, %v1055, %v1057
    %v1067 = vsel %vm533, %v1057, %v1059
    %v1068 = vsel %vm533, %v1061, %v1063
    %v1069 = vsel %vm533, %v1063, %v1065
    %v1076 = vadd.f32 %v994, %v1066
    %v1077 = vadd.f32 %v995, %v1067
    %v1078 = vadd.f32 %v996, %v1059
    %v1079 = vadd.f32 %v997, %v1068
    %v1080 = vadd.f32 %v998, %v1069
    %v1081 = vadd.f32 %v999, %v1065
    %v1082 = vstv %s198
    %v1083 = vmul.f32 %v1082, %v134
    %v1084 = vmul.f32 %v1082, %v126
    %v1085 = vmul.f32 %v1082, %v136
    %v1086 = vmul.f32 %v1082, %v135
    %v1087 = vmul.f32 %v1082, %v127
    %v1088 = vmul.f32 %v1082, %v137
    %v1089 = vstv %s247
    %v1090 = vmul.f32 %v1089, %v158
    %v1091 = vmul.f32 %v1089, %v150
    %v1092 = vmul.f32 %v1089, %v160
    %v1093 = vmul.f32 %v1089, %v159
    %v1094 = vmul.f32 %v1089, %v151
    %v1095 = vmul.f32 %v1089, %v161
    %1102 = vrot.lane.b32.xlu0 %v1083, 48
    %v1103 = vpop.permute.xlu0 %1102
    %1104 = vrot.lane.b32.xlu0 %v1084, 48
    %v1105 = vpop.permute.xlu0 %1104
    %1106 = vrot.lane.b32.xlu0 %v1085, 48
    %v1107 = vpop.permute.xlu0 %1106
    %1108 = vrot.lane.b32.xlu0 %v1086, 48
    %v1109 = vpop.permute.xlu0 %1108
    %1110 = vrot.lane.b32.xlu0 %v1087, 48
    %v1111 = vpop.permute.xlu0 %1110
    %1112 = vrot.lane.b32.xlu0 %v1088, 48
    %v1113 = vpop.permute.xlu0 %1112
    %v1114 = vsel %vm608, %v1103, %v1105
    %v1115 = vsel %vm608, %v1105, %v1107
    %v1116 = vsel %vm608, %v1109, %v1111
    %v1117 = vsel %vm608, %v1111, %v1113
    %v1124 = vadd.f32 %v1042, %v1114
    %v1125 = vadd.f32 %v1043, %v1115
    %v1126 = vadd.f32 %v1044, %v1107
    %v1127 = vadd.f32 %v1045, %v1116
    %v1128 = vadd.f32 %v1046, %v1117
    %v1129 = vadd.f32 %v1047, %v1113
    %1136 = vrot.lane.b32.xlu0 %v1090, 48
    %v1137 = vpop.permute.xlu0 %1136
    %1138 = vrot.lane.b32.xlu0 %v1091, 48
    %v1139 = vpop.permute.xlu0 %1138
    %1140 = vrot.lane.b32.xlu0 %v1092, 48
    %v1141 = vpop.permute.xlu0 %1140
    %1142 = vrot.lane.b32.xlu0 %v1093, 48
    %v1143 = vpop.permute.xlu0 %1142
    %1144 = vrot.lane.b32.xlu0 %v1094, 48
    %v1145 = vpop.permute.xlu0 %1144
    %1146 = vrot.lane.b32.xlu0 %v1095, 48
    %v1147 = vpop.permute.xlu0 %1146
    %v1148 = vsel %vm608, %v1137, %v1139
    %v1149 = vsel %vm608, %v1139, %v1141
    %v1150 = vsel %vm608, %v1143, %v1145
    %v1151 = vsel %vm608, %v1145, %v1147
    %v1158 = vadd.f32 %v1076, %v1148
    %v1159 = vadd.f32 %v1077, %v1149
    %v1160 = vadd.f32 %v1078, %v1141
    %v1161 = vadd.f32 %v1079, %v1150
    %v1162 = vadd.f32 %v1080, %v1151
    %v1163 = vadd.f32 %v1081, %v1147
    %v1164 = vstv %s205
    %v1165 = vmul.f32 %v1164, %v134
    %v1166 = vmul.f32 %v1164, %v126
    %v1167 = vmul.f32 %v1164, %v136
    %v1168 = vmul.f32 %v1164, %v135
    %v1169 = vmul.f32 %v1164, %v127
    %v1170 = vmul.f32 %v1164, %v137
    %v1171 = vstv %s254
    %v1172 = vmul.f32 %v1171, %v158
    %v1173 = vmul.f32 %v1171, %v150
    %v1174 = vmul.f32 %v1171, %v160
    %v1175 = vmul.f32 %v1171, %v159
    %v1176 = vmul.f32 %v1171, %v151
    %v1177 = vmul.f32 %v1171, %v161
    %1184 = vrot.lane.b32.xlu0 %v1165, 32
    %v1185 = vpop.permute.xlu0 %1184
    %1186 = vrot.lane.b32.xlu0 %v1166, 32
    %v1187 = vpop.permute.xlu0 %1186
    %1188 = vrot.lane.b32.xlu0 %v1167, 32
    %v1189 = vpop.permute.xlu0 %1188
    %1190 = vrot.lane.b32.xlu0 %v1168, 32
    %v1191 = vpop.permute.xlu0 %1190
    %1192 = vrot.lane.b32.xlu0 %v1169, 32
    %v1193 = vpop.permute.xlu0 %1192
    %1194 = vrot.lane.b32.xlu0 %v1170, 32
    %v1195 = vpop.permute.xlu0 %1194
    %v1196 = vsel %vm683, %v1185, %v1187
    %v1197 = vsel %vm683, %v1187, %v1189
    %v1198 = vsel %vm683, %v1191, %v1193
    %v1199 = vsel %vm683, %v1193, %v1195
    %v1206 = vadd.f32 %v1124, %v1196
    %v1207 = vadd.f32 %v1125, %v1197
    %v1208 = vadd.f32 %v1126, %v1189
    %v1209 = vadd.f32 %v1127, %v1198
    %v1210 = vadd.f32 %v1128, %v1199
    %v1211 = vadd.f32 %v1129, %v1195
    %1218 = vrot.lane.b32.xlu0 %v1172, 32
    %v1219 = vpop.permute.xlu0 %1218
    %1220 = vrot.lane.b32.xlu0 %v1173, 32
    %v1221 = vpop.permute.xlu0 %1220
    %1222 = vrot.lane.b32.xlu0 %v1174, 32
    %v1223 = vpop.permute.xlu0 %1222
    %1224 = vrot.lane.b32.xlu0 %v1175, 32
    %v1225 = vpop.permute.xlu0 %1224
    %1226 = vrot.lane.b32.xlu0 %v1176, 32
    %v1227 = vpop.permute.xlu0 %1226
    %1228 = vrot.lane.b32.xlu0 %v1177, 32
    %v1229 = vpop.permute.xlu0 %1228
    %v1230 = vsel %vm683, %v1219, %v1221
    %v1231 = vsel %vm683, %v1221, %v1223
    %v1232 = vsel %vm683, %v1225, %v1227
    %v1233 = vsel %vm683, %v1227, %v1229
    %v1240 = vadd.f32 %v1158, %v1230
    %v1241 = vadd.f32 %v1159, %v1231
    %v1242 = vadd.f32 %v1160, %v1223
    %v1243 = vadd.f32 %v1161, %v1232
    %v1244 = vadd.f32 %v1162, %v1233
    %v1245 = vadd.f32 %v1163, %v1229
    %v1246 = vadd.f32 %v1206, %v1240
    %v1247 = vadd.f32 %v1207, %v1241
    %v1248 = vadd.f32 %v1208, %v1242
    %v1249 = vadd.f32 %v1209, %v1243
    %v1250 = vadd.f32 %v1210, %v1244
    %v1251 = vadd.f32 %v1211, %v1245
    %vm1252 = vcmp.ge.s32.totalorder %v264, 2
    %vm1253 = vcmp.ge.s32.totalorder %v265, 2
    %v1254 = vsel %vm1252, 1, 0
    %v1255 = vsel %vm1253, 1, 0
    %vm1256 = vcmp.eq.s32.totalorder %v1254, 1
    %vm1257 = vcmp.eq.s32.totalorder %v1255, 1
    %1264 = vrot.lane.b32.xlu0 %v1246, 127
    %v1265 = vpop.permute.xlu0 %1264
    %1266 = vrot.lane.b32.xlu0 %v1247, 127
    %v1267 = vpop.permute.xlu0 %1266
    %1268 = vrot.lane.b32.xlu0 %v1248, 127
    %v1269 = vpop.permute.xlu0 %1268
    %1270 = vrot.lane.b32.xlu0 %v1249, 127
    %v1271 = vpop.permute.xlu0 %1270
    %1272 = vrot.lane.b32.xlu0 %v1250, 127
    %v1273 = vpop.permute.xlu0 %1272
    %1274 = vrot.lane.b32.xlu0 %v1251, 127
    %v1275 = vpop.permute.xlu0 %1274
    %vm1276 = vcmask 1039360
    %v1277 = vsel %vm1276, %v1265, %v1267
    %v1278 = vsel %vm1276, %v1267, %v1269
    %v1279 = vsel %vm1276, %v1271, %v1273
    %v1280 = vsel %vm1276, %v1273, %v1275
    %v1285 = vsel %vm1256, %v1277, 0.0
    %v1286 = vsel %vm1257, %v1278, 0.0
    %v1287 = vsel %vm1256, %v1279, 0.0
    %v1288 = vsel %vm1257, %v1280, 0.0
    %v1289 = vadd.f32 %v736, %v1285
    %v1290 = vadd.f32 %v737, %v1286
    %v1291 = vadd.f32 %v738, %v1287
    %v1292 = vadd.f32 %v739, %v1288
    %v1293 = vstv %s164
    %v1294 = vmul.f32 %v1293, %v134
    %v1295 = vmul.f32 %v1293, %v126
    %v1296 = vmul.f32 %v1293, %v136
    %v1297 = vmul.f32 %v1293, %v135
    %v1298 = vmul.f32 %v1293, %v127
    %v1299 = vmul.f32 %v1293, %v137
    %v1300 = vstv %s213
    %v1301 = vmul.f32 %v1300, %v158
    %v1302 = vmul.f32 %v1300, %v150
    %v1303 = vmul.f32 %v1300, %v160
    %v1304 = vmul.f32 %v1300, %v159
    %v1305 = vmul.f32 %v1300, %v151
    %v1306 = vmul.f32 %v1300, %v161
    %v1307 = vstv %s171
    %v1308 = vmul.f32 %v1307, %v134
    %v1309 = vmul.f32 %v1307, %v126
    %v1310 = vmul.f32 %v1307, %v136
    %v1311 = vmul.f32 %v1307, %v135
    %v1312 = vmul.f32 %v1307, %v127
    %v1313 = vmul.f32 %v1307, %v137
    %v1314 = vstv %s220
    %v1315 = vmul.f32 %v1314, %v158
    %v1316 = vmul.f32 %v1314, %v150
    %v1317 = vmul.f32 %v1314, %v160
    %v1318 = vmul.f32 %v1314, %v159
    %v1319 = vmul.f32 %v1314, %v151
    %v1320 = vmul.f32 %v1314, %v161
    %1327 = vrot.lane.b32.xlu0 %v1308, 112
    %v1328 = vpop.permute.xlu0 %1327
    %1329 = vrot.lane.b32.xlu0 %v1309, 112
    %v1330 = vpop.permute.xlu0 %1329
    %1331 = vrot.lane.b32.xlu0 %v1310, 112
    %v1332 = vpop.permute.xlu0 %1331
    %1333 = vrot.lane.b32.xlu0 %v1311, 112
    %v1334 = vpop.permute.xlu0 %1333
    %1335 = vrot.lane.b32.xlu0 %v1312, 112
    %v1336 = vpop.permute.xlu0 %1335
    %1337 = vrot.lane.b32.xlu0 %v1313, 112
    %v1338 = vpop.permute.xlu0 %1337
    %v1339 = vsel %vm308, %v1328, %v1330
    %v1340 = vsel %vm308, %v1330, %v1332
    %v1341 = vsel %vm308, %v1334, %v1336
    %v1342 = vsel %vm308, %v1336, %v1338
    %v1349 = vadd.f32 %v1294, %v1339
    %v1350 = vadd.f32 %v1295, %v1340
    %v1351 = vadd.f32 %v1296, %v1332
    %v1352 = vadd.f32 %v1297, %v1341
    %v1353 = vadd.f32 %v1298, %v1342
    %v1354 = vadd.f32 %v1299, %v1338
    %1361 = vrot.lane.b32.xlu0 %v1315, 112
    %v1362 = vpop.permute.xlu0 %1361
    %1363 = vrot.lane.b32.xlu0 %v1316, 112
    %v1364 = vpop.permute.xlu0 %1363
    %1365 = vrot.lane.b32.xlu0 %v1317, 112
    %v1366 = vpop.permute.xlu0 %1365
    %1367 = vrot.lane.b32.xlu0 %v1318, 112
    %v1368 = vpop.permute.xlu0 %1367
    %1369 = vrot.lane.b32.xlu0 %v1319, 112
    %v1370 = vpop.permute.xlu0 %1369
    %1371 = vrot.lane.b32.xlu0 %v1320, 112
    %v1372 = vpop.permute.xlu0 %1371
    %v1373 = vsel %vm308, %v1362, %v1364
    %v1374 = vsel %vm308, %v1364, %v1366
    %v1375 = vsel %vm308, %v1368, %v1370
    %v1376 = vsel %vm308, %v1370, %v1372
    %v1383 = vadd.f32 %v1301, %v1373
    %v1384 = vadd.f32 %v1302, %v1374
    %v1385 = vadd.f32 %v1303, %v1366
    %v1386 = vadd.f32 %v1304, %v1375
    %v1387 = vadd.f32 %v1305, %v1376
    %v1388 = vadd.f32 %v1306, %v1372
    %v1389 = vstv %s178
    %v1390 = vmul.f32 %v1389, %v134
    %v1391 = vmul.f32 %v1389, %v126
    %v1392 = vmul.f32 %v1389, %v136
    %v1393 = vmul.f32 %v1389, %v135
    %v1394 = vmul.f32 %v1389, %v127
    %v1395 = vmul.f32 %v1389, %v137
    %v1396 = vstv %s227
    %v1397 = vmul.f32 %v1396, %v158
    %v1398 = vmul.f32 %v1396, %v150
    %v1399 = vmul.f32 %v1396, %v160
    %v1400 = vmul.f32 %v1396, %v159
    %v1401 = vmul.f32 %v1396, %v151
    %v1402 = vmul.f32 %v1396, %v161
    %1409 = vrot.lane.b32.xlu0 %v1390, 96
    %v1410 = vpop.permute.xlu0 %1409
    %1411 = vrot.lane.b32.xlu0 %v1391, 96
    %v1412 = vpop.permute.xlu0 %1411
    %1413 = vrot.lane.b32.xlu0 %v1392, 96
    %v1414 = vpop.permute.xlu0 %1413
    %1415 = vrot.lane.b32.xlu0 %v1393, 96
    %v1416 = vpop.permute.xlu0 %1415
    %1417 = vrot.lane.b32.xlu0 %v1394, 96
    %v1418 = vpop.permute.xlu0 %1417
    %1419 = vrot.lane.b32.xlu0 %v1395, 96
    %v1420 = vpop.permute.xlu0 %1419
    %v1421 = vsel %vm383, %v1410, %v1412
    %v1422 = vsel %vm383, %v1412, %v1414
    %v1423 = vsel %vm383, %v1416, %v1418
    %v1424 = vsel %vm383, %v1418, %v1420
    %v1431 = vadd.f32 %v1349, %v1421
    %v1432 = vadd.f32 %v1350, %v1422
    %v1433 = vadd.f32 %v1351, %v1414
    %v1434 = vadd.f32 %v1352, %v1423
    %v1435 = vadd.f32 %v1353, %v1424
    %v1436 = vadd.f32 %v1354, %v1420
    %1443 = vrot.lane.b32.xlu0 %v1397, 96
    %v1444 = vpop.permute.xlu0 %1443
    %1445 = vrot.lane.b32.xlu0 %v1398, 96
    %v1446 = vpop.permute.xlu0 %1445
    %1447 = vrot.lane.b32.xlu0 %v1399, 96
    %v1448 = vpop.permute.xlu0 %1447
    %1449 = vrot.lane.b32.xlu0 %v1400, 96
    %v1450 = vpop.permute.xlu0 %1449
    %1451 = vrot.lane.b32.xlu0 %v1401, 96
    %v1452 = vpop.permute.xlu0 %1451
    %1453 = vrot.lane.b32.xlu0 %v1402, 96
    %v1454 = vpop.permute.xlu0 %1453
    %v1455 = vsel %vm383, %v1444, %v1446
    %v1456 = vsel %vm383, %v1446, %v1448
    %v1457 = vsel %vm383, %v1450, %v1452
    %v1458 = vsel %vm383, %v1452, %v1454
    %v1465 = vadd.f32 %v1383, %v1455
    %v1466 = vadd.f32 %v1384, %v1456
    %v1467 = vadd.f32 %v1385, %v1448
    %v1468 = vadd.f32 %v1386, %v1457
    %v1469 = vadd.f32 %v1387, %v1458
    %v1470 = vadd.f32 %v1388, %v1454
    %v1471 = vstv %s185
    %v1472 = vmul.f32 %v1471, %v134
    %v1473 = vmul.f32 %v1471, %v126
    %v1474 = vmul.f32 %v1471, %v136
    %v1475 = vmul.f32 %v1471, %v135
    %v1476 = vmul.f32 %v1471, %v127
    %v1477 = vmul.f32 %v1471, %v137
    %v1478 = vstv %s234
    %v1479 = vmul.f32 %v1478, %v158
    %v1480 = vmul.f32 %v1478, %v150
    %v1481 = vmul.f32 %v1478, %v160
    %v1482 = vmul.f32 %v1478, %v159
    %v1483 = vmul.f32 %v1478, %v151
    %v1484 = vmul.f32 %v1478, %v161
    %1491 = vrot.lane.b32.xlu0 %v1472, 80
    %v1492 = vpop.permute.xlu0 %1491
    %1493 = vrot.lane.b32.xlu0 %v1473, 80
    %v1494 = vpop.permute.xlu0 %1493
    %1495 = vrot.lane.b32.xlu0 %v1474, 80
    %v1496 = vpop.permute.xlu0 %1495
    %1497 = vrot.lane.b32.xlu0 %v1475, 80
    %v1498 = vpop.permute.xlu0 %1497
    %1499 = vrot.lane.b32.xlu0 %v1476, 80
    %v1500 = vpop.permute.xlu0 %1499
    %1501 = vrot.lane.b32.xlu0 %v1477, 80
    %v1502 = vpop.permute.xlu0 %1501
    %v1503 = vsel %vm458, %v1492, %v1494
    %v1504 = vsel %vm458, %v1494, %v1496
    %v1505 = vsel %vm458, %v1498, %v1500
    %v1506 = vsel %vm458, %v1500, %v1502
    %v1513 = vadd.f32 %v1431, %v1503
    %v1514 = vadd.f32 %v1432, %v1504
    %v1515 = vadd.f32 %v1433, %v1496
    %v1516 = vadd.f32 %v1434, %v1505
    %v1517 = vadd.f32 %v1435, %v1506
    %v1518 = vadd.f32 %v1436, %v1502
    %1525 = vrot.lane.b32.xlu0 %v1479, 80
    %v1526 = vpop.permute.xlu0 %1525
    %1527 = vrot.lane.b32.xlu0 %v1480, 80
    %v1528 = vpop.permute.xlu0 %1527
    %1529 = vrot.lane.b32.xlu0 %v1481, 80
    %v1530 = vpop.permute.xlu0 %1529
    %1531 = vrot.lane.b32.xlu0 %v1482, 80
    %v1532 = vpop.permute.xlu0 %1531
    %1533 = vrot.lane.b32.xlu0 %v1483, 80
    %v1534 = vpop.permute.xlu0 %1533
    %1535 = vrot.lane.b32.xlu0 %v1484, 80
    %v1536 = vpop.permute.xlu0 %1535
    %v1537 = vsel %vm458, %v1526, %v1528
    %v1538 = vsel %vm458, %v1528, %v1530
    %v1539 = vsel %vm458, %v1532, %v1534
    %v1540 = vsel %vm458, %v1534, %v1536
    %v1547 = vadd.f32 %v1465, %v1537
    %v1548 = vadd.f32 %v1466, %v1538
    %v1549 = vadd.f32 %v1467, %v1530
    %v1550 = vadd.f32 %v1468, %v1539
    %v1551 = vadd.f32 %v1469, %v1540
    %v1552 = vadd.f32 %v1470, %v1536
    %v1553 = vstv %s192
    %v1554 = vmul.f32 %v1553, %v134
    %v1555 = vmul.f32 %v1553, %v126
    %v1556 = vmul.f32 %v1553, %v136
    %v1557 = vmul.f32 %v1553, %v135
    %v1558 = vmul.f32 %v1553, %v127
    %v1559 = vmul.f32 %v1553, %v137
    %v1560 = vstv %s241
    %v1561 = vmul.f32 %v1560, %v158
    %v1562 = vmul.f32 %v1560, %v150
    %v1563 = vmul.f32 %v1560, %v160
    %v1564 = vmul.f32 %v1560, %v159
    %v1565 = vmul.f32 %v1560, %v151
    %v1566 = vmul.f32 %v1560, %v161
    %1573 = vrot.lane.b32.xlu0 %v1554, 64
    %v1574 = vpop.permute.xlu0 %1573
    %1575 = vrot.lane.b32.xlu0 %v1555, 64
    %v1576 = vpop.permute.xlu0 %1575
    %1577 = vrot.lane.b32.xlu0 %v1556, 64
    %v1578 = vpop.permute.xlu0 %1577
    %1579 = vrot.lane.b32.xlu0 %v1557, 64
    %v1580 = vpop.permute.xlu0 %1579
    %1581 = vrot.lane.b32.xlu0 %v1558, 64
    %v1582 = vpop.permute.xlu0 %1581
    %1583 = vrot.lane.b32.xlu0 %v1559, 64
    %v1584 = vpop.permute.xlu0 %1583
    %v1585 = vsel %vm533, %v1574, %v1576
    %v1586 = vsel %vm533, %v1576, %v1578
    %v1587 = vsel %vm533, %v1580, %v1582
    %v1588 = vsel %vm533, %v1582, %v1584
    %v1595 = vadd.f32 %v1513, %v1585
    %v1596 = vadd.f32 %v1514, %v1586
    %v1597 = vadd.f32 %v1515, %v1578
    %v1598 = vadd.f32 %v1516, %v1587
    %v1599 = vadd.f32 %v1517, %v1588
    %v1600 = vadd.f32 %v1518, %v1584
    %1607 = vrot.lane.b32.xlu0 %v1561, 64
    %v1608 = vpop.permute.xlu0 %1607
    %1609 = vrot.lane.b32.xlu0 %v1562, 64
    %v1610 = vpop.permute.xlu0 %1609
    %1611 = vrot.lane.b32.xlu0 %v1563, 64
    %v1612 = vpop.permute.xlu0 %1611
    %1613 = vrot.lane.b32.xlu0 %v1564, 64
    %v1614 = vpop.permute.xlu0 %1613
    %1615 = vrot.lane.b32.xlu0 %v1565, 64
    %v1616 = vpop.permute.xlu0 %1615
    %1617 = vrot.lane.b32.xlu0 %v1566, 64
    %v1618 = vpop.permute.xlu0 %1617
    %v1619 = vsel %vm533, %v1608, %v1610
    %v1620 = vsel %vm533, %v1610, %v1612
    %v1621 = vsel %vm533, %v1614, %v1616
    %v1622 = vsel %vm533, %v1616, %v1618
    %v1629 = vadd.f32 %v1547, %v1619
    %v1630 = vadd.f32 %v1548, %v1620
    %v1631 = vadd.f32 %v1549, %v1612
    %v1632 = vadd.f32 %v1550, %v1621
    %v1633 = vadd.f32 %v1551, %v1622
    %v1634 = vadd.f32 %v1552, %v1618
    %v1635 = vstv %s199
    %v1636 = vmul.f32 %v1635, %v134
    %v1637 = vmul.f32 %v1635, %v126
    %v1638 = vmul.f32 %v1635, %v136
    %v1639 = vmul.f32 %v1635, %v135
    %v1640 = vmul.f32 %v1635, %v127
    %v1641 = vmul.f32 %v1635, %v137
    %v1642 = vstv %s248
    %v1643 = vmul.f32 %v1642, %v158
    %v1644 = vmul.f32 %v1642, %v150
    %v1645 = vmul.f32 %v1642, %v160
    %v1646 = vmul.f32 %v1642, %v159
    %v1647 = vmul.f32 %v1642, %v151
    %v1648 = vmul.f32 %v1642, %v161
    %1655 = vrot.lane.b32.xlu0 %v1636, 48
    %v1656 = vpop.permute.xlu0 %1655
    %1657 = vrot.lane.b32.xlu0 %v1637, 48
    %v1658 = vpop.permute.xlu0 %1657
    %1659 = vrot.lane.b32.xlu0 %v1638, 48
    %v1660 = vpop.permute.xlu0 %1659
    %1661 = vrot.lane.b32.xlu0 %v1639, 48
    %v1662 = vpop.permute.xlu0 %1661
    %1663 = vrot.lane.b32.xlu0 %v1640, 48
    %v1664 = vpop.permute.xlu0 %1663
    %1665 = vrot.lane.b32.xlu0 %v1641, 48
    %v1666 = vpop.permute.xlu0 %1665
    %v1667 = vsel %vm608, %v1656, %v1658
    %v1668 = vsel %vm608, %v1658, %v1660
    %v1669 = vsel %vm608, %v1662, %v1664
    %v1670 = vsel %vm608, %v1664, %v1666
    %v1677 = vadd.f32 %v1595, %v1667
    %v1678 = vadd.f32 %v1596, %v1668
    %v1679 = vadd.f32 %v1597, %v1660
    %v1680 = vadd.f32 %v1598, %v1669
    %v1681 = vadd.f32 %v1599, %v1670
    %v1682 = vadd.f32 %v1600, %v1666
    %1689 = vrot.lane.b32.xlu0 %v1643, 48
    %v1690 = vpop.permute.xlu0 %1689
    %1691 = vrot.lane.b32.xlu0 %v1644, 48
    %v1692 = vpop.permute.xlu0 %1691
    %1693 = vrot.lane.b32.xlu0 %v1645, 48
    %v1694 = vpop.permute.xlu0 %1693
    %1695 = vrot.lane.b32.xlu0 %v1646, 48
    %v1696 = vpop.permute.xlu0 %1695
    %1697 = vrot.lane.b32.xlu0 %v1647, 48
    %v1698 = vpop.permute.xlu0 %1697
    %1699 = vrot.lane.b32.xlu0 %v1648, 48
    %v1700 = vpop.permute.xlu0 %1699
    %v1701 = vsel %vm608, %v1690, %v1692
    %v1702 = vsel %vm608, %v1692, %v1694
    %v1703 = vsel %vm608, %v1696, %v1698
    %v1704 = vsel %vm608, %v1698, %v1700
    %v1711 = vadd.f32 %v1629, %v1701
    %v1712 = vadd.f32 %v1630, %v1702
    %v1713 = vadd.f32 %v1631, %v1694
    %v1714 = vadd.f32 %v1632, %v1703
    %v1715 = vadd.f32 %v1633, %v1704
    %v1716 = vadd.f32 %v1634, %v1700
    %v1717 = vstv %s206
    %v1718 = vmul.f32 %v1717, %v134
    %v1719 = vmul.f32 %v1717, %v126
    %v1720 = vmul.f32 %v1717, %v136
    %v1721 = vmul.f32 %v1717, %v135
    %v1722 = vmul.f32 %v1717, %v127
    %v1723 = vmul.f32 %v1717, %v137
    %v1724 = vstv %s255
    %v1725 = vmul.f32 %v1724, %v158
    %v1726 = vmul.f32 %v1724, %v150
    %v1727 = vmul.f32 %v1724, %v160
    %v1728 = vmul.f32 %v1724, %v159
    %v1729 = vmul.f32 %v1724, %v151
    %v1730 = vmul.f32 %v1724, %v161
    %1737 = vrot.lane.b32.xlu0 %v1718, 32
    %v1738 = vpop.permute.xlu0 %1737
    %1739 = vrot.lane.b32.xlu0 %v1719, 32
    %v1740 = vpop.permute.xlu0 %1739
    %1741 = vrot.lane.b32.xlu0 %v1720, 32
    %v1742 = vpop.permute.xlu0 %1741
    %1743 = vrot.lane.b32.xlu0 %v1721, 32
    %v1744 = vpop.permute.xlu0 %1743
    %1745 = vrot.lane.b32.xlu0 %v1722, 32
    %v1746 = vpop.permute.xlu0 %1745
    %1747 = vrot.lane.b32.xlu0 %v1723, 32
    %v1748 = vpop.permute.xlu0 %1747
    %v1749 = vsel %vm683, %v1738, %v1740
    %v1750 = vsel %vm683, %v1740, %v1742
    %v1751 = vsel %vm683, %v1744, %v1746
    %v1752 = vsel %vm683, %v1746, %v1748
    %v1759 = vadd.f32 %v1677, %v1749
    %v1760 = vadd.f32 %v1678, %v1750
    %v1761 = vadd.f32 %v1679, %v1742
    %v1762 = vadd.f32 %v1680, %v1751
    %v1763 = vadd.f32 %v1681, %v1752
    %v1764 = vadd.f32 %v1682, %v1748
    %1771 = vrot.lane.b32.xlu0 %v1725, 32
    %v1772 = vpop.permute.xlu0 %1771
    %1773 = vrot.lane.b32.xlu0 %v1726, 32
    %v1774 = vpop.permute.xlu0 %1773
    %1775 = vrot.lane.b32.xlu0 %v1727, 32
    %v1776 = vpop.permute.xlu0 %1775
    %1777 = vrot.lane.b32.xlu0 %v1728, 32
    %v1778 = vpop.permute.xlu0 %1777
    %1779 = vrot.lane.b32.xlu0 %v1729, 32
    %v1780 = vpop.permute.xlu0 %1779
    %1781 = vrot.lane.b32.xlu0 %v1730, 32
    %v1782 = vpop.permute.xlu0 %1781
    %v1783 = vsel %vm683, %v1772, %v1774
    %v1784 = vsel %vm683, %v1774, %v1776
    %v1785 = vsel %vm683, %v1778, %v1780
    %v1786 = vsel %vm683, %v1780, %v1782
    %v1793 = vadd.f32 %v1711, %v1783
    %v1794 = vadd.f32 %v1712, %v1784
    %v1795 = vadd.f32 %v1713, %v1776
    %v1796 = vadd.f32 %v1714, %v1785
    %v1797 = vadd.f32 %v1715, %v1786
    %v1798 = vadd.f32 %v1716, %v1782
    %v1799 = vadd.f32 %v1759, %v1793
    %v1800 = vadd.f32 %v1760, %v1794
    %v1801 = vadd.f32 %v1761, %v1795
    %v1802 = vadd.f32 %v1762, %v1796
    %v1803 = vadd.f32 %v1763, %v1797
    %v1804 = vadd.f32 %v1764, %v1798
    %vm1805 = vcmp.ge.s32.totalorder %v264, 1
    %vm1806 = vcmp.ge.s32.totalorder %v265, 1
    %v1807 = vsel %vm1805, 1, 0
    %v1808 = vsel %vm1806, 1, 0
    %vm1809 = vcmp.eq.s32.totalorder %v1807, 1
    %vm1810 = vcmp.eq.s32.totalorder %v1808, 1
    %1817 = vrot.lane.b32.xlu0 %v1799, 126
    %v1818 = vpop.permute.xlu0 %1817
    %1819 = vrot.lane.b32.xlu0 %v1800, 126
    %v1820 = vpop.permute.xlu0 %1819
    %1821 = vrot.lane.b32.xlu0 %v1801, 126
    %v1822 = vpop.permute.xlu0 %1821
    %1823 = vrot.lane.b32.xlu0 %v1802, 126
    %v1824 = vpop.permute.xlu0 %1823
    %1825 = vrot.lane.b32.xlu0 %v1803, 126
    %v1826 = vpop.permute.xlu0 %1825
    %1827 = vrot.lane.b32.xlu0 %v1804, 126
    %v1828 = vpop.permute.xlu0 %1827
    %vm1829 = vcmask 1031168
    %v1830 = vsel %vm1829, %v1818, %v1820
    %v1831 = vsel %vm1829, %v1820, %v1822
    %v1832 = vsel %vm1829, %v1824, %v1826
    %v1833 = vsel %vm1829, %v1826, %v1828
    %v1838 = vsel %vm1809, %v1830, 0.0
    %v1839 = vsel %vm1810, %v1831, 0.0
    %v1840 = vsel %vm1809, %v1832, 0.0
    %v1841 = vsel %vm1810, %v1833, 0.0
    %v1842 = vadd.f32 %v1289, %v1838
    %v1843 = vadd.f32 %v1290, %v1839
    %v1844 = vadd.f32 %v1291, %v1840
    %v1845 = vadd.f32 %v1292, %v1841
    %v1846 = vstv %s165
    %v1847 = vmul.f32 %v1846, %v134
    %v1848 = vmul.f32 %v1846, %v126
    %v1849 = vmul.f32 %v1846, %v136
    %v1850 = vmul.f32 %v1846, %v135
    %v1851 = vmul.f32 %v1846, %v127
    %v1852 = vmul.f32 %v1846, %v137
    %v1853 = vstv %s214
    %v1854 = vmul.f32 %v1853, %v158
    %v1855 = vmul.f32 %v1853, %v150
    %v1856 = vmul.f32 %v1853, %v160
    %v1857 = vmul.f32 %v1853, %v159
    %v1858 = vmul.f32 %v1853, %v151
    %v1859 = vmul.f32 %v1853, %v161
    %v1860 = vstv %s172
    %v1861 = vmul.f32 %v1860, %v134
    %v1862 = vmul.f32 %v1860, %v126
    %v1863 = vmul.f32 %v1860, %v136
    %v1864 = vmul.f32 %v1860, %v135
    %v1865 = vmul.f32 %v1860, %v127
    %v1866 = vmul.f32 %v1860, %v137
    %v1867 = vstv %s221
    %v1868 = vmul.f32 %v1867, %v158
    %v1869 = vmul.f32 %v1867, %v150
    %v1870 = vmul.f32 %v1867, %v160
    %v1871 = vmul.f32 %v1867, %v159
    %v1872 = vmul.f32 %v1867, %v151
    %v1873 = vmul.f32 %v1867, %v161
    %1880 = vrot.lane.b32.xlu0 %v1861, 112
    %v1881 = vpop.permute.xlu0 %1880
    %1882 = vrot.lane.b32.xlu0 %v1862, 112
    %v1883 = vpop.permute.xlu0 %1882
    %1884 = vrot.lane.b32.xlu0 %v1863, 112
    %v1885 = vpop.permute.xlu0 %1884
    %1886 = vrot.lane.b32.xlu0 %v1864, 112
    %v1887 = vpop.permute.xlu0 %1886
    %1888 = vrot.lane.b32.xlu0 %v1865, 112
    %v1889 = vpop.permute.xlu0 %1888
    %1890 = vrot.lane.b32.xlu0 %v1866, 112
    %v1891 = vpop.permute.xlu0 %1890
    %v1892 = vsel %vm308, %v1881, %v1883
    %v1893 = vsel %vm308, %v1883, %v1885
    %v1894 = vsel %vm308, %v1887, %v1889
    %v1895 = vsel %vm308, %v1889, %v1891
    %v1902 = vadd.f32 %v1847, %v1892
    %v1903 = vadd.f32 %v1848, %v1893
    %v1904 = vadd.f32 %v1849, %v1885
    %v1905 = vadd.f32 %v1850, %v1894
    %v1906 = vadd.f32 %v1851, %v1895
    %v1907 = vadd.f32 %v1852, %v1891
    %1914 = vrot.lane.b32.xlu0 %v1868, 112
    %v1915 = vpop.permute.xlu0 %1914
    %1916 = vrot.lane.b32.xlu0 %v1869, 112
    %v1917 = vpop.permute.xlu0 %1916
    %1918 = vrot.lane.b32.xlu0 %v1870, 112
    %v1919 = vpop.permute.xlu0 %1918
    %1920 = vrot.lane.b32.xlu0 %v1871, 112
    %v1921 = vpop.permute.xlu0 %1920
    %1922 = vrot.lane.b32.xlu0 %v1872, 112
    %v1923 = vpop.permute.xlu0 %1922
    %1924 = vrot.lane.b32.xlu0 %v1873, 112
    %v1925 = vpop.permute.xlu0 %1924
    %v1926 = vsel %vm308, %v1915, %v1917
    %v1927 = vsel %vm308, %v1917, %v1919
    %v1928 = vsel %vm308, %v1921, %v1923
    %v1929 = vsel %vm308, %v1923, %v1925
    %v1936 = vadd.f32 %v1854, %v1926
    %v1937 = vadd.f32 %v1855, %v1927
    %v1938 = vadd.f32 %v1856, %v1919
    %v1939 = vadd.f32 %v1857, %v1928
    %v1940 = vadd.f32 %v1858, %v1929
    %v1941 = vadd.f32 %v1859, %v1925
    %v1942 = vstv %s179
    %v1943 = vmul.f32 %v1942, %v134
    %v1944 = vmul.f32 %v1942, %v126
    %v1945 = vmul.f32 %v1942, %v136
    %v1946 = vmul.f32 %v1942, %v135
    %v1947 = vmul.f32 %v1942, %v127
    %v1948 = vmul.f32 %v1942, %v137
    %v1949 = vstv %s228
    %v1950 = vmul.f32 %v1949, %v158
    %v1951 = vmul.f32 %v1949, %v150
    %v1952 = vmul.f32 %v1949, %v160
    %v1953 = vmul.f32 %v1949, %v159
    %v1954 = vmul.f32 %v1949, %v151
    %v1955 = vmul.f32 %v1949, %v161
    %1962 = vrot.lane.b32.xlu0 %v1943, 96
    %v1963 = vpop.permute.xlu0 %1962
    %1964 = vrot.lane.b32.xlu0 %v1944, 96
    %v1965 = vpop.permute.xlu0 %1964
    %1966 = vrot.lane.b32.xlu0 %v1945, 96
    %v1967 = vpop.permute.xlu0 %1966
    %1968 = vrot.lane.b32.xlu0 %v1946, 96
    %v1969 = vpop.permute.xlu0 %1968
    %1970 = vrot.lane.b32.xlu0 %v1947, 96
    %v1971 = vpop.permute.xlu0 %1970
    %1972 = vrot.lane.b32.xlu0 %v1948, 96
    %v1973 = vpop.permute.xlu0 %1972
    %v1974 = vsel %vm383, %v1963, %v1965
    %v1975 = vsel %vm383, %v1965, %v1967
    %v1976 = vsel %vm383, %v1969, %v1971
    %v1977 = vsel %vm383, %v1971, %v1973
    %v1984 = vadd.f32 %v1902, %v1974
    %v1985 = vadd.f32 %v1903, %v1975
    %v1986 = vadd.f32 %v1904, %v1967
    %v1987 = vadd.f32 %v1905, %v1976
    %v1988 = vadd.f32 %v1906, %v1977
    %v1989 = vadd.f32 %v1907, %v1973
    %1996 = vrot.lane.b32.xlu0 %v1950, 96
    %v1997 = vpop.permute.xlu0 %1996
    %1998 = vrot.lane.b32.xlu0 %v1951, 96
    %v1999 = vpop.permute.xlu0 %1998
    %2000 = vrot.lane.b32.xlu0 %v1952, 96
    %v2001 = vpop.permute.xlu0 %2000
    %2002 = vrot.lane.b32.xlu0 %v1953, 96
    %v2003 = vpop.permute.xlu0 %2002
    %2004 = vrot.lane.b32.xlu0 %v1954, 96
    %v2005 = vpop.permute.xlu0 %2004
    %2006 = vrot.lane.b32.xlu0 %v1955, 96
    %v2007 = vpop.permute.xlu0 %2006
    %v2008 = vsel %vm383, %v1997, %v1999
    %v2009 = vsel %vm383, %v1999, %v2001
    %v2010 = vsel %vm383, %v2003, %v2005
    %v2011 = vsel %vm383, %v2005, %v2007
    %v2018 = vadd.f32 %v1936, %v2008
    %v2019 = vadd.f32 %v1937, %v2009
    %v2020 = vadd.f32 %v1938, %v2001
    %v2021 = vadd.f32 %v1939, %v2010
    %v2022 = vadd.f32 %v1940, %v2011
    %v2023 = vadd.f32 %v1941, %v2007
    %v2024 = vstv %s186
    %v2025 = vmul.f32 %v2024, %v134
    %v2026 = vmul.f32 %v2024, %v126
    %v2027 = vmul.f32 %v2024, %v136
    %v2028 = vmul.f32 %v2024, %v135
    %v2029 = vmul.f32 %v2024, %v127
    %v2030 = vmul.f32 %v2024, %v137
    %v2031 = vstv %s235
    %v2032 = vmul.f32 %v2031, %v158
    %v2033 = vmul.f32 %v2031, %v150
    %v2034 = vmul.f32 %v2031, %v160
    %v2035 = vmul.f32 %v2031, %v159
    %v2036 = vmul.f32 %v2031, %v151
    %v2037 = vmul.f32 %v2031, %v161
    %2044 = vrot.lane.b32.xlu0 %v2025, 80
    %v2045 = vpop.permute.xlu0 %2044
    %2046 = vrot.lane.b32.xlu0 %v2026, 80
    %v2047 = vpop.permute.xlu0 %2046
    %2048 = vrot.lane.b32.xlu0 %v2027, 80
    %v2049 = vpop.permute.xlu0 %2048
    %2050 = vrot.lane.b32.xlu0 %v2028, 80
    %v2051 = vpop.permute.xlu0 %2050
    %2052 = vrot.lane.b32.xlu0 %v2029, 80
    %v2053 = vpop.permute.xlu0 %2052
    %2054 = vrot.lane.b32.xlu0 %v2030, 80
    %v2055 = vpop.permute.xlu0 %2054
    %v2056 = vsel %vm458, %v2045, %v2047
    %v2057 = vsel %vm458, %v2047, %v2049
    %v2058 = vsel %vm458, %v2051, %v2053
    %v2059 = vsel %vm458, %v2053, %v2055
    %v2066 = vadd.f32 %v1984, %v2056
    %v2067 = vadd.f32 %v1985, %v2057
    %v2068 = vadd.f32 %v1986, %v2049
    %v2069 = vadd.f32 %v1987, %v2058
    %v2070 = vadd.f32 %v1988, %v2059
    %v2071 = vadd.f32 %v1989, %v2055
    %2078 = vrot.lane.b32.xlu0 %v2032, 80
    %v2079 = vpop.permute.xlu0 %2078
    %2080 = vrot.lane.b32.xlu0 %v2033, 80
    %v2081 = vpop.permute.xlu0 %2080
    %2082 = vrot.lane.b32.xlu0 %v2034, 80
    %v2083 = vpop.permute.xlu0 %2082
    %2084 = vrot.lane.b32.xlu0 %v2035, 80
    %v2085 = vpop.permute.xlu0 %2084
    %2086 = vrot.lane.b32.xlu0 %v2036, 80
    %v2087 = vpop.permute.xlu0 %2086
    %2088 = vrot.lane.b32.xlu0 %v2037, 80
    %v2089 = vpop.permute.xlu0 %2088
    %v2090 = vsel %vm458, %v2079, %v2081
    %v2091 = vsel %vm458, %v2081, %v2083
    %v2092 = vsel %vm458, %v2085, %v2087
    %v2093 = vsel %vm458, %v2087, %v2089
    %v2100 = vadd.f32 %v2018, %v2090
    %v2101 = vadd.f32 %v2019, %v2091
    %v2102 = vadd.f32 %v2020, %v2083
    %v2103 = vadd.f32 %v2021, %v2092
    %v2104 = vadd.f32 %v2022, %v2093
    %v2105 = vadd.f32 %v2023, %v2089
    %v2106 = vstv %s193
    %v2107 = vmul.f32 %v2106, %v134
    %v2108 = vmul.f32 %v2106, %v126
    %v2109 = vmul.f32 %v2106, %v136
    %v2110 = vmul.f32 %v2106, %v135
    %v2111 = vmul.f32 %v2106, %v127
    %v2112 = vmul.f32 %v2106, %v137
    %v2113 = vstv %s242
    %v2114 = vmul.f32 %v2113, %v158
    %v2115 = vmul.f32 %v2113, %v150
    %v2116 = vmul.f32 %v2113, %v160
    %v2117 = vmul.f32 %v2113, %v159
    %v2118 = vmul.f32 %v2113, %v151
    %v2119 = vmul.f32 %v2113, %v161
    %2126 = vrot.lane.b32.xlu0 %v2107, 64
    %v2127 = vpop.permute.xlu0 %2126
    %2128 = vrot.lane.b32.xlu0 %v2108, 64
    %v2129 = vpop.permute.xlu0 %2128
    %2130 = vrot.lane.b32.xlu0 %v2109, 64
    %v2131 = vpop.permute.xlu0 %2130
    %2132 = vrot.lane.b32.xlu0 %v2110, 64
    %v2133 = vpop.permute.xlu0 %2132
    %2134 = vrot.lane.b32.xlu0 %v2111, 64
    %v2135 = vpop.permute.xlu0 %2134
    %2136 = vrot.lane.b32.xlu0 %v2112, 64
    %v2137 = vpop.permute.xlu0 %2136
    %v2138 = vsel %vm533, %v2127, %v2129
    %v2139 = vsel %vm533, %v2129, %v2131
    %v2140 = vsel %vm533, %v2133, %v2135
    %v2141 = vsel %vm533, %v2135, %v2137
    %v2148 = vadd.f32 %v2066, %v2138
    %v2149 = vadd.f32 %v2067, %v2139
    %v2150 = vadd.f32 %v2068, %v2131
    %v2151 = vadd.f32 %v2069, %v2140
    %v2152 = vadd.f32 %v2070, %v2141
    %v2153 = vadd.f32 %v2071, %v2137
    %2160 = vrot.lane.b32.xlu0 %v2114, 64
    %v2161 = vpop.permute.xlu0 %2160
    %2162 = vrot.lane.b32.xlu0 %v2115, 64
    %v2163 = vpop.permute.xlu0 %2162
    %2164 = vrot.lane.b32.xlu0 %v2116, 64
    %v2165 = vpop.permute.xlu0 %2164
    %2166 = vrot.lane.b32.xlu0 %v2117, 64
    %v2167 = vpop.permute.xlu0 %2166
    %2168 = vrot.lane.b32.xlu0 %v2118, 64
    %v2169 = vpop.permute.xlu0 %2168
    %2170 = vrot.lane.b32.xlu0 %v2119, 64
    %v2171 = vpop.permute.xlu0 %2170
    %v2172 = vsel %vm533, %v2161, %v2163
    %v2173 = vsel %vm533, %v2163, %v2165
    %v2174 = vsel %vm533, %v2167, %v2169
    %v2175 = vsel %vm533, %v2169, %v2171
    %v2182 = vadd.f32 %v2100, %v2172
    %v2183 = vadd.f32 %v2101, %v2173
    %v2184 = vadd.f32 %v2102, %v2165
    %v2185 = vadd.f32 %v2103, %v2174
    %v2186 = vadd.f32 %v2104, %v2175
    %v2187 = vadd.f32 %v2105, %v2171
    %v2188 = vstv %s200
    %v2189 = vmul.f32 %v2188, %v134
    %v2190 = vmul.f32 %v2188, %v126
    %v2191 = vmul.f32 %v2188, %v136
    %v2192 = vmul.f32 %v2188, %v135
    %v2193 = vmul.f32 %v2188, %v127
    %v2194 = vmul.f32 %v2188, %v137
    %v2195 = vstv %s249
    %v2196 = vmul.f32 %v2195, %v158
    %v2197 = vmul.f32 %v2195, %v150
    %v2198 = vmul.f32 %v2195, %v160
    %v2199 = vmul.f32 %v2195, %v159
    %v2200 = vmul.f32 %v2195, %v151
    %v2201 = vmul.f32 %v2195, %v161
    %2208 = vrot.lane.b32.xlu0 %v2189, 48
    %v2209 = vpop.permute.xlu0 %2208
    %2210 = vrot.lane.b32.xlu0 %v2190, 48
    %v2211 = vpop.permute.xlu0 %2210
    %2212 = vrot.lane.b32.xlu0 %v2191, 48
    %v2213 = vpop.permute.xlu0 %2212
    %2214 = vrot.lane.b32.xlu0 %v2192, 48
    %v2215 = vpop.permute.xlu0 %2214
    %2216 = vrot.lane.b32.xlu0 %v2193, 48
    %v2217 = vpop.permute.xlu0 %2216
    %2218 = vrot.lane.b32.xlu0 %v2194, 48
    %v2219 = vpop.permute.xlu0 %2218
    %v2220 = vsel %vm608, %v2209, %v2211
    %v2221 = vsel %vm608, %v2211, %v2213
    %v2222 = vsel %vm608, %v2215, %v2217
    %v2223 = vsel %vm608, %v2217, %v2219
    %v2230 = vadd.f32 %v2148, %v2220
    %v2231 = vadd.f32 %v2149, %v2221
    %v2232 = vadd.f32 %v2150, %v2213
    %v2233 = vadd.f32 %v2151, %v2222
    %v2234 = vadd.f32 %v2152, %v2223
    %v2235 = vadd.f32 %v2153, %v2219
    %2242 = vrot.lane.b32.xlu0 %v2196, 48
    %v2243 = vpop.permute.xlu0 %2242
    %2244 = vrot.lane.b32.xlu0 %v2197, 48
    %v2245 = vpop.permute.xlu0 %2244
    %2246 = vrot.lane.b32.xlu0 %v2198, 48
    %v2247 = vpop.permute.xlu0 %2246
    %2248 = vrot.lane.b32.xlu0 %v2199, 48
    %v2249 = vpop.permute.xlu0 %2248
    %2250 = vrot.lane.b32.xlu0 %v2200, 48
    %v2251 = vpop.permute.xlu0 %2250
    %2252 = vrot.lane.b32.xlu0 %v2201, 48
    %v2253 = vpop.permute.xlu0 %2252
    %v2254 = vsel %vm608, %v2243, %v2245
    %v2255 = vsel %vm608, %v2245, %v2247
    %v2256 = vsel %vm608, %v2249, %v2251
    %v2257 = vsel %vm608, %v2251, %v2253
    %v2264 = vadd.f32 %v2182, %v2254
    %v2265 = vadd.f32 %v2183, %v2255
    %v2266 = vadd.f32 %v2184, %v2247
    %v2267 = vadd.f32 %v2185, %v2256
    %v2268 = vadd.f32 %v2186, %v2257
    %v2269 = vadd.f32 %v2187, %v2253
    %v2270 = vstv %s207
    %v2271 = vmul.f32 %v2270, %v134
    %v2272 = vmul.f32 %v2270, %v126
    %v2273 = vmul.f32 %v2270, %v136
    %v2274 = vmul.f32 %v2270, %v135
    %v2275 = vmul.f32 %v2270, %v127
    %v2276 = vmul.f32 %v2270, %v137
    %v2277 = vstv %s256
    %v2278 = vmul.f32 %v2277, %v158
    %v2279 = vmul.f32 %v2277, %v150
    %v2280 = vmul.f32 %v2277, %v160
    %v2281 = vmul.f32 %v2277, %v159
    %v2282 = vmul.f32 %v2277, %v151
    %v2283 = vmul.f32 %v2277, %v161
    %2290 = vrot.lane.b32.xlu0 %v2271, 32
    %v2291 = vpop.permute.xlu0 %2290
    %2292 = vrot.lane.b32.xlu0 %v2272, 32
    %v2293 = vpop.permute.xlu0 %2292
    %2294 = vrot.lane.b32.xlu0 %v2273, 32
    %v2295 = vpop.permute.xlu0 %2294
    %2296 = vrot.lane.b32.xlu0 %v2274, 32
    %v2297 = vpop.permute.xlu0 %2296
    %2298 = vrot.lane.b32.xlu0 %v2275, 32
    %v2299 = vpop.permute.xlu0 %2298
    %2300 = vrot.lane.b32.xlu0 %v2276, 32
    %v2301 = vpop.permute.xlu0 %2300
    %v2302 = vsel %vm683, %v2291, %v2293
    %v2303 = vsel %vm683, %v2293, %v2295
    %v2304 = vsel %vm683, %v2297, %v2299
    %v2305 = vsel %vm683, %v2299, %v2301
    %v2312 = vadd.f32 %v2230, %v2302
    %v2313 = vadd.f32 %v2231, %v2303
    %v2314 = vadd.f32 %v2232, %v2295
    %v2315 = vadd.f32 %v2233, %v2304
    %v2316 = vadd.f32 %v2234, %v2305
    %v2317 = vadd.f32 %v2235, %v2301
    %2324 = vrot.lane.b32.xlu0 %v2278, 32
    %v2325 = vpop.permute.xlu0 %2324
    %2326 = vrot.lane.b32.xlu0 %v2279, 32
    %v2327 = vpop.permute.xlu0 %2326
    %2328 = vrot.lane.b32.xlu0 %v2280, 32
    %v2329 = vpop.permute.xlu0 %2328
    %2330 = vrot.lane.b32.xlu0 %v2281, 32
    %v2331 = vpop.permute.xlu0 %2330
    %2332 = vrot.lane.b32.xlu0 %v2282, 32
    %v2333 = vpop.permute.xlu0 %2332
    %2334 = vrot.lane.b32.xlu0 %v2283, 32
    %v2335 = vpop.permute.xlu0 %2334
    %v2336 = vsel %vm683, %v2325, %v2327
    %v2337 = vsel %vm683, %v2327, %v2329
    %v2338 = vsel %vm683, %v2331, %v2333
    %v2339 = vsel %vm683, %v2333, %v2335
    %v2346 = vadd.f32 %v2264, %v2336
    %v2347 = vadd.f32 %v2265, %v2337
    %v2348 = vadd.f32 %v2266, %v2329
    %v2349 = vadd.f32 %v2267, %v2338
    %v2350 = vadd.f32 %v2268, %v2339
    %v2351 = vadd.f32 %v2269, %v2335
    %v2352 = vadd.f32 %v2312, %v2346
    %v2353 = vadd.f32 %v2313, %v2347
    %v2354 = vadd.f32 %v2314, %v2348
    %v2355 = vadd.f32 %v2315, %v2349
    %v2356 = vadd.f32 %v2316, %v2350
    %v2357 = vadd.f32 %v2317, %v2351
    %2364 = vrot.lane.b32.xlu0 %v2352, 125
    %v2365 = vpop.permute.xlu0 %2364
    %2366 = vrot.lane.b32.xlu0 %v2353, 125
    %v2367 = vpop.permute.xlu0 %2366
    %2368 = vrot.lane.b32.xlu0 %v2354, 125
    %v2369 = vpop.permute.xlu0 %2368
    %2370 = vrot.lane.b32.xlu0 %v2355, 125
    %v2371 = vpop.permute.xlu0 %2370
    %2372 = vrot.lane.b32.xlu0 %v2356, 125
    %v2373 = vpop.permute.xlu0 %2372
    %2374 = vrot.lane.b32.xlu0 %v2357, 125
    %v2375 = vpop.permute.xlu0 %2374
    %vm2376 = vcmask 1022976
    %v2377 = vsel %vm2376, %v2365, %v2367
    %v2378 = vsel %vm2376, %v2367, %v2369
    %v2379 = vsel %vm2376, %v2371, %v2373
    %v2380 = vsel %vm2376, %v2373, %v2375
    %v2385 = vadd.f32 %v1842, %v2377
    %v2386 = vadd.f32 %v1843, %v2378
    %v2387 = vadd.f32 %v1844, %v2379
    %v2388 = vadd.f32 %v1845, %v2380
    %v2389 = vstv %s166
    %v2390 = vmul.f32 %v2389, %v134
    %v2391 = vmul.f32 %v2389, %v126
    %v2392 = vmul.f32 %v2389, %v136
    %v2393 = vmul.f32 %v2389, %v135
    %v2394 = vmul.f32 %v2389, %v127
    %v2395 = vmul.f32 %v2389, %v137
    %v2396 = vstv %s215
    %v2397 = vmul.f32 %v2396, %v158
    %v2398 = vmul.f32 %v2396, %v150
    %v2399 = vmul.f32 %v2396, %v160
    %v2400 = vmul.f32 %v2396, %v159
    %v2401 = vmul.f32 %v2396, %v151
    %v2402 = vmul.f32 %v2396, %v161
    %v2403 = vstv %s173
    %v2404 = vmul.f32 %v2403, %v134
    %v2405 = vmul.f32 %v2403, %v126
    %v2406 = vmul.f32 %v2403, %v136
    %v2407 = vmul.f32 %v2403, %v135
    %v2408 = vmul.f32 %v2403, %v127
    %v2409 = vmul.f32 %v2403, %v137
    %v2410 = vstv %s222
    %v2411 = vmul.f32 %v2410, %v158
    %v2412 = vmul.f32 %v2410, %v150
    %v2413 = vmul.f32 %v2410, %v160
    %v2414 = vmul.f32 %v2410, %v159
    %v2415 = vmul.f32 %v2410, %v151
    %v2416 = vmul.f32 %v2410, %v161
    %2423 = vrot.lane.b32.xlu0 %v2404, 112
    %v2424 = vpop.permute.xlu0 %2423
    %2425 = vrot.lane.b32.xlu0 %v2405, 112
    %v2426 = vpop.permute.xlu0 %2425
    %2427 = vrot.lane.b32.xlu0 %v2406, 112
    %v2428 = vpop.permute.xlu0 %2427
    %2429 = vrot.lane.b32.xlu0 %v2407, 112
    %v2430 = vpop.permute.xlu0 %2429
    %2431 = vrot.lane.b32.xlu0 %v2408, 112
    %v2432 = vpop.permute.xlu0 %2431
    %2433 = vrot.lane.b32.xlu0 %v2409, 112
    %v2434 = vpop.permute.xlu0 %2433
    %v2435 = vsel %vm308, %v2424, %v2426
    %v2436 = vsel %vm308, %v2426, %v2428
    %v2437 = vsel %vm308, %v2430, %v2432
    %v2438 = vsel %vm308, %v2432, %v2434
    %v2445 = vadd.f32 %v2390, %v2435
    %v2446 = vadd.f32 %v2391, %v2436
    %v2447 = vadd.f32 %v2392, %v2428
    %v2448 = vadd.f32 %v2393, %v2437
    %v2449 = vadd.f32 %v2394, %v2438
    %v2450 = vadd.f32 %v2395, %v2434
    %2457 = vrot.lane.b32.xlu0 %v2411, 112
    %v2458 = vpop.permute.xlu0 %2457
    %2459 = vrot.lane.b32.xlu0 %v2412, 112
    %v2460 = vpop.permute.xlu0 %2459
    %2461 = vrot.lane.b32.xlu0 %v2413, 112
    %v2462 = vpop.permute.xlu0 %2461
    %2463 = vrot.lane.b32.xlu0 %v2414, 112
    %v2464 = vpop.permute.xlu0 %2463
    %2465 = vrot.lane.b32.xlu0 %v2415, 112
    %v2466 = vpop.permute.xlu0 %2465
    %2467 = vrot.lane.b32.xlu0 %v2416, 112
    %v2468 = vpop.permute.xlu0 %2467
    %v2469 = vsel %vm308, %v2458, %v2460
    %v2470 = vsel %vm308, %v2460, %v2462
    %v2471 = vsel %vm308, %v2464, %v2466
    %v2472 = vsel %vm308, %v2466, %v2468
    %v2479 = vadd.f32 %v2397, %v2469
    %v2480 = vadd.f32 %v2398, %v2470
    %v2481 = vadd.f32 %v2399, %v2462
    %v2482 = vadd.f32 %v2400, %v2471
    %v2483 = vadd.f32 %v2401, %v2472
    %v2484 = vadd.f32 %v2402, %v2468
    %v2485 = vstv %s180
    %v2486 = vmul.f32 %v2485, %v134
    %v2487 = vmul.f32 %v2485, %v126
    %v2488 = vmul.f32 %v2485, %v136
    %v2489 = vmul.f32 %v2485, %v135
    %v2490 = vmul.f32 %v2485, %v127
    %v2491 = vmul.f32 %v2485, %v137
    %v2492 = vstv %s229
    %v2493 = vmul.f32 %v2492, %v158
    %v2494 = vmul.f32 %v2492, %v150
    %v2495 = vmul.f32 %v2492, %v160
    %v2496 = vmul.f32 %v2492, %v159
    %v2497 = vmul.f32 %v2492, %v151
    %v2498 = vmul.f32 %v2492, %v161
    %2505 = vrot.lane.b32.xlu0 %v2486, 96
    %v2506 = vpop.permute.xlu0 %2505
    %2507 = vrot.lane.b32.xlu0 %v2487, 96
    %v2508 = vpop.permute.xlu0 %2507
    %2509 = vrot.lane.b32.xlu0 %v2488, 96
    %v2510 = vpop.permute.xlu0 %2509
    %2511 = vrot.lane.b32.xlu0 %v2489, 96
    %v2512 = vpop.permute.xlu0 %2511
    %2513 = vrot.lane.b32.xlu0 %v2490, 96
    %v2514 = vpop.permute.xlu0 %2513
    %2515 = vrot.lane.b32.xlu0 %v2491, 96
    %v2516 = vpop.permute.xlu0 %2515
    %v2517 = vsel %vm383, %v2506, %v2508
    %v2518 = vsel %vm383, %v2508, %v2510
    %v2519 = vsel %vm383, %v2512, %v2514
    %v2520 = vsel %vm383, %v2514, %v2516
    %v2527 = vadd.f32 %v2445, %v2517
    %v2528 = vadd.f32 %v2446, %v2518
    %v2529 = vadd.f32 %v2447, %v2510
    %v2530 = vadd.f32 %v2448, %v2519
    %v2531 = vadd.f32 %v2449, %v2520
    %v2532 = vadd.f32 %v2450, %v2516
    %2539 = vrot.lane.b32.xlu0 %v2493, 96
    %v2540 = vpop.permute.xlu0 %2539
    %2541 = vrot.lane.b32.xlu0 %v2494, 96
    %v2542 = vpop.permute.xlu0 %2541
    %2543 = vrot.lane.b32.xlu0 %v2495, 96
    %v2544 = vpop.permute.xlu0 %2543
    %2545 = vrot.lane.b32.xlu0 %v2496, 96
    %v2546 = vpop.permute.xlu0 %2545
    %2547 = vrot.lane.b32.xlu0 %v2497, 96
    %v2548 = vpop.permute.xlu0 %2547
    %2549 = vrot.lane.b32.xlu0 %v2498, 96
    %v2550 = vpop.permute.xlu0 %2549
    %v2551 = vsel %vm383, %v2540, %v2542
    %v2552 = vsel %vm383, %v2542, %v2544
    %v2553 = vsel %vm383, %v2546, %v2548
    %v2554 = vsel %vm383, %v2548, %v2550
    %v2561 = vadd.f32 %v2479, %v2551
    %v2562 = vadd.f32 %v2480, %v2552
    %v2563 = vadd.f32 %v2481, %v2544
    %v2564 = vadd.f32 %v2482, %v2553
    %v2565 = vadd.f32 %v2483, %v2554
    %v2566 = vadd.f32 %v2484, %v2550
    %v2567 = vstv %s187
    %v2568 = vmul.f32 %v2567, %v134
    %v2569 = vmul.f32 %v2567, %v126
    %v2570 = vmul.f32 %v2567, %v136
    %v2571 = vmul.f32 %v2567, %v135
    %v2572 = vmul.f32 %v2567, %v127
    %v2573 = vmul.f32 %v2567, %v137
    %v2574 = vstv %s236
    %v2575 = vmul.f32 %v2574, %v158
    %v2576 = vmul.f32 %v2574, %v150
    %v2577 = vmul.f32 %v2574, %v160
    %v2578 = vmul.f32 %v2574, %v159
    %v2579 = vmul.f32 %v2574, %v151
    %v2580 = vmul.f32 %v2574, %v161
    %2587 = vrot.lane.b32.xlu0 %v2568, 80
    %v2588 = vpop.permute.xlu0 %2587
    %2589 = vrot.lane.b32.xlu0 %v2569, 80
    %v2590 = vpop.permute.xlu0 %2589
    %2591 = vrot.lane.b32.xlu0 %v2570, 80
    %v2592 = vpop.permute.xlu0 %2591
    %2593 = vrot.lane.b32.xlu0 %v2571, 80
    %v2594 = vpop.permute.xlu0 %2593
    %2595 = vrot.lane.b32.xlu0 %v2572, 80
    %v2596 = vpop.permute.xlu0 %2595
    %2597 = vrot.lane.b32.xlu0 %v2573, 80
    %v2598 = vpop.permute.xlu0 %2597
    %v2599 = vsel %vm458, %v2588, %v2590
    %v2600 = vsel %vm458, %v2590, %v2592
    %v2601 = vsel %vm458, %v2594, %v2596
    %v2602 = vsel %vm458, %v2596, %v2598
    %v2609 = vadd.f32 %v2527, %v2599
    %v2610 = vadd.f32 %v2528, %v2600
    %v2611 = vadd.f32 %v2529, %v2592
    %v2612 = vadd.f32 %v2530, %v2601
    %v2613 = vadd.f32 %v2531, %v2602
    %v2614 = vadd.f32 %v2532, %v2598
    %2621 = vrot.lane.b32.xlu0 %v2575, 80
    %v2622 = vpop.permute.xlu0 %2621
    %2623 = vrot.lane.b32.xlu0 %v2576, 80
    %v2624 = vpop.permute.xlu0 %2623
    %2625 = vrot.lane.b32.xlu0 %v2577, 80
    %v2626 = vpop.permute.xlu0 %2625
    %2627 = vrot.lane.b32.xlu0 %v2578, 80
    %v2628 = vpop.permute.xlu0 %2627
    %2629 = vrot.lane.b32.xlu0 %v2579, 80
    %v2630 = vpop.permute.xlu0 %2629
    %2631 = vrot.lane.b32.xlu0 %v2580, 80
    %v2632 = vpop.permute.xlu0 %2631
    %v2633 = vsel %vm458, %v2622, %v2624
    %v2634 = vsel %vm458, %v2624, %v2626
    %v2635 = vsel %vm458, %v2628, %v2630
    %v2636 = vsel %vm458, %v2630, %v2632
    %v2643 = vadd.f32 %v2561, %v2633
    %v2644 = vadd.f32 %v2562, %v2634
    %v2645 = vadd.f32 %v2563, %v2626
    %v2646 = vadd.f32 %v2564, %v2635
    %v2647 = vadd.f32 %v2565, %v2636
    %v2648 = vadd.f32 %v2566, %v2632
    %v2649 = vstv %s194
    %v2650 = vmul.f32 %v2649, %v134
    %v2651 = vmul.f32 %v2649, %v126
    %v2652 = vmul.f32 %v2649, %v136
    %v2653 = vmul.f32 %v2649, %v135
    %v2654 = vmul.f32 %v2649, %v127
    %v2655 = vmul.f32 %v2649, %v137
    %v2656 = vstv %s243
    %v2657 = vmul.f32 %v2656, %v158
    %v2658 = vmul.f32 %v2656, %v150
    %v2659 = vmul.f32 %v2656, %v160
    %v2660 = vmul.f32 %v2656, %v159
    %v2661 = vmul.f32 %v2656, %v151
    %v2662 = vmul.f32 %v2656, %v161
    %2669 = vrot.lane.b32.xlu0 %v2650, 64
    %v2670 = vpop.permute.xlu0 %2669
    %2671 = vrot.lane.b32.xlu0 %v2651, 64
    %v2672 = vpop.permute.xlu0 %2671
    %2673 = vrot.lane.b32.xlu0 %v2652, 64
    %v2674 = vpop.permute.xlu0 %2673
    %2675 = vrot.lane.b32.xlu0 %v2653, 64
    %v2676 = vpop.permute.xlu0 %2675
    %2677 = vrot.lane.b32.xlu0 %v2654, 64
    %v2678 = vpop.permute.xlu0 %2677
    %2679 = vrot.lane.b32.xlu0 %v2655, 64
    %v2680 = vpop.permute.xlu0 %2679
    %v2681 = vsel %vm533, %v2670, %v2672
    %v2682 = vsel %vm533, %v2672, %v2674
    %v2683 = vsel %vm533, %v2676, %v2678
    %v2684 = vsel %vm533, %v2678, %v2680
    %v2691 = vadd.f32 %v2609, %v2681
    %v2692 = vadd.f32 %v2610, %v2682
    %v2693 = vadd.f32 %v2611, %v2674
    %v2694 = vadd.f32 %v2612, %v2683
    %v2695 = vadd.f32 %v2613, %v2684
    %v2696 = vadd.f32 %v2614, %v2680
    %2703 = vrot.lane.b32.xlu0 %v2657, 64
    %v2704 = vpop.permute.xlu0 %2703
    %2705 = vrot.lane.b32.xlu0 %v2658, 64
    %v2706 = vpop.permute.xlu0 %2705
    %2707 = vrot.lane.b32.xlu0 %v2659, 64
    %v2708 = vpop.permute.xlu0 %2707
    %2709 = vrot.lane.b32.xlu0 %v2660, 64
    %v2710 = vpop.permute.xlu0 %2709
    %2711 = vrot.lane.b32.xlu0 %v2661, 64
    %v2712 = vpop.permute.xlu0 %2711
    %2713 = vrot.lane.b32.xlu0 %v2662, 64
    %v2714 = vpop.permute.xlu0 %2713
    %v2715 = vsel %vm533, %v2704, %v2706
    %v2716 = vsel %vm533, %v2706, %v2708
    %v2717 = vsel %vm533, %v2710, %v2712
    %v2718 = vsel %vm533, %v2712, %v2714
    %v2725 = vadd.f32 %v2643, %v2715
    %v2726 = vadd.f32 %v2644, %v2716
    %v2727 = vadd.f32 %v2645, %v2708
    %v2728 = vadd.f32 %v2646, %v2717
    %v2729 = vadd.f32 %v2647, %v2718
    %v2730 = vadd.f32 %v2648, %v2714
    %v2731 = vstv %s201
    %v2732 = vmul.f32 %v2731, %v134
    %v2733 = vmul.f32 %v2731, %v126
    %v2734 = vmul.f32 %v2731, %v136
    %v2735 = vmul.f32 %v2731, %v135
    %v2736 = vmul.f32 %v2731, %v127
    %v2737 = vmul.f32 %v2731, %v137
    %v2738 = vstv %s250
    %v2739 = vmul.f32 %v2738, %v158
    %v2740 = vmul.f32 %v2738, %v150
    %v2741 = vmul.f32 %v2738, %v160
    %v2742 = vmul.f32 %v2738, %v159
    %v2743 = vmul.f32 %v2738, %v151
    %v2744 = vmul.f32 %v2738, %v161
    %2751 = vrot.lane.b32.xlu0 %v2732, 48
    %v2752 = vpop.permute.xlu0 %2751
    %2753 = vrot.lane.b32.xlu0 %v2733, 48
    %v2754 = vpop.permute.xlu0 %2753
    %2755 = vrot.lane.b32.xlu0 %v2734, 48
    %v2756 = vpop.permute.xlu0 %2755
    %2757 = vrot.lane.b32.xlu0 %v2735, 48
    %v2758 = vpop.permute.xlu0 %2757
    %2759 = vrot.lane.b32.xlu0 %v2736, 48
    %v2760 = vpop.permute.xlu0 %2759
    %2761 = vrot.lane.b32.xlu0 %v2737, 48
    %v2762 = vpop.permute.xlu0 %2761
    %v2763 = vsel %vm608, %v2752, %v2754
    %v2764 = vsel %vm608, %v2754, %v2756
    %v2765 = vsel %vm608, %v2758, %v2760
    %v2766 = vsel %vm608, %v2760, %v2762
    %v2773 = vadd.f32 %v2691, %v2763
    %v2774 = vadd.f32 %v2692, %v2764
    %v2775 = vadd.f32 %v2693, %v2756
    %v2776 = vadd.f32 %v2694, %v2765
    %v2777 = vadd.f32 %v2695, %v2766
    %v2778 = vadd.f32 %v2696, %v2762
    %2785 = vrot.lane.b32.xlu0 %v2739, 48
    %v2786 = vpop.permute.xlu0 %2785
    %2787 = vrot.lane.b32.xlu0 %v2740, 48
    %v2788 = vpop.permute.xlu0 %2787
    %2789 = vrot.lane.b32.xlu0 %v2741, 48
    %v2790 = vpop.permute.xlu0 %2789
    %2791 = vrot.lane.b32.xlu0 %v2742, 48
    %v2792 = vpop.permute.xlu0 %2791
    %2793 = vrot.lane.b32.xlu0 %v2743, 48
    %v2794 = vpop.permute.xlu0 %2793
    %2795 = vrot.lane.b32.xlu0 %v2744, 48
    %v2796 = vpop.permute.xlu0 %2795
    %v2797 = vsel %vm608, %v2786, %v2788
    %v2798 = vsel %vm608, %v2788, %v2790
    %v2799 = vsel %vm608, %v2792, %v2794
    %v2800 = vsel %vm608, %v2794, %v2796
    %v2807 = vadd.f32 %v2725, %v2797
    %v2808 = vadd.f32 %v2726, %v2798
    %v2809 = vadd.f32 %v2727, %v2790
    %v2810 = vadd.f32 %v2728, %v2799
    %v2811 = vadd.f32 %v2729, %v2800
    %v2812 = vadd.f32 %v2730, %v2796
    %v2813 = vstv %s208
    %v2814 = vmul.f32 %v2813, %v134
    %v2815 = vmul.f32 %v2813, %v126
    %v2816 = vmul.f32 %v2813, %v136
    %v2817 = vmul.f32 %v2813, %v135
    %v2818 = vmul.f32 %v2813, %v127
    %v2819 = vmul.f32 %v2813, %v137
    %v2820 = vstv %s257
    %v2821 = vmul.f32 %v2820, %v158
    %v2822 = vmul.f32 %v2820, %v150
    %v2823 = vmul.f32 %v2820, %v160
    %v2824 = vmul.f32 %v2820, %v159
    %v2825 = vmul.f32 %v2820, %v151
    %v2826 = vmul.f32 %v2820, %v161
    %2833 = vrot.lane.b32.xlu0 %v2814, 32
    %v2834 = vpop.permute.xlu0 %2833
    %2835 = vrot.lane.b32.xlu0 %v2815, 32
    %v2836 = vpop.permute.xlu0 %2835
    %2837 = vrot.lane.b32.xlu0 %v2816, 32
    %v2838 = vpop.permute.xlu0 %2837
    %2839 = vrot.lane.b32.xlu0 %v2817, 32
    %v2840 = vpop.permute.xlu0 %2839
    %2841 = vrot.lane.b32.xlu0 %v2818, 32
    %v2842 = vpop.permute.xlu0 %2841
    %2843 = vrot.lane.b32.xlu0 %v2819, 32
    %v2844 = vpop.permute.xlu0 %2843
    %v2845 = vsel %vm683, %v2834, %v2836
    %v2846 = vsel %vm683, %v2836, %v2838
    %v2847 = vsel %vm683, %v2840, %v2842
    %v2848 = vsel %vm683, %v2842, %v2844
    %v2855 = vadd.f32 %v2773, %v2845
    %v2856 = vadd.f32 %v2774, %v2846
    %v2857 = vadd.f32 %v2775, %v2838
    %v2858 = vadd.f32 %v2776, %v2847
    %v2859 = vadd.f32 %v2777, %v2848
    %v2860 = vadd.f32 %v2778, %v2844
    %2867 = vrot.lane.b32.xlu0 %v2821, 32
    %v2868 = vpop.permute.xlu0 %2867
    %2869 = vrot.lane.b32.xlu0 %v2822, 32
    %v2870 = vpop.permute.xlu0 %2869
    %2871 = vrot.lane.b32.xlu0 %v2823, 32
    %v2872 = vpop.permute.xlu0 %2871
    %2873 = vrot.lane.b32.xlu0 %v2824, 32
    %v2874 = vpop.permute.xlu0 %2873
    %2875 = vrot.lane.b32.xlu0 %v2825, 32
    %v2876 = vpop.permute.xlu0 %2875
    %2877 = vrot.lane.b32.xlu0 %v2826, 32
    %v2878 = vpop.permute.xlu0 %2877
    %v2879 = vsel %vm683, %v2868, %v2870
    %v2880 = vsel %vm683, %v2870, %v2872
    %v2881 = vsel %vm683, %v2874, %v2876
    %v2882 = vsel %vm683, %v2876, %v2878
    %v2889 = vadd.f32 %v2807, %v2879
    %v2890 = vadd.f32 %v2808, %v2880
    %v2891 = vadd.f32 %v2809, %v2872
    %v2892 = vadd.f32 %v2810, %v2881
    %v2893 = vadd.f32 %v2811, %v2882
    %v2894 = vadd.f32 %v2812, %v2878
    %v2895 = vadd.f32 %v2855, %v2889
    %v2896 = vadd.f32 %v2856, %v2890
    %v2897 = vadd.f32 %v2857, %v2891
    %v2898 = vadd.f32 %v2858, %v2892
    %v2899 = vadd.f32 %v2859, %v2893
    %v2900 = vadd.f32 %v2860, %v2894
    %vm2901 = vcmp.lt.s32.totalorder %v264, 15
    %vm2902 = vcmp.lt.s32.totalorder %v265, 15
    %v2903 = vsel %vm2901, 1, 0
    %v2904 = vsel %vm2902, 1, 0
    %vm2905 = vcmp.eq.s32.totalorder %v2903, 1
    %vm2906 = vcmp.eq.s32.totalorder %v2904, 1
    %2913 = vrot.lane.b32.xlu0 %v2895, 124
    %v2914 = vpop.permute.xlu0 %2913
    %2915 = vrot.lane.b32.xlu0 %v2896, 124
    %v2916 = vpop.permute.xlu0 %2915
    %2917 = vrot.lane.b32.xlu0 %v2897, 124
    %v2918 = vpop.permute.xlu0 %2917
    %2919 = vrot.lane.b32.xlu0 %v2898, 124
    %v2920 = vpop.permute.xlu0 %2919
    %2921 = vrot.lane.b32.xlu0 %v2899, 124
    %v2922 = vpop.permute.xlu0 %2921
    %2923 = vrot.lane.b32.xlu0 %v2900, 124
    %v2924 = vpop.permute.xlu0 %2923
    %vm2925 = vcmask 1014784
    %v2926 = vsel %vm2925, %v2914, %v2916
    %v2927 = vsel %vm2925, %v2916, %v2918
    %v2928 = vsel %vm2925, %v2920, %v2922
    %v2929 = vsel %vm2925, %v2922, %v2924
    %v2934 = vsel %vm2905, %v2926, 0.0
    %v2935 = vsel %vm2906, %v2927, 0.0
    %v2936 = vsel %vm2905, %v2928, 0.0
    %v2937 = vsel %vm2906, %v2929, 0.0
    %v2938 = vadd.f32 %v2385, %v2934
    %v2939 = vadd.f32 %v2386, %v2935
    %v2940 = vadd.f32 %v2387, %v2936
    %v2941 = vadd.f32 %v2388, %v2937
    %v2942 = vstv %s167
    %v2943 = vmul.f32 %v2942, %v134
    %v2944 = vmul.f32 %v2942, %v126
    %v2945 = vmul.f32 %v2942, %v136
    %v2946 = vmul.f32 %v2942, %v135
    %v2947 = vmul.f32 %v2942, %v127
    %v2948 = vmul.f32 %v2942, %v137
    %v2949 = vstv %s216
    %v2950 = vmul.f32 %v2949, %v158
    %v2951 = vmul.f32 %v2949, %v150
    %v2952 = vmul.f32 %v2949, %v160
    %v2953 = vmul.f32 %v2949, %v159
    %v2954 = vmul.f32 %v2949, %v151
    %v2955 = vmul.f32 %v2949, %v161
    %v2956 = vstv %s174
    %v2957 = vmul.f32 %v2956, %v134
    %v2958 = vmul.f32 %v2956, %v126
    %v2959 = vmul.f32 %v2956, %v136
    %v2960 = vmul.f32 %v2956, %v135
    %v2961 = vmul.f32 %v2956, %v127
    %v2962 = vmul.f32 %v2956, %v137
    %v2963 = vstv %s223
    %v2964 = vmul.f32 %v2963, %v158
    %v2965 = vmul.f32 %v2963, %v150
    %v2966 = vmul.f32 %v2963, %v160
    %v2967 = vmul.f32 %v2963, %v159
    %v2968 = vmul.f32 %v2963, %v151
    %v2969 = vmul.f32 %v2963, %v161
    %2976 = vrot.lane.b32.xlu0 %v2957, 112
    %v2977 = vpop.permute.xlu0 %2976
    %2978 = vrot.lane.b32.xlu0 %v2958, 112
    %v2979 = vpop.permute.xlu0 %2978
    %2980 = vrot.lane.b32.xlu0 %v2959, 112
    %v2981 = vpop.permute.xlu0 %2980
    %2982 = vrot.lane.b32.xlu0 %v2960, 112
    %v2983 = vpop.permute.xlu0 %2982
    %2984 = vrot.lane.b32.xlu0 %v2961, 112
    %v2985 = vpop.permute.xlu0 %2984
    %2986 = vrot.lane.b32.xlu0 %v2962, 112
    %v2987 = vpop.permute.xlu0 %2986
    %v2988 = vsel %vm308, %v2977, %v2979
    %v2989 = vsel %vm308, %v2979, %v2981
    %v2990 = vsel %vm308, %v2983, %v2985
    %v2991 = vsel %vm308, %v2985, %v2987
    %v2998 = vadd.f32 %v2943, %v2988
    %v2999 = vadd.f32 %v2944, %v2989
    %v3000 = vadd.f32 %v2945, %v2981
    %v3001 = vadd.f32 %v2946, %v2990
    %v3002 = vadd.f32 %v2947, %v2991
    %v3003 = vadd.f32 %v2948, %v2987
    %3010 = vrot.lane.b32.xlu0 %v2964, 112
    %v3011 = vpop.permute.xlu0 %3010
    %3012 = vrot.lane.b32.xlu0 %v2965, 112
    %v3013 = vpop.permute.xlu0 %3012
    %3014 = vrot.lane.b32.xlu0 %v2966, 112
    %v3015 = vpop.permute.xlu0 %3014
    %3016 = vrot.lane.b32.xlu0 %v2967, 112
    %v3017 = vpop.permute.xlu0 %3016
    %3018 = vrot.lane.b32.xlu0 %v2968, 112
    %v3019 = vpop.permute.xlu0 %3018
    %3020 = vrot.lane.b32.xlu0 %v2969, 112
    %v3021 = vpop.permute.xlu0 %3020
    %v3022 = vsel %vm308, %v3011, %v3013
    %v3023 = vsel %vm308, %v3013, %v3015
    %v3024 = vsel %vm308, %v3017, %v3019
    %v3025 = vsel %vm308, %v3019, %v3021
    %v3032 = vadd.f32 %v2950, %v3022
    %v3033 = vadd.f32 %v2951, %v3023
    %v3034 = vadd.f32 %v2952, %v3015
    %v3035 = vadd.f32 %v2953, %v3024
    %v3036 = vadd.f32 %v2954, %v3025
    %v3037 = vadd.f32 %v2955, %v3021
    %v3038 = vstv %s181
    %v3039 = vmul.f32 %v3038, %v134
    %v3040 = vmul.f32 %v3038, %v126
    %v3041 = vmul.f32 %v3038, %v136
    %v3042 = vmul.f32 %v3038, %v135
    %v3043 = vmul.f32 %v3038, %v127
    %v3044 = vmul.f32 %v3038, %v137
    %v3045 = vstv %s230
    %v3046 = vmul.f32 %v3045, %v158
    %v3047 = vmul.f32 %v3045, %v150
    %v3048 = vmul.f32 %v3045, %v160
    %v3049 = vmul.f32 %v3045, %v159
    %v3050 = vmul.f32 %v3045, %v151
    %v3051 = vmul.f32 %v3045, %v161
    %3058 = vrot.lane.b32.xlu0 %v3039, 96
    %v3059 = vpop.permute.xlu0 %3058
    %3060 = vrot.lane.b32.xlu0 %v3040, 96
    %v3061 = vpop.permute.xlu0 %3060
    %3062 = vrot.lane.b32.xlu0 %v3041, 96
    %v3063 = vpop.permute.xlu0 %3062
    %3064 = vrot.lane.b32.xlu0 %v3042, 96
    %v3065 = vpop.permute.xlu0 %3064
    %3066 = vrot.lane.b32.xlu0 %v3043, 96
    %v3067 = vpop.permute.xlu0 %3066
    %3068 = vrot.lane.b32.xlu0 %v3044, 96
    %v3069 = vpop.permute.xlu0 %3068
    %v3070 = vsel %vm383, %v3059, %v3061
    %v3071 = vsel %vm383, %v3061, %v3063
    %v3072 = vsel %vm383, %v3065, %v3067
    %v3073 = vsel %vm383, %v3067, %v3069
    %v3080 = vadd.f32 %v2998, %v3070
    %v3081 = vadd.f32 %v2999, %v3071
    %v3082 = vadd.f32 %v3000, %v3063
    %v3083 = vadd.f32 %v3001, %v3072
    %v3084 = vadd.f32 %v3002, %v3073
    %v3085 = vadd.f32 %v3003, %v3069
    %3092 = vrot.lane.b32.xlu0 %v3046, 96
    %v3093 = vpop.permute.xlu0 %3092
    %3094 = vrot.lane.b32.xlu0 %v3047, 96
    %v3095 = vpop.permute.xlu0 %3094
    %3096 = vrot.lane.b32.xlu0 %v3048, 96
    %v3097 = vpop.permute.xlu0 %3096
    %3098 = vrot.lane.b32.xlu0 %v3049, 96
    %v3099 = vpop.permute.xlu0 %3098
    %3100 = vrot.lane.b32.xlu0 %v3050, 96
    %v3101 = vpop.permute.xlu0 %3100
    %3102 = vrot.lane.b32.xlu0 %v3051, 96
    %v3103 = vpop.permute.xlu0 %3102
    %v3104 = vsel %vm383, %v3093, %v3095
    %v3105 = vsel %vm383, %v3095, %v3097
    %v3106 = vsel %vm383, %v3099, %v3101
    %v3107 = vsel %vm383, %v3101, %v3103
    %v3114 = vadd.f32 %v3032, %v3104
    %v3115 = vadd.f32 %v3033, %v3105
    %v3116 = vadd.f32 %v3034, %v3097
    %v3117 = vadd.f32 %v3035, %v3106
    %v3118 = vadd.f32 %v3036, %v3107
    %v3119 = vadd.f32 %v3037, %v3103
    %v3120 = vstv %s188
    %v3121 = vmul.f32 %v3120, %v134
    %v3122 = vmul.f32 %v3120, %v126
    %v3123 = vmul.f32 %v3120, %v136
    %v3124 = vmul.f32 %v3120, %v135
    %v3125 = vmul.f32 %v3120, %v127
    %v3126 = vmul.f32 %v3120, %v137
    %v3127 = vstv %s237
    %v3128 = vmul.f32 %v3127, %v158
    %v3129 = vmul.f32 %v3127, %v150
    %v3130 = vmul.f32 %v3127, %v160
    %v3131 = vmul.f32 %v3127, %v159
    %v3132 = vmul.f32 %v3127, %v151
    %v3133 = vmul.f32 %v3127, %v161
    %3140 = vrot.lane.b32.xlu0 %v3121, 80
    %v3141 = vpop.permute.xlu0 %3140
    %3142 = vrot.lane.b32.xlu0 %v3122, 80
    %v3143 = vpop.permute.xlu0 %3142
    %3144 = vrot.lane.b32.xlu0 %v3123, 80
    %v3145 = vpop.permute.xlu0 %3144
    %3146 = vrot.lane.b32.xlu0 %v3124, 80
    %v3147 = vpop.permute.xlu0 %3146
    %3148 = vrot.lane.b32.xlu0 %v3125, 80
    %v3149 = vpop.permute.xlu0 %3148
    %3150 = vrot.lane.b32.xlu0 %v3126, 80
    %v3151 = vpop.permute.xlu0 %3150
    %v3152 = vsel %vm458, %v3141, %v3143
    %v3153 = vsel %vm458, %v3143, %v3145
    %v3154 = vsel %vm458, %v3147, %v3149
    %v3155 = vsel %vm458, %v3149, %v3151
    %v3162 = vadd.f32 %v3080, %v3152
    %v3163 = vadd.f32 %v3081, %v3153
    %v3164 = vadd.f32 %v3082, %v3145
    %v3165 = vadd.f32 %v3083, %v3154
    %v3166 = vadd.f32 %v3084, %v3155
    %v3167 = vadd.f32 %v3085, %v3151
    %3174 = vrot.lane.b32.xlu0 %v3128, 80
    %v3175 = vpop.permute.xlu0 %3174
    %3176 = vrot.lane.b32.xlu0 %v3129, 80
    %v3177 = vpop.permute.xlu0 %3176
    %3178 = vrot.lane.b32.xlu0 %v3130, 80
    %v3179 = vpop.permute.xlu0 %3178
    %3180 = vrot.lane.b32.xlu0 %v3131, 80
    %v3181 = vpop.permute.xlu0 %3180
    %3182 = vrot.lane.b32.xlu0 %v3132, 80
    %v3183 = vpop.permute.xlu0 %3182
    %3184 = vrot.lane.b32.xlu0 %v3133, 80
    %v3185 = vpop.permute.xlu0 %3184
    %v3186 = vsel %vm458, %v3175, %v3177
    %v3187 = vsel %vm458, %v3177, %v3179
    %v3188 = vsel %vm458, %v3181, %v3183
    %v3189 = vsel %vm458, %v3183, %v3185
    %v3196 = vadd.f32 %v3114, %v3186
    %v3197 = vadd.f32 %v3115, %v3187
    %v3198 = vadd.f32 %v3116, %v3179
    %v3199 = vadd.f32 %v3117, %v3188
    %v3200 = vadd.f32 %v3118, %v3189
    %v3201 = vadd.f32 %v3119, %v3185
    %v3202 = vstv %s195
    %v3203 = vmul.f32 %v3202, %v134
    %v3204 = vmul.f32 %v3202, %v126
    %v3205 = vmul.f32 %v3202, %v136
    %v3206 = vmul.f32 %v3202, %v135
    %v3207 = vmul.f32 %v3202, %v127
    %v3208 = vmul.f32 %v3202, %v137
    %v3209 = vstv %s244
    %v3210 = vmul.f32 %v3209, %v158
    %v3211 = vmul.f32 %v3209, %v150
    %v3212 = vmul.f32 %v3209, %v160
    %v3213 = vmul.f32 %v3209, %v159
    %v3214 = vmul.f32 %v3209, %v151
    %v3215 = vmul.f32 %v3209, %v161
    %3222 = vrot.lane.b32.xlu0 %v3203, 64
    %v3223 = vpop.permute.xlu0 %3222
    %3224 = vrot.lane.b32.xlu0 %v3204, 64
    %v3225 = vpop.permute.xlu0 %3224
    %3226 = vrot.lane.b32.xlu0 %v3205, 64
    %v3227 = vpop.permute.xlu0 %3226
    %3228 = vrot.lane.b32.xlu0 %v3206, 64
    %v3229 = vpop.permute.xlu0 %3228
    %3230 = vrot.lane.b32.xlu0 %v3207, 64
    %v3231 = vpop.permute.xlu0 %3230
    %3232 = vrot.lane.b32.xlu0 %v3208, 64
    %v3233 = vpop.permute.xlu0 %3232
    %v3234 = vsel %vm533, %v3223, %v3225
    %v3235 = vsel %vm533, %v3225, %v3227
    %v3236 = vsel %vm533, %v3229, %v3231
    %v3237 = vsel %vm533, %v3231, %v3233
    %v3244 = vadd.f32 %v3162, %v3234
    %v3245 = vadd.f32 %v3163, %v3235
    %v3246 = vadd.f32 %v3164, %v3227
    %v3247 = vadd.f32 %v3165, %v3236
    %v3248 = vadd.f32 %v3166, %v3237
    %v3249 = vadd.f32 %v3167, %v3233
    %3256 = vrot.lane.b32.xlu0 %v3210, 64
    %v3257 = vpop.permute.xlu0 %3256
    %3258 = vrot.lane.b32.xlu0 %v3211, 64
    %v3259 = vpop.permute.xlu0 %3258
    %3260 = vrot.lane.b32.xlu0 %v3212, 64
    %v3261 = vpop.permute.xlu0 %3260
    %3262 = vrot.lane.b32.xlu0 %v3213, 64
    %v3263 = vpop.permute.xlu0 %3262
    %3264 = vrot.lane.b32.xlu0 %v3214, 64
    %v3265 = vpop.permute.xlu0 %3264
    %3266 = vrot.lane.b32.xlu0 %v3215, 64
    %v3267 = vpop.permute.xlu0 %3266
    %v3268 = vsel %vm533, %v3257, %v3259
    %v3269 = vsel %vm533, %v3259, %v3261
    %v3270 = vsel %vm533, %v3263, %v3265
    %v3271 = vsel %vm533, %v3265, %v3267
    %v3278 = vadd.f32 %v3196, %v3268
    %v3279 = vadd.f32 %v3197, %v3269
    %v3280 = vadd.f32 %v3198, %v3261
    %v3281 = vadd.f32 %v3199, %v3270
    %v3282 = vadd.f32 %v3200, %v3271
    %v3283 = vadd.f32 %v3201, %v3267
    %v3284 = vstv %s202
    %v3285 = vmul.f32 %v3284, %v134
    %v3286 = vmul.f32 %v3284, %v126
    %v3287 = vmul.f32 %v3284, %v136
    %v3288 = vmul.f32 %v3284, %v135
    %v3289 = vmul.f32 %v3284, %v127
    %v3290 = vmul.f32 %v3284, %v137
    %v3291 = vstv %s251
    %v3292 = vmul.f32 %v3291, %v158
    %v3293 = vmul.f32 %v3291, %v150
    %v3294 = vmul.f32 %v3291, %v160
    %v3295 = vmul.f32 %v3291, %v159
    %v3296 = vmul.f32 %v3291, %v151
    %v3297 = vmul.f32 %v3291, %v161
    %3304 = vrot.lane.b32.xlu0 %v3285, 48
    %v3305 = vpop.permute.xlu0 %3304
    %3306 = vrot.lane.b32.xlu0 %v3286, 48
    %v3307 = vpop.permute.xlu0 %3306
    %3308 = vrot.lane.b32.xlu0 %v3287, 48
    %v3309 = vpop.permute.xlu0 %3308
    %3310 = vrot.lane.b32.xlu0 %v3288, 48
    %v3311 = vpop.permute.xlu0 %3310
    %3312 = vrot.lane.b32.xlu0 %v3289, 48
    %v3313 = vpop.permute.xlu0 %3312
    %3314 = vrot.lane.b32.xlu0 %v3290, 48
    %v3315 = vpop.permute.xlu0 %3314
    %v3316 = vsel %vm608, %v3305, %v3307
    %v3317 = vsel %vm608, %v3307, %v3309
    %v3318 = vsel %vm608, %v3311, %v3313
    %v3319 = vsel %vm608, %v3313, %v3315
    %v3326 = vadd.f32 %v3244, %v3316
    %v3327 = vadd.f32 %v3245, %v3317
    %v3328 = vadd.f32 %v3246, %v3309
    %v3329 = vadd.f32 %v3247, %v3318
    %v3330 = vadd.f32 %v3248, %v3319
    %v3331 = vadd.f32 %v3249, %v3315
    %3338 = vrot.lane.b32.xlu0 %v3292, 48
    %v3339 = vpop.permute.xlu0 %3338
    %3340 = vrot.lane.b32.xlu0 %v3293, 48
    %v3341 = vpop.permute.xlu0 %3340
    %3342 = vrot.lane.b32.xlu0 %v3294, 48
    %v3343 = vpop.permute.xlu0 %3342
    %3344 = vrot.lane.b32.xlu0 %v3295, 48
    %v3345 = vpop.permute.xlu0 %3344
    %3346 = vrot.lane.b32.xlu0 %v3296, 48
    %v3347 = vpop.permute.xlu0 %3346
    %3348 = vrot.lane.b32.xlu0 %v3297, 48
    %v3349 = vpop.permute.xlu0 %3348
    %v3350 = vsel %vm608, %v3339, %v3341
    %v3351 = vsel %vm608, %v3341, %v3343
    %v3352 = vsel %vm608, %v3345, %v3347
    %v3353 = vsel %vm608, %v3347, %v3349
    %v3360 = vadd.f32 %v3278, %v3350
    %v3361 = vadd.f32 %v3279, %v3351
    %v3362 = vadd.f32 %v3280, %v3343
    %v3363 = vadd.f32 %v3281, %v3352
    %v3364 = vadd.f32 %v3282, %v3353
    %v3365 = vadd.f32 %v3283, %v3349
    %v3366 = vstv %s209
    %v3367 = vmul.f32 %v3366, %v134
    %v3368 = vmul.f32 %v3366, %v126
    %v3369 = vmul.f32 %v3366, %v136
    %v3370 = vmul.f32 %v3366, %v135
    %v3371 = vmul.f32 %v3366, %v127
    %v3372 = vmul.f32 %v3366, %v137
    %v3373 = vstv %s258
    %v3374 = vmul.f32 %v3373, %v158
    %v3375 = vmul.f32 %v3373, %v150
    %v3376 = vmul.f32 %v3373, %v160
    %v3377 = vmul.f32 %v3373, %v159
    %v3378 = vmul.f32 %v3373, %v151
    %v3379 = vmul.f32 %v3373, %v161
    %3386 = vrot.lane.b32.xlu0 %v3367, 32
    %v3387 = vpop.permute.xlu0 %3386
    %3388 = vrot.lane.b32.xlu0 %v3368, 32
    %v3389 = vpop.permute.xlu0 %3388
    %3390 = vrot.lane.b32.xlu0 %v3369, 32
    %v3391 = vpop.permute.xlu0 %3390
    %3392 = vrot.lane.b32.xlu0 %v3370, 32
    %v3393 = vpop.permute.xlu0 %3392
    %3394 = vrot.lane.b32.xlu0 %v3371, 32
    %v3395 = vpop.permute.xlu0 %3394
    %3396 = vrot.lane.b32.xlu0 %v3372, 32
    %v3397 = vpop.permute.xlu0 %3396
    %v3398 = vsel %vm683, %v3387, %v3389
    %v3399 = vsel %vm683, %v3389, %v3391
    %v3400 = vsel %vm683, %v3393, %v3395
    %v3401 = vsel %vm683, %v3395, %v3397
    %v3408 = vadd.f32 %v3326, %v3398
    %v3409 = vadd.f32 %v3327, %v3399
    %v3410 = vadd.f32 %v3328, %v3391
    %v3411 = vadd.f32 %v3329, %v3400
    %v3412 = vadd.f32 %v3330, %v3401
    %v3413 = vadd.f32 %v3331, %v3397
    %3420 = vrot.lane.b32.xlu0 %v3374, 32
    %v3421 = vpop.permute.xlu0 %3420
    %3422 = vrot.lane.b32.xlu0 %v3375, 32
    %v3423 = vpop.permute.xlu0 %3422
    %3424 = vrot.lane.b32.xlu0 %v3376, 32
    %v3425 = vpop.permute.xlu0 %3424
    %3426 = vrot.lane.b32.xlu0 %v3377, 32
    %v3427 = vpop.permute.xlu0 %3426
    %3428 = vrot.lane.b32.xlu0 %v3378, 32
    %v3429 = vpop.permute.xlu0 %3428
    %3430 = vrot.lane.b32.xlu0 %v3379, 32
    %v3431 = vpop.permute.xlu0 %3430
    %v3432 = vsel %vm683, %v3421, %v3423
    %v3433 = vsel %vm683, %v3423, %v3425
    %v3434 = vsel %vm683, %v3427, %v3429
    %v3435 = vsel %vm683, %v3429, %v3431
    %v3442 = vadd.f32 %v3360, %v3432
    %v3443 = vadd.f32 %v3361, %v3433
    %v3444 = vadd.f32 %v3362, %v3425
    %v3445 = vadd.f32 %v3363, %v3434
    %v3446 = vadd.f32 %v3364, %v3435
    %v3447 = vadd.f32 %v3365, %v3431
    %v3448 = vadd.f32 %v3408, %v3442
    %v3449 = vadd.f32 %v3409, %v3443
    %v3450 = vadd.f32 %v3410, %v3444
    %v3451 = vadd.f32 %v3411, %v3445
    %v3452 = vadd.f32 %v3412, %v3446
    %v3453 = vadd.f32 %v3413, %v3447
    %vm3454 = vcmp.lt.s32.totalorder %v264, 14
    %vm3455 = vcmp.lt.s32.totalorder %v265, 14
    %v3456 = vsel %vm3454, 1, 0
    %v3457 = vsel %vm3455, 1, 0
    %vm3458 = vcmp.eq.s32.totalorder %v3456, 1
    %vm3459 = vcmp.eq.s32.totalorder %v3457, 1
    %3466 = vrot.lane.b32.xlu0 %v3448, 123
    %v3467 = vpop.permute.xlu0 %3466
    %3468 = vrot.lane.b32.xlu0 %v3449, 123
    %v3469 = vpop.permute.xlu0 %3468
    %3470 = vrot.lane.b32.xlu0 %v3450, 123
    %v3471 = vpop.permute.xlu0 %3470
    %3472 = vrot.lane.b32.xlu0 %v3451, 123
    %v3473 = vpop.permute.xlu0 %3472
    %3474 = vrot.lane.b32.xlu0 %v3452, 123
    %v3475 = vpop.permute.xlu0 %3474
    %3476 = vrot.lane.b32.xlu0 %v3453, 123
    %v3477 = vpop.permute.xlu0 %3476
    %vm3478 = vcmask 1006592
    %v3479 = vsel %vm3478, %v3467, %v3469
    %v3480 = vsel %vm3478, %v3469, %v3471
    %v3481 = vsel %vm3478, %v3473, %v3475
    %v3482 = vsel %vm3478, %v3475, %v3477
    %v3487 = vsel %vm3458, %v3479, 0.0
    %v3488 = vsel %vm3459, %v3480, 0.0
    %v3489 = vsel %vm3458, %v3481, 0.0
    %v3490 = vsel %vm3459, %v3482, 0.0
    %v3491 = vadd.f32 %v2938, %v3487
    %v3492 = vadd.f32 %v2939, %v3488
    %v3493 = vadd.f32 %v2940, %v3489
    %v3494 = vadd.f32 %v2941, %v3490
    %v3495 = vstv %s168
    %v3496 = vmul.f32 %v3495, %v134
    %v3497 = vmul.f32 %v3495, %v126
    %v3498 = vmul.f32 %v3495, %v136
    %v3499 = vmul.f32 %v3495, %v135
    %v3500 = vmul.f32 %v3495, %v127
    %v3501 = vmul.f32 %v3495, %v137
    %v3502 = vstv %s217
    %v3503 = vmul.f32 %v3502, %v158
    %v3504 = vmul.f32 %v3502, %v150
    %v3505 = vmul.f32 %v3502, %v160
    %v3506 = vmul.f32 %v3502, %v159
    %v3507 = vmul.f32 %v3502, %v151
    %v3508 = vmul.f32 %v3502, %v161
    %v3509 = vstv %s175
    %v3510 = vmul.f32 %v3509, %v134
    %v3511 = vmul.f32 %v3509, %v126
    %v3512 = vmul.f32 %v3509, %v136
    %v3513 = vmul.f32 %v3509, %v135
    %v3514 = vmul.f32 %v3509, %v127
    %v3515 = vmul.f32 %v3509, %v137
    %v3516 = vstv %s224
    %v3517 = vmul.f32 %v3516, %v158
    %v3518 = vmul.f32 %v3516, %v150
    %v3519 = vmul.f32 %v3516, %v160
    %v3520 = vmul.f32 %v3516, %v159
    %v3521 = vmul.f32 %v3516, %v151
    %v3522 = vmul.f32 %v3516, %v161
    %3529 = vrot.lane.b32.xlu0 %v3510, 112
    %v3530 = vpop.permute.xlu0 %3529
    %3531 = vrot.lane.b32.xlu0 %v3511, 112
    %v3532 = vpop.permute.xlu0 %3531
    %3533 = vrot.lane.b32.xlu0 %v3512, 112
    %v3534 = vpop.permute.xlu0 %3533
    %3535 = vrot.lane.b32.xlu0 %v3513, 112
    %v3536 = vpop.permute.xlu0 %3535
    %3537 = vrot.lane.b32.xlu0 %v3514, 112
    %v3538 = vpop.permute.xlu0 %3537
    %3539 = vrot.lane.b32.xlu0 %v3515, 112
    %v3540 = vpop.permute.xlu0 %3539
    %v3541 = vsel %vm308, %v3530, %v3532
    %v3542 = vsel %vm308, %v3532, %v3534
    %v3543 = vsel %vm308, %v3536, %v3538
    %v3544 = vsel %vm308, %v3538, %v3540
    %v3551 = vadd.f32 %v3496, %v3541
    %v3552 = vadd.f32 %v3497, %v3542
    %v3553 = vadd.f32 %v3498, %v3534
    %v3554 = vadd.f32 %v3499, %v3543
    %v3555 = vadd.f32 %v3500, %v3544
    %v3556 = vadd.f32 %v3501, %v3540
    %3563 = vrot.lane.b32.xlu0 %v3517, 112
    %v3564 = vpop.permute.xlu0 %3563
    %3565 = vrot.lane.b32.xlu0 %v3518, 112
    %v3566 = vpop.permute.xlu0 %3565
    %3567 = vrot.lane.b32.xlu0 %v3519, 112
    %v3568 = vpop.permute.xlu0 %3567
    %3569 = vrot.lane.b32.xlu0 %v3520, 112
    %v3570 = vpop.permute.xlu0 %3569
    %3571 = vrot.lane.b32.xlu0 %v3521, 112
    %v3572 = vpop.permute.xlu0 %3571
    %3573 = vrot.lane.b32.xlu0 %v3522, 112
    %v3574 = vpop.permute.xlu0 %3573
    %v3575 = vsel %vm308, %v3564, %v3566
    %v3576 = vsel %vm308, %v3566, %v3568
    %v3577 = vsel %vm308, %v3570, %v3572
    %v3578 = vsel %vm308, %v3572, %v3574
    %v3585 = vadd.f32 %v3503, %v3575
    %v3586 = vadd.f32 %v3504, %v3576
    %v3587 = vadd.f32 %v3505, %v3568
    %v3588 = vadd.f32 %v3506, %v3577
    %v3589 = vadd.f32 %v3507, %v3578
    %v3590 = vadd.f32 %v3508, %v3574
    %v3591 = vstv %s182
    %v3592 = vmul.f32 %v3591, %v134
    %v3593 = vmul.f32 %v3591, %v126
    %v3594 = vmul.f32 %v3591, %v136
    %v3595 = vmul.f32 %v3591, %v135
    %v3596 = vmul.f32 %v3591, %v127
    %v3597 = vmul.f32 %v3591, %v137
    %v3598 = vstv %s231
    %v3599 = vmul.f32 %v3598, %v158
    %v3600 = vmul.f32 %v3598, %v150
    %v3601 = vmul.f32 %v3598, %v160
    %v3602 = vmul.f32 %v3598, %v159
    %v3603 = vmul.f32 %v3598, %v151
    %v3604 = vmul.f32 %v3598, %v161
    %3611 = vrot.lane.b32.xlu0 %v3592, 96
    %v3612 = vpop.permute.xlu0 %3611
    %3613 = vrot.lane.b32.xlu0 %v3593, 96
    %v3614 = vpop.permute.xlu0 %3613
    %3615 = vrot.lane.b32.xlu0 %v3594, 96
    %v3616 = vpop.permute.xlu0 %3615
    %3617 = vrot.lane.b32.xlu0 %v3595, 96
    %v3618 = vpop.permute.xlu0 %3617
    %3619 = vrot.lane.b32.xlu0 %v3596, 96
    %v3620 = vpop.permute.xlu0 %3619
    %3621 = vrot.lane.b32.xlu0 %v3597, 96
    %v3622 = vpop.permute.xlu0 %3621
    %v3623 = vsel %vm383, %v3612, %v3614
    %v3624 = vsel %vm383, %v3614, %v3616
    %v3625 = vsel %vm383, %v3618, %v3620
    %v3626 = vsel %vm383, %v3620, %v3622
    %v3633 = vadd.f32 %v3551, %v3623
    %v3634 = vadd.f32 %v3552, %v3624
    %v3635 = vadd.f32 %v3553, %v3616
    %v3636 = vadd.f32 %v3554, %v3625
    %v3637 = vadd.f32 %v3555, %v3626
    %v3638 = vadd.f32 %v3556, %v3622
    %3645 = vrot.lane.b32.xlu0 %v3599, 96
    %v3646 = vpop.permute.xlu0 %3645
    %3647 = vrot.lane.b32.xlu0 %v3600, 96
    %v3648 = vpop.permute.xlu0 %3647
    %3649 = vrot.lane.b32.xlu0 %v3601, 96
    %v3650 = vpop.permute.xlu0 %3649
    %3651 = vrot.lane.b32.xlu0 %v3602, 96
    %v3652 = vpop.permute.xlu0 %3651
    %3653 = vrot.lane.b32.xlu0 %v3603, 96
    %v3654 = vpop.permute.xlu0 %3653
    %3655 = vrot.lane.b32.xlu0 %v3604, 96
    %v3656 = vpop.permute.xlu0 %3655
    %v3657 = vsel %vm383, %v3646, %v3648
    %v3658 = vsel %vm383, %v3648, %v3650
    %v3659 = vsel %vm383, %v3652, %v3654
    %v3660 = vsel %vm383, %v3654, %v3656
    %v3667 = vadd.f32 %v3585, %v3657
    %v3668 = vadd.f32 %v3586, %v3658
    %v3669 = vadd.f32 %v3587, %v3650
    %v3670 = vadd.f32 %v3588, %v3659
    %v3671 = vadd.f32 %v3589, %v3660
    %v3672 = vadd.f32 %v3590, %v3656
    %v3673 = vstv %s189
    %v3674 = vmul.f32 %v3673, %v134
    %v3675 = vmul.f32 %v3673, %v126
    %v3676 = vmul.f32 %v3673, %v136
    %v3677 = vmul.f32 %v3673, %v135
    %v3678 = vmul.f32 %v3673, %v127
    %v3679 = vmul.f32 %v3673, %v137
    %v3680 = vstv %s238
    %v3681 = vmul.f32 %v3680, %v158
    %v3682 = vmul.f32 %v3680, %v150
    %v3683 = vmul.f32 %v3680, %v160
    %v3684 = vmul.f32 %v3680, %v159
    %v3685 = vmul.f32 %v3680, %v151
    %v3686 = vmul.f32 %v3680, %v161
    %3693 = vrot.lane.b32.xlu0 %v3674, 80
    %v3694 = vpop.permute.xlu0 %3693
    %3695 = vrot.lane.b32.xlu0 %v3675, 80
    %v3696 = vpop.permute.xlu0 %3695
    %3697 = vrot.lane.b32.xlu0 %v3676, 80
    %v3698 = vpop.permute.xlu0 %3697
    %3699 = vrot.lane.b32.xlu0 %v3677, 80
    %v3700 = vpop.permute.xlu0 %3699
    %3701 = vrot.lane.b32.xlu0 %v3678, 80
    %v3702 = vpop.permute.xlu0 %3701
    %3703 = vrot.lane.b32.xlu0 %v3679, 80
    %v3704 = vpop.permute.xlu0 %3703
    %v3705 = vsel %vm458, %v3694, %v3696
    %v3706 = vsel %vm458, %v3696, %v3698
    %v3707 = vsel %vm458, %v3700, %v3702
    %v3708 = vsel %vm458, %v3702, %v3704
    %v3715 = vadd.f32 %v3633, %v3705
    %v3716 = vadd.f32 %v3634, %v3706
    %v3717 = vadd.f32 %v3635, %v3698
    %v3718 = vadd.f32 %v3636, %v3707
    %v3719 = vadd.f32 %v3637, %v3708
    %v3720 = vadd.f32 %v3638, %v3704
    %3727 = vrot.lane.b32.xlu0 %v3681, 80
    %v3728 = vpop.permute.xlu0 %3727
    %3729 = vrot.lane.b32.xlu0 %v3682, 80
    %v3730 = vpop.permute.xlu0 %3729
    %3731 = vrot.lane.b32.xlu0 %v3683, 80
    %v3732 = vpop.permute.xlu0 %3731
    %3733 = vrot.lane.b32.xlu0 %v3684, 80
    %v3734 = vpop.permute.xlu0 %3733
    %3735 = vrot.lane.b32.xlu0 %v3685, 80
    %v3736 = vpop.permute.xlu0 %3735
    %3737 = vrot.lane.b32.xlu0 %v3686, 80
    %v3738 = vpop.permute.xlu0 %3737
    %v3739 = vsel %vm458, %v3728, %v3730
    %v3740 = vsel %vm458, %v3730, %v3732
    %v3741 = vsel %vm458, %v3734, %v3736
    %v3742 = vsel %vm458, %v3736, %v3738
    %v3749 = vadd.f32 %v3667, %v3739
    %v3750 = vadd.f32 %v3668, %v3740
    %v3751 = vadd.f32 %v3669, %v3732
    %v3752 = vadd.f32 %v3670, %v3741
    %v3753 = vadd.f32 %v3671, %v3742
    %v3754 = vadd.f32 %v3672, %v3738
    %v3755 = vstv %s196
    %v3756 = vmul.f32 %v3755, %v134
    %v3757 = vmul.f32 %v3755, %v126
    %v3758 = vmul.f32 %v3755, %v136
    %v3759 = vmul.f32 %v3755, %v135
    %v3760 = vmul.f32 %v3755, %v127
    %v3761 = vmul.f32 %v3755, %v137
    %v3762 = vstv %s245
    %v3763 = vmul.f32 %v3762, %v158
    %v3764 = vmul.f32 %v3762, %v150
    %v3765 = vmul.f32 %v3762, %v160
    %v3766 = vmul.f32 %v3762, %v159
    %v3767 = vmul.f32 %v3762, %v151
    %v3768 = vmul.f32 %v3762, %v161
    %3775 = vrot.lane.b32.xlu0 %v3756, 64
    %v3776 = vpop.permute.xlu0 %3775
    %3777 = vrot.lane.b32.xlu0 %v3757, 64
    %v3778 = vpop.permute.xlu0 %3777
    %3779 = vrot.lane.b32.xlu0 %v3758, 64
    %v3780 = vpop.permute.xlu0 %3779
    %3781 = vrot.lane.b32.xlu0 %v3759, 64
    %v3782 = vpop.permute.xlu0 %3781
    %3783 = vrot.lane.b32.xlu0 %v3760, 64
    %v3784 = vpop.permute.xlu0 %3783
    %3785 = vrot.lane.b32.xlu0 %v3761, 64
    %v3786 = vpop.permute.xlu0 %3785
    %v3787 = vsel %vm533, %v3776, %v3778
    %v3788 = vsel %vm533, %v3778, %v3780
    %v3789 = vsel %vm533, %v3782, %v3784
    %v3790 = vsel %vm533, %v3784, %v3786
    %v3797 = vadd.f32 %v3715, %v3787
    %v3798 = vadd.f32 %v3716, %v3788
    %v3799 = vadd.f32 %v3717, %v3780
    %v3800 = vadd.f32 %v3718, %v3789
    %v3801 = vadd.f32 %v3719, %v3790
    %v3802 = vadd.f32 %v3720, %v3786
    %3809 = vrot.lane.b32.xlu0 %v3763, 64
    %v3810 = vpop.permute.xlu0 %3809
    %3811 = vrot.lane.b32.xlu0 %v3764, 64
    %v3812 = vpop.permute.xlu0 %3811
    %3813 = vrot.lane.b32.xlu0 %v3765, 64
    %v3814 = vpop.permute.xlu0 %3813
    %3815 = vrot.lane.b32.xlu0 %v3766, 64
    %v3816 = vpop.permute.xlu0 %3815
    %3817 = vrot.lane.b32.xlu0 %v3767, 64
    %v3818 = vpop.permute.xlu0 %3817
    %3819 = vrot.lane.b32.xlu0 %v3768, 64
    %v3820 = vpop.permute.xlu0 %3819
    %v3821 = vsel %vm533, %v3810, %v3812
    %v3822 = vsel %vm533, %v3812, %v3814
    %v3823 = vsel %vm533, %v3816, %v3818
    %v3824 = vsel %vm533, %v3818, %v3820
    %v3831 = vadd.f32 %v3749, %v3821
    %v3832 = vadd.f32 %v3750, %v3822
    %v3833 = vadd.f32 %v3751, %v3814
    %v3834 = vadd.f32 %v3752, %v3823
    %v3835 = vadd.f32 %v3753, %v3824
    %v3836 = vadd.f32 %v3754, %v3820
    %v3837 = vstv %s203
    %v3838 = vmul.f32 %v3837, %v134
    %v3839 = vmul.f32 %v3837, %v126
    %v3840 = vmul.f32 %v3837, %v136
    %v3841 = vmul.f32 %v3837, %v135
    %v3842 = vmul.f32 %v3837, %v127
    %v3843 = vmul.f32 %v3837, %v137
    %v3844 = vstv %s252
    %v3845 = vmul.f32 %v3844, %v158
    %v3846 = vmul.f32 %v3844, %v150
    %v3847 = vmul.f32 %v3844, %v160
    %v3848 = vmul.f32 %v3844, %v159
    %v3849 = vmul.f32 %v3844, %v151
    %v3850 = vmul.f32 %v3844, %v161
    %3857 = vrot.lane.b32.xlu0 %v3838, 48
    %v3858 = vpop.permute.xlu0 %3857
    %3859 = vrot.lane.b32.xlu0 %v3839, 48
    %v3860 = vpop.permute.xlu0 %3859
    %3861 = vrot.lane.b32.xlu0 %v3840, 48
    %v3862 = vpop.permute.xlu0 %3861
    %3863 = vrot.lane.b32.xlu0 %v3841, 48
    %v3864 = vpop.permute.xlu0 %3863
    %3865 = vrot.lane.b32.xlu0 %v3842, 48
    %v3866 = vpop.permute.xlu0 %3865
    %3867 = vrot.lane.b32.xlu0 %v3843, 48
    %v3868 = vpop.permute.xlu0 %3867
    %v3869 = vsel %vm608, %v3858, %v3860
    %v3870 = vsel %vm608, %v3860, %v3862
    %v3871 = vsel %vm608, %v3864, %v3866
    %v3872 = vsel %vm608, %v3866, %v3868
    %v3879 = vadd.f32 %v3797, %v3869
    %v3880 = vadd.f32 %v3798, %v3870
    %v3881 = vadd.f32 %v3799, %v3862
    %v3882 = vadd.f32 %v3800, %v3871
    %v3883 = vadd.f32 %v3801, %v3872
    %v3884 = vadd.f32 %v3802, %v3868
    %3891 = vrot.lane.b32.xlu0 %v3845, 48
    %v3892 = vpop.permute.xlu0 %3891
    %3893 = vrot.lane.b32.xlu0 %v3846, 48
    %v3894 = vpop.permute.xlu0 %3893
    %3895 = vrot.lane.b32.xlu0 %v3847, 48
    %v3896 = vpop.permute.xlu0 %3895
    %3897 = vrot.lane.b32.xlu0 %v3848, 48
    %v3898 = vpop.permute.xlu0 %3897
    %3899 = vrot.lane.b32.xlu0 %v3849, 48
    %v3900 = vpop.permute.xlu0 %3899
    %3901 = vrot.lane.b32.xlu0 %v3850, 48
    %v3902 = vpop.permute.xlu0 %3901
    %v3903 = vsel %vm608, %v3892, %v3894
    %v3904 = vsel %vm608, %v3894, %v3896
    %v3905 = vsel %vm608, %v3898, %v3900
    %v3906 = vsel %vm608, %v3900, %v3902
    %v3913 = vadd.f32 %v3831, %v3903
    %v3914 = vadd.f32 %v3832, %v3904
    %v3915 = vadd.f32 %v3833, %v3896
    %v3916 = vadd.f32 %v3834, %v3905
    %v3917 = vadd.f32 %v3835, %v3906
    %v3918 = vadd.f32 %v3836, %v3902
    %v3919 = vstv %s210
    %v3920 = vmul.f32 %v3919, %v134
    %v3921 = vmul.f32 %v3919, %v126
    %v3922 = vmul.f32 %v3919, %v136
    %v3923 = vmul.f32 %v3919, %v135
    %v3924 = vmul.f32 %v3919, %v127
    %v3925 = vmul.f32 %v3919, %v137
    %v3926 = vstv %s259
    %v3927 = vmul.f32 %v3926, %v158
    %v3928 = vmul.f32 %v3926, %v150
    %v3929 = vmul.f32 %v3926, %v160
    %v3930 = vmul.f32 %v3926, %v159
    %v3931 = vmul.f32 %v3926, %v151
    %v3932 = vmul.f32 %v3926, %v161
    %3939 = vrot.lane.b32.xlu0 %v3920, 32
    %v3940 = vpop.permute.xlu0 %3939
    %3941 = vrot.lane.b32.xlu0 %v3921, 32
    %v3942 = vpop.permute.xlu0 %3941
    %3943 = vrot.lane.b32.xlu0 %v3922, 32
    %v3944 = vpop.permute.xlu0 %3943
    %3945 = vrot.lane.b32.xlu0 %v3923, 32
    %v3946 = vpop.permute.xlu0 %3945
    %3947 = vrot.lane.b32.xlu0 %v3924, 32
    %v3948 = vpop.permute.xlu0 %3947
    %3949 = vrot.lane.b32.xlu0 %v3925, 32
    %v3950 = vpop.permute.xlu0 %3949
    %v3951 = vsel %vm683, %v3940, %v3942
    %v3952 = vsel %vm683, %v3942, %v3944
    %v3953 = vsel %vm683, %v3946, %v3948
    %v3954 = vsel %vm683, %v3948, %v3950
    %v3961 = vadd.f32 %v3879, %v3951
    %v3962 = vadd.f32 %v3880, %v3952
    %v3963 = vadd.f32 %v3881, %v3944
    %v3964 = vadd.f32 %v3882, %v3953
    %v3965 = vadd.f32 %v3883, %v3954
    %v3966 = vadd.f32 %v3884, %v3950
    %3973 = vrot.lane.b32.xlu0 %v3927, 32
    %v3974 = vpop.permute.xlu0 %3973
    %3975 = vrot.lane.b32.xlu0 %v3928, 32
    %v3976 = vpop.permute.xlu0 %3975
    %3977 = vrot.lane.b32.xlu0 %v3929, 32
    %v3978 = vpop.permute.xlu0 %3977
    %3979 = vrot.lane.b32.xlu0 %v3930, 32
    %v3980 = vpop.permute.xlu0 %3979
    %3981 = vrot.lane.b32.xlu0 %v3931, 32
    %v3982 = vpop.permute.xlu0 %3981
    %3983 = vrot.lane.b32.xlu0 %v3932, 32
    %v3984 = vpop.permute.xlu0 %3983
    %v3985 = vsel %vm683, %v3974, %v3976
    %v3986 = vsel %vm683, %v3976, %v3978
    %v3987 = vsel %vm683, %v3980, %v3982
    %v3988 = vsel %vm683, %v3982, %v3984
    %v3995 = vadd.f32 %v3913, %v3985
    %v3996 = vadd.f32 %v3914, %v3986
    %v3997 = vadd.f32 %v3915, %v3978
    %v3998 = vadd.f32 %v3916, %v3987
    %v3999 = vadd.f32 %v3917, %v3988
    %v4000 = vadd.f32 %v3918, %v3984
    %v4001 = vadd.f32 %v3961, %v3995
    %v4002 = vadd.f32 %v3962, %v3996
    %v4003 = vadd.f32 %v3963, %v3997
    %v4004 = vadd.f32 %v3964, %v3998
    %v4005 = vadd.f32 %v3965, %v3999
    %v4006 = vadd.f32 %v3966, %v4000
    %vm4007 = vcmp.lt.s32.totalorder %v264, 13
    %vm4008 = vcmp.lt.s32.totalorder %v265, 13
    %v4009 = vsel %vm4007, 1, 0
    %v4010 = vsel %vm4008, 1, 0
    %vm4011 = vcmp.eq.s32.totalorder %v4009, 1
    %vm4012 = vcmp.eq.s32.totalorder %v4010, 1
    %4019 = vrot.lane.b32.xlu0 %v4001, 122
    %v4020 = vpop.permute.xlu0 %4019
    %4021 = vrot.lane.b32.xlu0 %v4002, 122
    %v4022 = vpop.permute.xlu0 %4021
    %4023 = vrot.lane.b32.xlu0 %v4003, 122
    %v4024 = vpop.permute.xlu0 %4023
    %4025 = vrot.lane.b32.xlu0 %v4004, 122
    %v4026 = vpop.permute.xlu0 %4025
    %4027 = vrot.lane.b32.xlu0 %v4005, 122
    %v4028 = vpop.permute.xlu0 %4027
    %4029 = vrot.lane.b32.xlu0 %v4006, 122
    %v4030 = vpop.permute.xlu0 %4029
    %vm4031 = vcmask 998400
    %v4032 = vsel %vm4031, %v4020, %v4022
    %v4033 = vsel %vm4031, %v4022, %v4024
    %v4034 = vsel %vm4031, %v4026, %v4028
    %v4035 = vsel %vm4031, %v4028, %v4030
    %v4040 = vsel %vm4011, %v4032, 0.0
    %v4041 = vsel %vm4012, %v4033, 0.0
    %v4042 = vsel %vm4011, %v4034, 0.0
    %v4043 = vsel %vm4012, %v4035, 0.0
    %v4044 = vadd.f32 %v3491, %v4040
    %v4045 = vadd.f32 %v3492, %v4041
    %v4046 = vadd.f32 %v3493, %v4042
    %v4047 = vadd.f32 %v3494, %v4043
    %v4048 = vstv %s260
    %v4049 = vadd.f32 %v4044, %v4048
    %v4050 = vadd.f32 %v4045, %v4048
    %v4051 = vadd.f32 %v4046, %v4048
    %v4052 = vadd.f32 %v4047, %v4048
    %v4053 = vxor.u32 %v4049, 2147483648
    %v4054 = vxor.u32 %v4050, 2147483648
    %v4055 = vxor.u32 %v4051, 2147483648
    %v4056 = vxor.u32 %v4052, 2147483648
    %v4057 = vmul.f32 %v4053, 1.442695
    %v4058 = vpow.pop %v4057
    %v4059 = vmul.f32 %v4054, 1.442695
    %v4060 = vpow.pop %v4059
    %v4061 = vmul.f32 %v4055, 1.442695
    %v4062 = vpow.pop %v4061
    %v4063 = vmul.f32 %v4056, 1.442695
    %v4064 = vpow.pop %v4063
    %v4065 = vadd.f32 %v4058, 1.0
    %v4066 = vadd.f32 %v4060, 1.0
    %v4067 = vadd.f32 %v4062, 1.0
    %v4068 = vadd.f32 %v4064, 1.0
    %v4069 = vrcp.pop %v4065
    %v4070 = vmul.f32 1.0, %v4069
    %v4071 = vrcp.pop %v4066
    %v4072 = vmul.f32 1.0, %v4071
    %v4073 = vrcp.pop %v4067
    %v4074 = vmul.f32 1.0, %v4073
    %v4075 = vrcp.pop %v4068
    %v4076 = vmul.f32 1.0, %v4075
    %v4077 = vlaneseq
    %v4078 = vshrl.u32 %v4077, 7
    %v4079 = vsub.s32 0, %v4078
    %v4080 = vrot.slane %v4070, %v4079
    %v4081 = vlaneseq
    %v4082 = vshrl.u32 %v4081, 7
    %v4083 = vsub.s32 0, %v4082
    %v4084 = vrot.slane %v4072, %v4083
    %v4085 = vlaneseq
    %v4086 = vshrl.u32 %v4085, 7
    %v4087 = vsub.s32 0, %v4086
    %v4088 = vrot.slane %v4074, %v4087
    %v4089 = vlaneseq
    %v4090 = vshrl.u32 %v4089, 7
    %v4091 = vsub.s32 0, %v4090
    %v4092 = vrot.slane %v4076, %v4091
    %v4097 = vcombine.low %v4080, %v4084
    %v4098 = vcombine.low %v4088, %v4092
    %v4101 = vmul.f32 %v43, %v4097
    %v4102 = vmul.f32 %v44, %v4098
    %4103 = vst [vmem:[#allocation8] sm:$0xff] %v4101
    %4104 = vst [vmem:[#allocation8 + $0x8] sm:$0xff] %v4102
    // Predicated region
    $region22: #{tpu_custom_call.1} parent=1 // pred_check
      _
    $region23: #{tpu_custom_call.1} parent=1 // pred_check_branch
      %4106 = sbr.rel (0) target = $region25
    $region24: #{tpu_custom_call.1} parent=1 // pred_region
      %s4108 = ssub.s32 256, 256
      %4109 = vsyncadd [#allocation5], %s4108
      %s4110 = sshll.u32 [#allocation8], 4
      %s4111 = int_to_ptr.vmem [resolvable:$true] %s4110
      %4116 = dma.vmem_to_hbm [thread:$0]  %s4111, 256, %s3, [#allocation5], 128, 128, 8
    $region25: #{tpu_custom_call.1} parent=1 // pred_fallthru
      _
    // Predicated region
    $region26: #{tpu_custom_call.1} parent=1 // pred_check
      _
    $region27: #{tpu_custom_call.1} parent=1 // pred_check_branch
      %4118 = sbr.rel (0) target = $region29
    $region28: #{tpu_custom_call.1} parent=1 // pred_region
      %4119 = dma.done [#allocation5], 256
    $region29: #{tpu_custom_call.1} parent=1 // pred_fallthru
      _
    %4120 = vsyncpa [#allocation4], 1
    %4121 = vsyncpa [#allocation5], 1
    %4122 = vsyncpa [#allocation6], 1

</llo_original>
